<compile_context>
chip_gen: v5e
topology: v5e:2x2
jax: 0.10.0
libtpu: 0.0.40
codegen_flags: <defaults>
</compile_context>

<pallas_src>
import functools
import math

import jax
import jax.numpy as jnp
from jax.experimental import pallas as pl
from jax.experimental.pallas import tpu as pltpu


# ----------------------------------------------------------------------------
# Fused encoder kernel: conv2d subsampling tail + embed + posenc + one
# conformer block per grid step + after_norm.
# ----------------------------------------------------------------------------
def _encoder_kernel(p1_ref, mask_ref,
                    w1_ref, b1_ref, w2_ref, b2_ref, ewf_ref, eb_ref, pe_ref,
                    ln1_g_ref, ln1_b_ref, wqkv_ref, bqkv_ref, wo_ref, bo_ref,
                    ln2_g_ref, ln2_b_ref, wff1_ref, bff1_ref, wff2_ref, bff2_ref,
                    ag_ref, ab_ref,
                    o_ref,
                    y1_ref, x_ref,
                    *, heads, eps, T1, T2, F2, d):
    l = pl.program_id(1)
    last = pl.num_programs(1) - 1
    dk = d // heads
    sm_scale = 1.0 / math.sqrt(dk)
    neg = float(jnp.finfo(jnp.float32).min)

    def mm(a_f32, w_bf16):
        # bf16 MXU inputs, f32 accumulation.
        return jnp.dot(a_f32.astype(jnp.bfloat16), w_bf16,
                       preferred_element_type=jnp.float32)

    def ln(z, g, b):
        mu = jnp.mean(z, axis=-1, keepdims=True)
        var = jnp.mean(jnp.square(z - mu), axis=-1, keepdims=True)
        return (z - mu) * jax.lax.rsqrt(var + eps) * g + b

    # ---- Input stage: runs only on the first layer grid step ---------------
    @pl.when(l == 0)
    def _input_stage():
        # conv1 (3x3, s=2) + ReLU: one im2col matmul, rows = f1*T1 + t1.
        y1_ref[...] = jnp.maximum(mm(p1_ref[0], w1_ref[...]) + b1_ref[...], 0.0)

        # conv2 (3x3, s=2) + ReLU: per 3x3 tap, gather strided (T2, d) slabs
        # straight out of the VMEM-resident y1 and accumulate 9 matmuls.
        b2 = b2_ref[...]
        y2 = jnp.zeros((F2 * T2, d), jnp.float32)
        for t in range(9):
            i, j = divmod(t, 3)
            slabs = [y1_ref[pl.ds((2 * f2 + j) * T1 + i, T2, stride=2), :]
                     for f2 in range(F2)]
            stacked = jnp.concatenate(slabs, axis=0)          # (F2*T2, d)
            y2 = y2 + mm(stacked, w2_ref[t])
        y2 = jnp.maximum(y2 + b2, 0.0)

        # Embed Linear(d*F2 -> d), expressed per frequency bin (row slices at
        # multiples of T2 are cheap sublane slices).
        x = eb_ref[...]
        for f2 in range(F2):
            x = x + mm(y2[f2 * T2:(f2 + 1) * T2, :], ewf_ref[f2])

        # PositionalEncoding: x * sqrt(d) + pe  (dropout = identity).
        x_ref[...] = x * math.sqrt(d) + pe_ref[...]

    # ---- One conformer block per grid step (pre-norm MHA + FFN) ------------
    x = x_ref[...]                                            # (T2, d) f32
    valid = mask_ref[0]                                       # (1, T2) 0/1 f32
    neg_fill = (1.0 - valid) * neg                            # hoisted fill

    # Multi-headed self-attention sublayer.
    residual = x
    xn = ln(x, ln1_g_ref[0], ln1_b_ref[0])
    qkv = mm(xn, wqkv_ref[0]) + bqkv_ref[0]                   # (T2, 3d) f32
    qkv_bf = qkv.astype(jnp.bfloat16)
    heads_out = []
    for h in range(heads):
        q = qkv_bf[:, h * dk:(h + 1) * dk]
        k = qkv_bf[:, d + h * dk:d + (h + 1) * dk]
        v = qkv_bf[:, 2 * d + h * dk:2 * d + (h + 1) * dk]
        s = jax.lax.dot_general(q, k, (((1,), (1,)), ((), ())),
                                preferred_element_type=jnp.float32)
        s = s * sm_scale + neg_fill                           # masked_fill(min)
        smax = jnp.max(s, axis=-1, keepdims=True)
        p = jnp.exp(s - smax)
        denom = jnp.sum(p, axis=-1, keepdims=True)
        p = p * pl.reciprocal(denom, approx=True)
        p = p * valid                                         # masked_fill(0.0)
        heads_out.append(jnp.dot(p.astype(jnp.bfloat16), v,
                                 preferred_element_type=jnp.float32))
    ctx = jnp.concatenate(heads_out, axis=-1)                 # (T2, d)
    x = residual + mm(ctx, wo_ref[0]) + bo_ref[0]

    # Position-wise feed forward sublayer (Linear -> Swish -> Linear).
    residual = x
    xn = ln(x, ln2_g_ref[0], ln2_b_ref[0])
    h1 = mm(xn, wff1_ref[0]) + bff1_ref[0]
    h1 = h1 * jax.nn.sigmoid(h1)                              # Swish
    x = residual + mm(h1, wff2_ref[0]) + bff2_ref[0]

    x_ref[...] = x                                            # carry to next layer

    # ---- Output stage: after_norm + store, only on the last layer step -----
    @pl.when(l == last)
    def _output_stage():
        o_ref[0] = ln(x, ag_ref[...], ab_ref[...]).astype(o_ref.dtype)


def _run_fused_encoder(params, p1, mask_f, pe, *, T1, T2, F2):
    B, M1, _ = p1.shape
    d = params["d"]
    L = params["num_blocks"]

    const_ws = (params["w1_mat"], params["conv1_b"],
                params["w2_taps"], params["conv2_b"],
                params["embed_wf"], params["embed_b"], pe)
    layer_ws = (params["ln1_g"], params["ln1_b"],
                params["wqkv"], params["bqkv"], params["wo"], params["bo"],
                params["ln2_g"], params["ln2_b"],
                params["wff1"], params["bff1"], params["wff2"], params["bff2"])
    tail_ws = (params["after_g"], params["after_b"])

    def const_spec(a):
        return pl.BlockSpec(a.shape, lambda b, l, _nd=a.ndim: (0,) * _nd)

    def layer_spec(a):
        return pl.BlockSpec((1,) + a.shape[1:],
                            lambda b, l, _nd=a.ndim: (l,) + (0,) * (_nd - 1))

    in_specs = ([pl.BlockSpec((1, M1, 9), lambda b, l: (b, 0, 0)),
                 pl.BlockSpec((1, 1, T2), lambda b, l: (b, 0, 0))]
                + [const_spec(w) for w in const_ws]
                + [layer_spec(w) for w in layer_ws]
                + [const_spec(w) for w in tail_ws])

    kernel = functools.partial(_encoder_kernel, heads=params["heads"],
                               eps=1e-12, T1=T1, T2=T2, F2=F2, d=d)
    return pl.pallas_call(
        kernel,
        grid=(B, L),
        in_specs=in_specs,
        out_specs=pl.BlockSpec((1, T2, d), lambda b, l: (b, 0, 0)),
        out_shape=jax.ShapeDtypeStruct((B, T2, d), jnp.float32),
        scratch_shapes=[pltpu.VMEM((M1, d), jnp.float32),   # y1 (conv1 output)
                        pltpu.VMEM((T2, d), jnp.float32)],  # x carried over layers
        compiler_params=pltpu.CompilerParams(
            dimension_semantics=("parallel", "arbitrary"),
            vmem_limit_bytes=32 * 1024 * 1024),
    )(p1, mask_f, *const_ws, *layer_ws, *tail_ws)


# ----------------------------------------------------------------------------
# Plain-JAX glue: conv1 im2col patches, positional encoding, parameter init
# ----------------------------------------------------------------------------
def _pos_encoding(T, d):
    pos = jnp.arange(T, dtype=jnp.float32)[:, None]
    div = jnp.exp(jnp.arange(0, d, 2, dtype=jnp.float32) *
                  -(jnp.log(10000.0) / d))
    pe = jnp.zeros((T, d), jnp.float32)
    pe = pe.at[:, 0::2].set(jnp.sin(pos * div))
    pe = pe.at[:, 1::2].set(jnp.cos(pos * div))
    return pe


def init_params(key, idim, d, heads, units, num_blocks):
    F1 = (idim - 3) // 2 + 1
    F2 = (F1 - 3) // 2 + 1
    keys = iter(jax.random.split(key, 3 + 6 * num_blocks))

    def w(shape, scale=0.05):
        return (scale * jax.random.normal(next(keys), shape)).astype(jnp.float32)

    bf16 = jnp.bfloat16
    conv1_w = w((d, 1, 3, 3))        # torch Conv2d layout (out, in, kh, kw)
    conv2_w = w((d, d, 3, 3))
    embed_w = w((d * F2, d))         # Linear weight, (in = c*F2 + f, out) layout

    params = dict(
        d=d, heads=heads, units=units, num_blocks=num_blocks, F2=F2,
        # conv1 as im2col matmul, tap order k = i*3 + j (time, freq):
        w1_mat=conv1_w.transpose(2, 3, 1, 0).reshape(9, d).astype(bf16),
        conv1_b=jnp.zeros((1, d), jnp.float32),
        # conv2 weights per tap: w2_taps[k, cin, cout]:
        w2_taps=conv2_w.transpose(2, 3, 1, 0).reshape(9, d, d).astype(bf16),
        conv2_b=jnp.zeros((1, d), jnp.float32),
        # embed Linear split per frequency bin f: W_f[c, o] = embed_w[c*F2+f, o]
        embed_wf=jnp.stack([embed_w[f::F2, :] for f in range(F2)], 0).astype(bf16),
        embed_b=jnp.zeros((1, d), jnp.float32),
        after_g=jnp.ones((1, d), jnp.float32),
        after_b=jnp.zeros((1, d), jnp.float32),
    )

    ln1_g, ln1_b, wqkv, bqkv, wo, bo = [], [], [], [], [], []
    ln2_g, ln2_b, wff1, bff1, wff2, bff2 = [], [], [], [], [], []
    for _ in range(num_blocks):
        ln1_g.append(jnp.ones((1, d), jnp.float32))
        ln1_b.append(jnp.zeros((1, d), jnp.float32))
        wq_, wk_, wv_ = w((d, d)), w((d, d)), w((d, d))
        wqkv.append(jnp.concatenate([wq_, wk_, wv_], axis=1))   # fused QKV
        bqkv.append(jnp.zeros((1, 3 * d), jnp.float32))
        wo.append(w((d, d)))
        bo.append(jnp.zeros((1, d), jnp.float32))
        ln2_g.append(jnp.ones((1, d), jnp.float32))
        ln2_b.append(jnp.zeros((1, d), jnp.float32))
        wff1.append(w((d, units)))
        bff1.append(jnp.zeros((1, units), jnp.float32))
        wff2.append(w((units, d)))
        bff2.append(jnp.zeros((1, d), jnp.float32))

    params.update(
        ln1_g=jnp.stack(ln1_g), ln1_b=jnp.stack(ln1_b),
        wqkv=jnp.stack(wqkv).astype(bf16), bqkv=jnp.stack(bqkv),
        wo=jnp.stack(wo).astype(bf16), bo=jnp.stack(bo),
        ln2_g=jnp.stack(ln2_g), ln2_b=jnp.stack(ln2_b),
        wff1=jnp.stack(wff1).astype(bf16), bff1=jnp.stack(bff1),
        wff2=jnp.stack(wff2).astype(bf16), bff2=jnp.stack(bff2),
    )
    return params


# ----------------------------------------------------------------------------
# Forward pass (Encoder.forward)
# ----------------------------------------------------------------------------
def encoder_forward(params, xs, masks):
    """xs: (B, T, idim) f32, masks: (B, 1, T) bool -> ((B, T', d), (B, 1, T'))."""
    B, T, idim = xs.shape
    d = params["d"]
    T1 = (T - 3) // 2 + 1
    F1 = (idim - 3) // 2 + 1
    T2 = (T1 - 3) // 2 + 1
    F2 = (F1 - 3) // 2 + 1

    # conv1 im2col patches of the raw 1-channel input, freq-major rows.
    # TODO(synk): fold this last gather in-kernel too (needs lane-strided
    # loads of xs); everything downstream already lives in the fused kernel.
    cols = []
    for i in range(3):
        for j in range(3):
            cols.append(xs[:, i:i + 2 * T1 - 1:2, j:j + 2 * F1 - 1:2])
    p1 = jnp.stack(cols, axis=-1)                      # (B, T1, F1, 9)
    p1 = p1.transpose(0, 2, 1, 3).reshape(B, F1 * T1, 9)

    # mask subsampling: m[:, :, :-2:2][:, :, :-2:2]
    masks_sub = masks[:, :, :-2:2][:, :, :-2:2]
    mask_f = masks_sub.astype(jnp.float32)

    pe = _pos_encoding(T2, d)

    x = _run_fused_encoder(params, p1, mask_f, pe, T1=T1, T2=T2, F2=F2)
    return x, masks_sub


# ----------------------------------------------------------------------------
if __name__ == "__main__":
    # TODO(synk): dropout layers are treated as identity (inference semantics).
    B, T, idim = 2, 38, 16
    d, heads, units, num_blocks = 32, 4, 64, 2

    key = jax.random.PRNGKey(0)
    kx, kp = jax.random.split(key)
    xs = jax.random.normal(kx, (B, T, idim), dtype=jnp.float32)
    lengths = jnp.array([T, T - 6])
    masks = jnp.arange(T)[None, None, :] < lengths[:, None, None]   # (B,1,T) bool

    params = init_params(kp, idim, d, heads, units, num_blocks)

    fwd = jax.jit(lambda x_, m_: encoder_forward(params, x_, m_))
    out, out_masks = fwd(xs, masks)
    jax.block_until_ready(out)
    jax.block_until_ready(out_masks)

    T2 = ((T - 1) // 2 - 1) // 2
    assert out.shape == (B, T2, d)
    assert out_masks.shape == (B, 1, T2)
    assert bool(jnp.isfinite(out).all())
    print("KERNEL_OK")
</pallas_src>

<mosaic_0001>
module attributes {stable_mosaic.version = 11 : i64} {
  func.func @_encoder_kernel(%arg0: i32, %arg1: i32, %arg2: memref<1x126x9xf32, #tpu.memory_space<vmem>>, %arg3: memref<1x1x8xf32, #tpu.memory_space<vmem>>, %arg4: memref<9x32xbf16, #tpu.memory_space<vmem>>, %arg5: memref<1x32xf32, #tpu.memory_space<vmem>>, %arg6: memref<9x32x32xbf16, #tpu.memory_space<vmem>>, %arg7: memref<1x32xf32, #tpu.memory_space<vmem>>, %arg8: memref<3x32x32xbf16, #tpu.memory_space<vmem>>, %arg9: memref<1x32xf32, #tpu.memory_space<vmem>>, %arg10: memref<8x32xf32, #tpu.memory_space<vmem>>, %arg11: memref<1x1x32xf32, #tpu.memory_space<vmem>>, %arg12: memref<1x1x32xf32, #tpu.memory_space<vmem>>, %arg13: memref<1x32x96xbf16, #tpu.memory_space<vmem>>, %arg14: memref<1x1x96xf32, #tpu.memory_space<vmem>>, %arg15: memref<1x32x32xbf16, #tpu.memory_space<vmem>>, %arg16: memref<1x1x32xf32, #tpu.memory_space<vmem>>, %arg17: memref<1x1x32xf32, #tpu.memory_space<vmem>>, %arg18: memref<1x1x32xf32, #tpu.memory_space<vmem>>, %arg19: memref<1x32x64xbf16, #tpu.memory_space<vmem>>, %arg20: memref<1x1x64xf32, #tpu.memory_space<vmem>>, %arg21: memref<1x64x32xbf16, #tpu.memory_space<vmem>>, %arg22: memref<1x1x32xf32, #tpu.memory_space<vmem>>, %arg23: memref<1x32xf32, #tpu.memory_space<vmem>>, %arg24: memref<1x32xf32, #tpu.memory_space<vmem>>, %arg25: memref<1x8x32xf32, #tpu.memory_space<vmem>>, %arg26: memref<126x32xf32, #tpu.memory_space<vmem>>, %arg27: memref<8x32xf32, #tpu.memory_space<vmem>>) attributes {dimension_semantics = [#tpu.dimension_semantics<parallel>, #tpu.dimension_semantics<arbitrary>], iteration_bounds = array<i64: 2, 2>, scalar_prefetch = 0 : i64, scratch_operands = 2 : i64, tpu.core_type = #tpu.core_type<tc>, window_params = [{transform_indices = @transform_0, window_bounds = array<i64: 1, 126, 9>}, {transform_indices = @transform_1, window_bounds = array<i64: 1, 1, 8>}, {pipeline_mode = #tpu.pipeline_mode<synchronous>, transform_indices = @transform_2, window_bounds = array<i64: 9, 32>}, {pipeline_mode = #tpu.pipeline_mode<synchronous>, transform_indices = @transform_3, window_bounds = array<i64: 1, 32>}, {pipeline_mode = #tpu.pipeline_mode<synchronous>, transform_indices = @transform_4, window_bounds = array<i64: 9, 32, 32>}, {pipeline_mode = #tpu.pipeline_mode<synchronous>, transform_indices = @transform_5, window_bounds = array<i64: 1, 32>}, {pipeline_mode = #tpu.pipeline_mode<synchronous>, transform_indices = @transform_6, window_bounds = array<i64: 3, 32, 32>}, {pipeline_mode = #tpu.pipeline_mode<synchronous>, transform_indices = @transform_7, window_bounds = array<i64: 1, 32>}, {pipeline_mode = #tpu.pipeline_mode<synchronous>, transform_indices = @transform_8, window_bounds = array<i64: 8, 32>}, {transform_indices = @transform_9, window_bounds = array<i64: 1, 1, 32>}, {transform_indices = @transform_10, window_bounds = array<i64: 1, 1, 32>}, {transform_indices = @transform_11, window_bounds = array<i64: 1, 32, 96>}, {transform_indices = @transform_12, window_bounds = array<i64: 1, 1, 96>}, {transform_indices = @transform_13, window_bounds = array<i64: 1, 32, 32>}, {transform_indices = @transform_14, window_bounds = array<i64: 1, 1, 32>}, {transform_indices = @transform_15, window_bounds = array<i64: 1, 1, 32>}, {transform_indices = @transform_16, window_bounds = array<i64: 1, 1, 32>}, {transform_indices = @transform_17, window_bounds = array<i64: 1, 32, 64>}, {transform_indices = @transform_18, window_bounds = array<i64: 1, 1, 64>}, {transform_indices = @transform_19, window_bounds = array<i64: 1, 64, 32>}, {transform_indices = @transform_20, window_bounds = array<i64: 1, 1, 32>}, {pipeline_mode = #tpu.pipeline_mode<synchronous>, transform_indices = @transform_21, window_bounds = array<i64: 1, 32>}, {pipeline_mode = #tpu.pipeline_mode<synchronous>, transform_indices = @transform_22, window_bounds = array<i64: 1, 32>}, {transform_indices = @transform_23, window_bounds = array<i64: 1, 8, 32>}]} {
    %c0_i32 = arith.constant 0 : i32
    %0 = arith.cmpi eq, %arg1, %c0_i32 : i32
    %1 = arith.extui %0 : i1 to i32
    %c0_i32_0 = arith.constant 0 : i32
    %2 = arith.cmpi ne, %1, %c0_i32_0 : i32
    scf.if %2 {
      %c0_80 = arith.constant 0 : index
      %c0_81 = arith.constant 0 : index
      %c0_82 = arith.constant 0 : index
      %196 = vector.load %arg2[%c0_80, %c0_81, %c0_82] : memref<1x126x9xf32, #tpu.memory_space<vmem>>, vector<1x126x9xf32>
      %197 = vector.shape_cast %196 : vector<1x126x9xf32> to vector<126x9xf32>
      %c0_83 = arith.constant 0 : index
      %c0_84 = arith.constant 0 : index
      %198 = vector.load %arg4[%c0_83, %c0_84] : memref<9x32xbf16, #tpu.memory_space<vmem>>, vector<9x32xbf16>
      %199 = arith.truncf %197 : vector<126x9xf32> to vector<126x9xbf16>
      %cst_85 = arith.constant dense<0.000000e+00> : vector<126x32xf32>
      %200 = tpu.matmul %199, %198, %cst_85 {dimension_numbers = #tpu.dot_dimension_numbers<[1], [0], [0], [1], [0, 0, 1, 1], [], []>} : vector<126x9xbf16>, vector<9x32xbf16>, vector<126x32xf32> -> vector<126x32xf32>
      %c0_86 = arith.constant 0 : index
      %c0_87 = arith.constant 0 : index
      %201 = vector.load %arg5[%c0_86, %c0_87] : memref<1x32xf32, #tpu.memory_space<vmem>>, vector<1x32xf32>
      %202 = vector.broadcast %201 : vector<1x32xf32> to vector<126x32xf32>
      %203 = arith.addf %200, %202 : vector<126x32xf32>
      %cst_88 = arith.constant 0.000000e+00 : f32
      %204 = vector.broadcast %cst_88 : f32 to vector<126x32xf32>
      %205 = arith.maximumf %203, %204 : vector<126x32xf32>
      %c0_89 = arith.constant 0 : index
      %c0_90 = arith.constant 0 : index
      %206 = vector.load %arg26[%c0_89, %c0_90] : memref<126x32xf32, #tpu.memory_space<vmem>>, vector<126x32xf32>
      tpu.vector_store %arg26[%c0_89, %c0_90], %205 {strides = array<i32>} : memref<126x32xf32, #tpu.memory_space<vmem>>, vector<126x32xf32>,
      %c0_91 = arith.constant 0 : index
      %c0_92 = arith.constant 0 : index
      %207 = vector.load %arg7[%c0_91, %c0_92] : memref<1x32xf32, #tpu.memory_space<vmem>>, vector<1x32xf32>
      %cst_93 = arith.constant 0.000000e+00 : f32
      %208 = vector.broadcast %cst_93 : f32 to vector<24x32xf32>
      %c0_94 = arith.constant 0 : index
      %c0_95 = arith.constant 0 : index
      %209 = tpu.strided_load %arg26[%c0_94, %c0_95] {strides = array<i32: 2, 1>} : memref<126x32xf32, #tpu.memory_space<vmem>>, vector<8x32xf32>
      %c36 = arith.constant 36 : index
      %c0_96 = arith.constant 0 : index
      %210 = tpu.strided_load %arg26[%c36, %c0_96] {strides = array<i32: 2, 1>} : memref<126x32xf32, #tpu.memory_space<vmem>>, vector<8x32xf32>
      %c72 = arith.constant 72 : index
      %c0_97 = arith.constant 0 : index
      %211 = tpu.strided_load %arg26[%c72, %c0_97] {strides = array<i32: 2, 1>} : memref<126x32xf32, #tpu.memory_space<vmem>>, vector<8x32xf32>
      %212 = tpu.concatenate %209, %210, %211 in 0 : vector<8x32xf32>, vector<8x32xf32>, vector<8x32xf32> -> vector<24x32xf32>
      %c0_98 = arith.constant 0 : index
      %c0_99 = arith.constant 0 : index
      %c0_100 = arith.constant 0 : index
      %213 = vector.load %arg6[%c0_98, %c0_99, %c0_100] : memref<9x32x32xbf16, #tpu.memory_space<vmem>>, vector<1x32x32xbf16>
      %214 = vector.shape_cast %213 : vector<1x32x32xbf16> to vector<32x32xbf16>
      %215 = arith.truncf %212 : vector<24x32xf32> to vector<24x32xbf16>
      %cst_101 = arith.constant dense<0.000000e+00> : vector<24x32xf32>
      %216 = tpu.matmul %215, %214, %cst_101 {dimension_numbers = #tpu.dot_dimension_numbers<[1], [0], [0], [1], [0, 0, 1, 1], [], []>} : vector<24x32xbf16>, vector<32x32xbf16>, vector<24x32xf32> -> vector<24x32xf32>
      %217 = arith.addf %208, %216 : vector<24x32xf32>
      %c18 = arith.constant 18 : index
      %c0_102 = arith.constant 0 : index
      %218 = tpu.strided_load %arg26[%c18, %c0_102] {strides = array<i32: 2, 1>} : memref<126x32xf32, #tpu.memory_space<vmem>>, vector<8x32xf32>
      %c54 = arith.constant 54 : index
      %c0_103 = arith.constant 0 : index
      %219 = tpu.strided_load %arg26[%c54, %c0_103] {strides = array<i32: 2, 1>} : memref<126x32xf32, #tpu.memory_space<vmem>>, vector<8x32xf32>
      %c90 = arith.constant 90 : index
      %c0_104 = arith.constant 0 : index
      %220 = tpu.strided_load %arg26[%c90, %c0_104] {strides = array<i32: 2, 1>} : memref<126x32xf32, #tpu.memory_space<vmem>>, vector<8x32xf32>
      %221 = tpu.concatenate %218, %219, %220 in 0 : vector<8x32xf32>, vector<8x32xf32>, vector<8x32xf32> -> vector<24x32xf32>
      %c1 = arith.constant 1 : index
      %c0_105 = arith.constant 0 : index
      %c0_106 = arith.constant 0 : index
      %222 = vector.load %arg6[%c1, %c0_105, %c0_106] : memref<9x32x32xbf16, #tpu.memory_space<vmem>>, vector<1x32x32xbf16>
      %223 = vector.shape_cast %222 : vector<1x32x32xbf16> to vector<32x32xbf16>
      %224 = arith.truncf %221 : vector<24x32xf32> to vector<24x32xbf16>
      %cst_107 = arith.constant dense<0.000000e+00> : vector<24x32xf32>
      %225 = tpu.matmul %224, %223, %cst_107 {dimension_numbers = #tpu.dot_dimension_numbers<[1], [0], [0], [1], [0, 0, 1, 1], [], []>} : vector<24x32xbf16>, vector<32x32xbf16>, vector<24x32xf32> -> vector<24x32xf32>
      %226 = arith.addf %217, %225 : vector<24x32xf32>
      %c36_108 = arith.constant 36 : index
      %c0_109 = arith.constant 0 : index
      %227 = tpu.strided_load %arg26[%c36_108, %c0_109] {strides = array<i32: 2, 1>} : memref<126x32xf32, #tpu.memory_space<vmem>>, vector<8x32xf32>
      %c72_110 = arith.constant 72 : index
      %c0_111 = arith.constant 0 : index
      %228 = tpu.strided_load %arg26[%c72_110, %c0_111] {strides = array<i32: 2, 1>} : memref<126x32xf32, #tpu.memory_space<vmem>>, vector<8x32xf32>
      %c108 = arith.constant 108 : index
      %c0_112 = arith.constant 0 : index
      %229 = tpu.strided_load %arg26[%c108, %c0_112] {strides = array<i32: 2, 1>} : memref<126x32xf32, #tpu.memory_space<vmem>>, vector<8x32xf32>
      %230 = tpu.concatenate %227, %228, %229 in 0 : vector<8x32xf32>, vector<8x32xf32>, vector<8x32xf32> -> vector<24x32xf32>
      %c2 = arith.constant 2 : index
      %c0_113 = arith.constant 0 : index
      %c0_114 = arith.constant 0 : index
      %231 = vector.load %arg6[%c2, %c0_113, %c0_114] : memref<9x32x32xbf16, #tpu.memory_space<vmem>>, vector<1x32x32xbf16>
      %232 = vector.shape_cast %231 : vector<1x32x32xbf16> to vector<32x32xbf16>
      %233 = arith.truncf %230 : vector<24x32xf32> to vector<24x32xbf16>
      %cst_115 = arith.constant dense<0.000000e+00> : vector<24x32xf32>
      %234 = tpu.matmul %233, %232, %cst_115 {dimension_numbers = #tpu.dot_dimension_numbers<[1], [0], [0], [1], [0, 0, 1, 1], [], []>} : vector<24x32xbf16>, vector<32x32xbf16>, vector<24x32xf32> -> vector<24x32xf32>
      %235 = arith.addf %226, %234 : vector<24x32xf32>
      %c1_116 = arith.constant 1 : index
      %c0_117 = arith.constant 0 : index
      %236 = tpu.strided_load %arg26[%c1_116, %c0_117] {strides = array<i32: 2, 1>} : memref<126x32xf32, #tpu.memory_space<vmem>>, vector<8x32xf32>
      %c37 = arith.constant 37 : index
      %c0_118 = arith.constant 0 : index
      %237 = tpu.strided_load %arg26[%c37, %c0_118] {strides = array<i32: 2, 1>} : memref<126x32xf32, #tpu.memory_space<vmem>>, vector<8x32xf32>
      %c73 = arith.constant 73 : index
      %c0_119 = arith.constant 0 : index
      %238 = tpu.strided_load %arg26[%c73, %c0_119] {strides = array<i32: 2, 1>} : memref<126x32xf32, #tpu.memory_space<vmem>>, vector<8x32xf32>
      %239 = tpu.concatenate %236, %237, %238 in 0 : vector<8x32xf32>, vector<8x32xf32>, vector<8x32xf32> -> vector<24x32xf32>
      %c3 = arith.constant 3 : index
      %c0_120 = arith.constant 0 : index
      %c0_121 = arith.constant 0 : index
      %240 = vector.load %arg6[%c3, %c0_120, %c0_121] : memref<9x32x32xbf16, #tpu.memory_space<vmem>>, vector<1x32x32xbf16>
      %241 = vector.shape_cast %240 : vector<1x32x32xbf16> to vector<32x32xbf16>
      %242 = arith.truncf %239 : vector<24x32xf32> to vector<24x32xbf16>
      %cst_122 = arith.constant dense<0.000000e+00> : vector<24x32xf32>
      %243 = tpu.matmul %242, %241, %cst_122 {dimension_numbers = #tpu.dot_dimension_numbers<[1], [0], [0], [1], [0, 0, 1, 1], [], []>} : vector<24x32xbf16>, vector<32x32xbf16>, vector<24x32xf32> -> vector<24x32xf32>
      %244 = arith.addf %235, %243 : vector<24x32xf32>
      %c19 = arith.constant 19 : index
      %c0_123 = arith.constant 0 : index
      %245 = tpu.strided_load %arg26[%c19, %c0_123] {strides = array<i32: 2, 1>} : memref<126x32xf32, #tpu.memory_space<vmem>>, vector<8x32xf32>
      %c55 = arith.constant 55 : index
      %c0_124 = arith.constant 0 : index
      %246 = tpu.strided_load %arg26[%c55, %c0_124] {strides = array<i32: 2, 1>} : memref<126x32xf32, #tpu.memory_space<vmem>>, vector<8x32xf32>
      %c91 = arith.constant 91 : index
      %c0_125 = arith.constant 0 : index
      %247 = tpu.strided_load %arg26[%c91, %c0_125] {strides = array<i32: 2, 1>} : memref<126x32xf32, #tpu.memory_space<vmem>>, vector<8x32xf32>
      %248 = tpu.concatenate %245, %246, %247 in 0 : vector<8x32xf32>, vector<8x32xf32>, vector<8x32xf32> -> vector<24x32xf32>
      %c4 = arith.constant 4 : index
      %c0_126 = arith.constant 0 : index
      %c0_127 = arith.constant 0 : index
      %249 = vector.load %arg6[%c4, %c0_126, %c0_127] : memref<9x32x32xbf16, #tpu.memory_space<vmem>>, vector<1x32x32xbf16>
      %250 = vector.shape_cast %249 : vector<1x32x32xbf16> to vector<32x32xbf16>
      %251 = arith.truncf %248 : vector<24x32xf32> to vector<24x32xbf16>
      %cst_128 = arith.constant dense<0.000000e+00> : vector<24x32xf32>
      %252 = tpu.matmul %251, %250, %cst_128 {dimension_numbers = #tpu.dot_dimension_numbers<[1], [0], [0], [1], [0, 0, 1, 1], [], []>} : vector<24x32xbf16>, vector<32x32xbf16>, vector<24x32xf32> -> vector<24x32xf32>
      %253 = arith.addf %244, %252 : vector<24x32xf32>
      %c37_129 = arith.constant 37 : index
      %c0_130 = arith.constant 0 : index
      %254 = tpu.strided_load %arg26[%c37_129, %c0_130] {strides = array<i32: 2, 1>} : memref<126x32xf32, #tpu.memory_space<vmem>>, vector<8x32xf32>
      %c73_131 = arith.constant 73 : index
      %c0_132 = arith.constant 0 : index
      %255 = tpu.strided_load %arg26[%c73_131, %c0_132] {strides = array<i32: 2, 1>} : memref<126x32xf32, #tpu.memory_space<vmem>>, vector<8x32xf32>
      %c109 = arith.constant 109 : index
      %c0_133 = arith.constant 0 : index
      %256 = tpu.strided_load %arg26[%c109, %c0_133] {strides = array<i32: 2, 1>} : memref<126x32xf32, #tpu.memory_space<vmem>>, vector<8x32xf32>
      %257 = tpu.concatenate %254, %255, %256 in 0 : vector<8x32xf32>, vector<8x32xf32>, vector<8x32xf32> -> vector<24x32xf32>
      %c5 = arith.constant 5 : index
      %c0_134 = arith.constant 0 : index
      %c0_135 = arith.constant 0 : index
      %258 = vector.load %arg6[%c5, %c0_134, %c0_135] : memref<9x32x32xbf16, #tpu.memory_space<vmem>>, vector<1x32x32xbf16>
      %259 = vector.shape_cast %258 : vector<1x32x32xbf16> to vector<32x32xbf16>
      %260 = arith.truncf %257 : vector<24x32xf32> to vector<24x32xbf16>
      %cst_136 = arith.constant dense<0.000000e+00> : vector<24x32xf32>
      %261 = tpu.matmul %260, %259, %cst_136 {dimension_numbers = #tpu.dot_dimension_numbers<[1], [0], [0], [1], [0, 0, 1, 1], [], []>} : vector<24x32xbf16>, vector<32x32xbf16>, vector<24x32xf32> -> vector<24x32xf32>
      %262 = arith.addf %253, %261 : vector<24x32xf32>
      %c2_137 = arith.constant 2 : index
      %c0_138 = arith.constant 0 : index
      %263 = tpu.strided_load %arg26[%c2_137, %c0_138] {strides = array<i32: 2, 1>} : memref<126x32xf32, #tpu.memory_space<vmem>>, vector<8x32xf32>
      %c38 = arith.constant 38 : index
      %c0_139 = arith.constant 0 : index
      %264 = tpu.strided_load %arg26[%c38, %c0_139] {strides = array<i32: 2, 1>} : memref<126x32xf32, #tpu.memory_space<vmem>>, vector<8x32xf32>
      %c74 = arith.constant 74 : index
      %c0_140 = arith.constant 0 : index
      %265 = tpu.strided_load %arg26[%c74, %c0_140] {strides = array<i32: 2, 1>} : memref<126x32xf32, #tpu.memory_space<vmem>>, vector<8x32xf32>
      %266 = tpu.concatenate %263, %264, %265 in 0 : vector<8x32xf32>, vector<8x32xf32>, vector<8x32xf32> -> vector<24x32xf32>
      %c6 = arith.constant 6 : index
      %c0_141 = arith.constant 0 : index
      %c0_142 = arith.constant 0 : index
      %267 = vector.load %arg6[%c6, %c0_141, %c0_142] : memref<9x32x32xbf16, #tpu.memory_space<vmem>>, vector<1x32x32xbf16>
      %268 = vector.shape_cast %267 : vector<1x32x32xbf16> to vector<32x32xbf16>
      %269 = arith.truncf %266 : vector<24x32xf32> to vector<24x32xbf16>
      %cst_143 = arith.constant dense<0.000000e+00> : vector<24x32xf32>
      %270 = tpu.matmul %269, %268, %cst_143 {dimension_numbers = #tpu.dot_dimension_numbers<[1], [0], [0], [1], [0, 0, 1, 1], [], []>} : vector<24x32xbf16>, vector<32x32xbf16>, vector<24x32xf32> -> vector<24x32xf32>
      %271 = arith.addf %262, %270 : vector<24x32xf32>
      %c20 = arith.constant 20 : index
      %c0_144 = arith.constant 0 : index
      %272 = tpu.strided_load %arg26[%c20, %c0_144] {strides = array<i32: 2, 1>} : memref<126x32xf32, #tpu.memory_space<vmem>>, vector<8x32xf32>
      %c56 = arith.constant 56 : index
      %c0_145 = arith.constant 0 : index
      %273 = tpu.strided_load %arg26[%c56, %c0_145] {strides = array<i32: 2, 1>} : memref<126x32xf32, #tpu.memory_space<vmem>>, vector<8x32xf32>
      %c92 = arith.constant 92 : index
      %c0_146 = arith.constant 0 : index
      %274 = tpu.strided_load %arg26[%c92, %c0_146] {strides = array<i32: 2, 1>} : memref<126x32xf32, #tpu.memory_space<vmem>>, vector<8x32xf32>
      %275 = tpu.concatenate %272, %273, %274 in 0 : vector<8x32xf32>, vector<8x32xf32>, vector<8x32xf32> -> vector<24x32xf32>
      %c7 = arith.constant 7 : index
      %c0_147 = arith.constant 0 : index
      %c0_148 = arith.constant 0 : index
      %276 = vector.load %arg6[%c7, %c0_147, %c0_148] : memref<9x32x32xbf16, #tpu.memory_space<vmem>>, vector<1x32x32xbf16>
      %277 = vector.shape_cast %276 : vector<1x32x32xbf16> to vector<32x32xbf16>
      %278 = arith.truncf %275 : vector<24x32xf32> to vector<24x32xbf16>
      %cst_149 = arith.constant dense<0.000000e+00> : vector<24x32xf32>
      %279 = tpu.matmul %278, %277, %cst_149 {dimension_numbers = #tpu.dot_dimension_numbers<[1], [0], [0], [1], [0, 0, 1, 1], [], []>} : vector<24x32xbf16>, vector<32x32xbf16>, vector<24x32xf32> -> vector<24x32xf32>
      %280 = arith.addf %271, %279 : vector<24x32xf32>
      %c38_150 = arith.constant 38 : index
      %c0_151 = arith.constant 0 : index
      %281 = tpu.strided_load %arg26[%c38_150, %c0_151] {strides = array<i32: 2, 1>} : memref<126x32xf32, #tpu.memory_space<vmem>>, vector<8x32xf32>
      %c74_152 = arith.constant 74 : index
      %c0_153 = arith.constant 0 : index
      %282 = tpu.strided_load %arg26[%c74_152, %c0_153] {strides = array<i32: 2, 1>} : memref<126x32xf32, #tpu.memory_space<vmem>>, vector<8x32xf32>
      %c110 = arith.constant 110 : index
      %c0_154 = arith.constant 0 : index
      %283 = tpu.strided_load %arg26[%c110, %c0_154] {strides = array<i32: 2, 1>} : memref<126x32xf32, #tpu.memory_space<vmem>>, vector<8x32xf32>
      %284 = tpu.concatenate %281, %282, %283 in 0 : vector<8x32xf32>, vector<8x32xf32>, vector<8x32xf32> -> vector<24x32xf32>
      %c8 = arith.constant 8 : index
      %c0_155 = arith.constant 0 : index
      %c0_156 = arith.constant 0 : index
      %285 = vector.load %arg6[%c8, %c0_155, %c0_156] : memref<9x32x32xbf16, #tpu.memory_space<vmem>>, vector<1x32x32xbf16>
      %286 = vector.shape_cast %285 : vector<1x32x32xbf16> to vector<32x32xbf16>
      %287 = arith.truncf %284 : vector<24x32xf32> to vector<24x32xbf16>
      %cst_157 = arith.constant dense<0.000000e+00> : vector<24x32xf32>
      %288 = tpu.matmul %287, %286, %cst_157 {dimension_numbers = #tpu.dot_dimension_numbers<[1], [0], [0], [1], [0, 0, 1, 1], [], []>} : vector<24x32xbf16>, vector<32x32xbf16>, vector<24x32xf32> -> vector<24x32xf32>
      %289 = arith.addf %280, %288 : vector<24x32xf32>
      %290 = vector.broadcast %207 : vector<1x32xf32> to vector<24x32xf32>
      %291 = arith.addf %289, %290 : vector<24x32xf32>
      %cst_158 = arith.constant 0.000000e+00 : f32
      %292 = vector.broadcast %cst_158 : f32 to vector<24x32xf32>
      %293 = arith.maximumf %291, %292 : vector<24x32xf32>
      %c0_159 = arith.constant 0 : index
      %c0_160 = arith.constant 0 : index
      %294 = vector.load %arg9[%c0_159, %c0_160] : memref<1x32xf32, #tpu.memory_space<vmem>>, vector<1x32xf32>
      %295 = vector.extract_strided_slice %293 {offsets = [0, 0], sizes = [8, 32], strides = [1, 1]} : vector<24x32xf32> to vector<8x32xf32>
      %c0_161 = arith.constant 0 : index
      %c0_162 = arith.constant 0 : index
      %c0_163 = arith.constant 0 : index
      %296 = vector.load %arg8[%c0_161, %c0_162, %c0_163] : memref<3x32x32xbf16, #tpu.memory_space<vmem>>, vector<1x32x32xbf16>
      %297 = vector.shape_cast %296 : vector<1x32x32xbf16> to vector<32x32xbf16>
      %298 = arith.truncf %295 : vector<8x32xf32> to vector<8x32xbf16>
      %cst_164 = arith.constant dense<0.000000e+00> : vector<8x32xf32>
      %299 = tpu.matmul %298, %297, %cst_164 {dimension_numbers = #tpu.dot_dimension_numbers<[1], [0], [0], [1], [0, 0, 1, 1], [], []>} : vector<8x32xbf16>, vector<32x32xbf16>, vector<8x32xf32> -> vector<8x32xf32>
      %300 = vector.broadcast %294 : vector<1x32xf32> to vector<8x32xf32>
      %301 = arith.addf %300, %299 : vector<8x32xf32>
      %302 = vector.extract_strided_slice %293 {offsets = [8, 0], sizes = [8, 32], strides = [1, 1]} : vector<24x32xf32> to vector<8x32xf32>
      %c1_165 = arith.constant 1 : index
      %c0_166 = arith.constant 0 : index
      %c0_167 = arith.constant 0 : index
      %303 = vector.load %arg8[%c1_165, %c0_166, %c0_167] : memref<3x32x32xbf16, #tpu.memory_space<vmem>>, vector<1x32x32xbf16>
      %304 = vector.shape_cast %303 : vector<1x32x32xbf16> to vector<32x32xbf16>
      %305 = arith.truncf %302 : vector<8x32xf32> to vector<8x32xbf16>
      %cst_168 = arith.constant dense<0.000000e+00> : vector<8x32xf32>
      %306 = tpu.matmul %305, %304, %cst_168 {dimension_numbers = #tpu.dot_dimension_numbers<[1], [0], [0], [1], [0, 0, 1, 1], [], []>} : vector<8x32xbf16>, vector<32x32xbf16>, vector<8x32xf32> -> vector<8x32xf32>
      %307 = arith.addf %301, %306 : vector<8x32xf32>
      %308 = vector.extract_strided_slice %293 {offsets = [16, 0], sizes = [8, 32], strides = [1, 1]} : vector<24x32xf32> to vector<8x32xf32>
      %c2_169 = arith.constant 2 : index
      %c0_170 = arith.constant 0 : index
      %c0_171 = arith.constant 0 : index
      %309 = vector.load %arg8[%c2_169, %c0_170, %c0_171] : memref<3x32x32xbf16, #tpu.memory_space<vmem>>, vector<1x32x32xbf16>
      %310 = vector.shape_cast %309 : vector<1x32x32xbf16> to vector<32x32xbf16>
      %311 = arith.truncf %308 : vector<8x32xf32> to vector<8x32xbf16>
      %cst_172 = arith.constant dense<0.000000e+00> : vector<8x32xf32>
      %312 = tpu.matmul %311, %310, %cst_172 {dimension_numbers = #tpu.dot_dimension_numbers<[1], [0], [0], [1], [0, 0, 1, 1], [], []>} : vector<8x32xbf16>, vector<32x32xbf16>, vector<8x32xf32> -> vector<8x32xf32>
      %313 = arith.addf %307, %312 : vector<8x32xf32>
      %cst_173 = arith.constant 5.65685415 : f32
      %314 = vector.broadcast %cst_173 : f32 to vector<8x32xf32>
      %315 = arith.mulf %313, %314 : vector<8x32xf32>
      %c0_174 = arith.constant 0 : index
      %c0_175 = arith.constant 0 : index
      %316 = vector.load %arg10[%c0_174, %c0_175] : memref<8x32xf32, #tpu.memory_space<vmem>>, vector<8x32xf32>
      %317 = arith.addf %315, %316 : vector<8x32xf32>
      %c0_176 = arith.constant 0 : index
      %c0_177 = arith.constant 0 : index
      %318 = vector.load %arg27[%c0_176, %c0_177] : memref<8x32xf32, #tpu.memory_space<vmem>>, vector<8x32xf32>
      tpu.vector_store %arg27[%c0_176, %c0_177], %317 {strides = array<i32>} : memref<8x32xf32, #tpu.memory_space<vmem>>, vector<8x32xf32>,
    } else {
    }
    %c0 = arith.constant 0 : index
    %c0_1 = arith.constant 0 : index
    %3 = vector.load %arg27[%c0, %c0_1] : memref<8x32xf32, #tpu.memory_space<vmem>>, vector<8x32xf32>
    %c0_2 = arith.constant 0 : index
    %c0_3 = arith.constant 0 : index
    %c0_4 = arith.constant 0 : index
    %4 = vector.load %arg3[%c0_2, %c0_3, %c0_4] : memref<1x1x8xf32, #tpu.memory_space<vmem>>, vector<1x1x8xf32>
    %5 = vector.shape_cast %4 : vector<1x1x8xf32> to vector<1x8xf32>
    %cst = arith.constant 1.000000e+00 : f32
    %6 = vector.broadcast %cst : f32 to vector<1x8xf32>
    %7 = arith.subf %6, %5 : vector<1x8xf32>
    %cst_5 = arith.constant -3.40282347E+38 : f32
    %8 = vector.broadcast %cst_5 : f32 to vector<1x8xf32>
    %9 = arith.mulf %7, %8 : vector<1x8xf32>
    %c0_6 = arith.constant 0 : index
    %c0_7 = arith.constant 0 : index
    %c0_8 = arith.constant 0 : index
    %10 = vector.load %arg11[%c0_6, %c0_7, %c0_8] : memref<1x1x32xf32, #tpu.memory_space<vmem>>, vector<1x1x32xf32>
    %11 = vector.shape_cast %10 : vector<1x1x32xf32> to vector<1x32xf32>
    %c0_9 = arith.constant 0 : index
    %c0_10 = arith.constant 0 : index
    %c0_11 = arith.constant 0 : index
    %12 = vector.load %arg12[%c0_9, %c0_10, %c0_11] : memref<1x1x32xf32, #tpu.memory_space<vmem>>, vector<1x1x32xf32>
    %13 = vector.shape_cast %12 : vector<1x1x32xf32> to vector<1x32xf32>
    %cst_12 = arith.constant dense<0.000000e+00> : vector<8xf32>
    %14 = vector.multi_reduction <add>, %3, %cst_12 [1] : vector<8x32xf32> to vector<8xf32>
    %15 = vector.shape_cast %14 : vector<8xf32> to vector<8x1xf32>
    %cst_13 = arith.constant 3.200000e+01 : f32
    %16 = vector.broadcast %cst_13 : f32 to vector<8x1xf32>
    %17 = arith.divf %15, %16 : vector<8x1xf32>
    %18 = vector.broadcast %17 : vector<8x1xf32> to vector<8x32xf32>
    %19 = arith.subf %3, %18 : vector<8x32xf32>
    %20 = arith.mulf %19, %19 : vector<8x32xf32>
    %cst_14 = arith.constant dense<0.000000e+00> : vector<8xf32>
    %21 = vector.multi_reduction <add>, %20, %cst_14 [1] : vector<8x32xf32> to vector<8xf32>
    %22 = vector.shape_cast %21 : vector<8xf32> to vector<8x1xf32>
    %cst_15 = arith.constant 3.200000e+01 : f32
    %23 = vector.broadcast %cst_15 : f32 to vector<8x1xf32>
    %24 = arith.divf %22, %23 : vector<8x1xf32>
    %25 = vector.broadcast %17 : vector<8x1xf32> to vector<8x32xf32>
    %26 = arith.subf %3, %25 : vector<8x32xf32>
    %cst_16 = arith.constant 9.99999996E-13 : f32
    %27 = vector.broadcast %cst_16 : f32 to vector<8x1xf32>
    %28 = arith.addf %24, %27 : vector<8x1xf32>
    %29 = math.rsqrt %28 : vector<8x1xf32>
    %30 = vector.broadcast %29 : vector<8x1xf32> to vector<8x32xf32>
    %31 = arith.mulf %26, %30 : vector<8x32xf32>
    %32 = vector.broadcast %11 : vector<1x32xf32> to vector<8x32xf32>
    %33 = arith.mulf %31, %32 : vector<8x32xf32>
    %34 = vector.broadcast %13 : vector<1x32xf32> to vector<8x32xf32>
    %35 = arith.addf %33, %34 : vector<8x32xf32>
    %c0_17 = arith.constant 0 : index
    %c0_18 = arith.constant 0 : index
    %c0_19 = arith.constant 0 : index
    %36 = vector.load %arg13[%c0_17, %c0_18, %c0_19] : memref<1x32x96xbf16, #tpu.memory_space<vmem>>, vector<1x32x96xbf16>
    %37 = vector.shape_cast %36 : vector<1x32x96xbf16> to vector<32x96xbf16>
    %38 = arith.truncf %35 : vector<8x32xf32> to vector<8x32xbf16>
    %cst_20 = arith.constant dense<0.000000e+00> : vector<8x96xf32>
    %39 = tpu.matmul %38, %37, %cst_20 {dimension_numbers = #tpu.dot_dimension_numbers<[1], [0], [0], [1], [0, 0, 1, 1], [], []>} : vector<8x32xbf16>, vector<32x96xbf16>, vector<8x96xf32> -> vector<8x96xf32>
    %c0_21 = arith.constant 0 : index
    %c0_22 = arith.constant 0 : index
    %c0_23 = arith.constant 0 : index
    %40 = vector.load %arg14[%c0_21, %c0_22, %c0_23] : memref<1x1x96xf32, #tpu.memory_space<vmem>>, vector<1x1x96xf32>
    %41 = vector.shape_cast %40 : vector<1x1x96xf32> to vector<1x96xf32>
    %42 = vector.broadcast %41 : vector<1x96xf32> to vector<8x96xf32>
    %43 = arith.addf %39, %42 : vector<8x96xf32>
    %44 = arith.truncf %43 : vector<8x96xf32> to vector<8x96xbf16>
    %45 = vector.extract_strided_slice %44 {offsets = [0, 0], sizes = [8, 8], strides = [1, 1]} : vector<8x96xbf16> to vector<8x8xbf16>
    %46 = vector.extract_strided_slice %44 {offsets = [0, 32], sizes = [8, 8], strides = [1, 1]} : vector<8x96xbf16> to vector<8x8xbf16>
    %47 = vector.extract_strided_slice %44 {offsets = [0, 64], sizes = [8, 8], strides = [1, 1]} : vector<8x96xbf16> to vector<8x8xbf16>
    %cst_24 = arith.constant dense<0.000000e+00> : vector<8x8xf32>
    %48 = tpu.matmul %45, %46, %cst_24 {dimension_numbers = #tpu.dot_dimension_numbers<[1], [1], [0], [0], [0, 0, 1, 0], [], []>} : vector<8x8xbf16>, vector<8x8xbf16>, vector<8x8xf32> -> vector<8x8xf32>
    %cst_25 = arith.constant 0.353553385 : f32
    %49 = vector.broadcast %cst_25 : f32 to vector<8x8xf32>
    %50 = arith.mulf %48, %49 : vector<8x8xf32>
    %51 = vector.broadcast %9 : vector<1x8xf32> to vector<8x8xf32>
    %52 = arith.addf %50, %51 : vector<8x8xf32>
    %cst_26 = arith.constant dense<0xFF800000> : vector<8xf32>
    %53 = vector.multi_reduction <maximumf>, %52, %cst_26 [1] : vector<8x8xf32> to vector<8xf32>
    %54 = vector.shape_cast %53 : vector<8xf32> to vector<8x1xf32>
    %55 = vector.broadcast %54 : vector<8x1xf32> to vector<8x8xf32>
    %56 = arith.subf %52, %55 : vector<8x8xf32>
    %57 = math.exp %56 : vector<8x8xf32>
    %cst_27 = arith.constant dense<0.000000e+00> : vector<8xf32>
    %58 = vector.multi_reduction <add>, %57, %cst_27 [1] : vector<8x8xf32> to vector<8xf32>
    %59 = vector.shape_cast %58 : vector<8xf32> to vector<8x1xf32>
    %60 = tpu.reciprocal %59 {approx = true} : vector<8x1xf32> -> vector<8x1xf32>
    %61 = vector.broadcast %60 : vector<8x1xf32> to vector<8x8xf32>
    %62 = arith.mulf %57, %61 : vector<8x8xf32>
    %63 = vector.broadcast %5 : vector<1x8xf32> to vector<8x8xf32>
    %64 = arith.mulf %62, %63 : vector<8x8xf32>
    %65 = arith.truncf %64 : vector<8x8xf32> to vector<8x8xbf16>
    %cst_28 = arith.constant dense<0.000000e+00> : vector<8x8xf32>
    %66 = tpu.matmul %65, %47, %cst_28 {dimension_numbers = #tpu.dot_dimension_numbers<[1], [0], [0], [1], [0, 0, 1, 1], [], []>} : vector<8x8xbf16>, vector<8x8xbf16>, vector<8x8xf32> -> vector<8x8xf32>
    %67 = vector.extract_strided_slice %44 {offsets = [0, 8], sizes = [8, 8], strides = [1, 1]} : vector<8x96xbf16> to vector<8x8xbf16>
    %68 = vector.extract_strided_slice %44 {offsets = [0, 40], sizes = [8, 8], strides = [1, 1]} : vector<8x96xbf16> to vector<8x8xbf16>
    %69 = vector.extract_strided_slice %44 {offsets = [0, 72], sizes = [8, 8], strides = [1, 1]} : vector<8x96xbf16> to vector<8x8xbf16>
    %cst_29 = arith.constant dense<0.000000e+00> : vector<8x8xf32>
    %70 = tpu.matmul %67, %68, %cst_29 {dimension_numbers = #tpu.dot_dimension_numbers<[1], [1], [0], [0], [0, 0, 1, 0], [], []>} : vector<8x8xbf16>, vector<8x8xbf16>, vector<8x8xf32> -> vector<8x8xf32>
    %cst_30 = arith.constant 0.353553385 : f32
    %71 = vector.broadcast %cst_30 : f32 to vector<8x8xf32>
    %72 = arith.mulf %70, %71 : vector<8x8xf32>
    %73 = vector.broadcast %9 : vector<1x8xf32> to vector<8x8xf32>
    %74 = arith.addf %72, %73 : vector<8x8xf32>
    %cst_31 = arith.constant dense<0xFF800000> : vector<8xf32>
    %75 = vector.multi_reduction <maximumf>, %74, %cst_31 [1] : vector<8x8xf32> to vector<8xf32>
    %76 = vector.shape_cast %75 : vector<8xf32> to vector<8x1xf32>
    %77 = vector.broadcast %76 : vector<8x1xf32> to vector<8x8xf32>
    %78 = arith.subf %74, %77 : vector<8x8xf32>
    %79 = math.exp %78 : vector<8x8xf32>
    %cst_32 = arith.constant dense<0.000000e+00> : vector<8xf32>
    %80 = vector.multi_reduction <add>, %79, %cst_32 [1] : vector<8x8xf32> to vector<8xf32>
    %81 = vector.shape_cast %80 : vector<8xf32> to vector<8x1xf32>
    %82 = tpu.reciprocal %81 {approx = true} : vector<8x1xf32> -> vector<8x1xf32>
    %83 = vector.broadcast %82 : vector<8x1xf32> to vector<8x8xf32>
    %84 = arith.mulf %79, %83 : vector<8x8xf32>
    %85 = vector.broadcast %5 : vector<1x8xf32> to vector<8x8xf32>
    %86 = arith.mulf %84, %85 : vector<8x8xf32>
    %87 = arith.truncf %86 : vector<8x8xf32> to vector<8x8xbf16>
    %cst_33 = arith.constant dense<0.000000e+00> : vector<8x8xf32>
    %88 = tpu.matmul %87, %69, %cst_33 {dimension_numbers = #tpu.dot_dimension_numbers<[1], [0], [0], [1], [0, 0, 1, 1], [], []>} : vector<8x8xbf16>, vector<8x8xbf16>, vector<8x8xf32> -> vector<8x8xf32>
    %89 = vector.extract_strided_slice %44 {offsets = [0, 16], sizes = [8, 8], strides = [1, 1]} : vector<8x96xbf16> to vector<8x8xbf16>
    %90 = vector.extract_strided_slice %44 {offsets = [0, 48], sizes = [8, 8], strides = [1, 1]} : vector<8x96xbf16> to vector<8x8xbf16>
    %91 = vector.extract_strided_slice %44 {offsets = [0, 80], sizes = [8, 8], strides = [1, 1]} : vector<8x96xbf16> to vector<8x8xbf16>
    %cst_34 = arith.constant dense<0.000000e+00> : vector<8x8xf32>
    %92 = tpu.matmul %89, %90, %cst_34 {dimension_numbers = #tpu.dot_dimension_numbers<[1], [1], [0], [0], [0, 0, 1, 0], [], []>} : vector<8x8xbf16>, vector<8x8xbf16>, vector<8x8xf32> -> vector<8x8xf32>
    %cst_35 = arith.constant 0.353553385 : f32
    %93 = vector.broadcast %cst_35 : f32 to vector<8x8xf32>
    %94 = arith.mulf %92, %93 : vector<8x8xf32>
    %95 = vector.broadcast %9 : vector<1x8xf32> to vector<8x8xf32>
    %96 = arith.addf %94, %95 : vector<8x8xf32>
    %cst_36 = arith.constant dense<0xFF800000> : vector<8xf32>
    %97 = vector.multi_reduction <maximumf>, %96, %cst_36 [1] : vector<8x8xf32> to vector<8xf32>
    %98 = vector.shape_cast %97 : vector<8xf32> to vector<8x1xf32>
    %99 = vector.broadcast %98 : vector<8x1xf32> to vector<8x8xf32>
    %100 = arith.subf %96, %99 : vector<8x8xf32>
    %101 = math.exp %100 : vector<8x8xf32>
    %cst_37 = arith.constant dense<0.000000e+00> : vector<8xf32>
    %102 = vector.multi_reduction <add>, %101, %cst_37 [1] : vector<8x8xf32> to vector<8xf32>
    %103 = vector.shape_cast %102 : vector<8xf32> to vector<8x1xf32>
    %104 = tpu.reciprocal %103 {approx = true} : vector<8x1xf32> -> vector<8x1xf32>
    %105 = vector.broadcast %104 : vector<8x1xf32> to vector<8x8xf32>
    %106 = arith.mulf %101, %105 : vector<8x8xf32>
    %107 = vector.broadcast %5 : vector<1x8xf32> to vector<8x8xf32>
    %108 = arith.mulf %106, %107 : vector<8x8xf32>
    %109 = arith.truncf %108 : vector<8x8xf32> to vector<8x8xbf16>
    %cst_38 = arith.constant dense<0.000000e+00> : vector<8x8xf32>
    %110 = tpu.matmul %109, %91, %cst_38 {dimension_numbers = #tpu.dot_dimension_numbers<[1], [0], [0], [1], [0, 0, 1, 1], [], []>} : vector<8x8xbf16>, vector<8x8xbf16>, vector<8x8xf32> -> vector<8x8xf32>
    %111 = vector.extract_strided_slice %44 {offsets = [0, 24], sizes = [8, 8], strides = [1, 1]} : vector<8x96xbf16> to vector<8x8xbf16>
    %112 = vector.extract_strided_slice %44 {offsets = [0, 56], sizes = [8, 8], strides = [1, 1]} : vector<8x96xbf16> to vector<8x8xbf16>
    %113 = vector.extract_strided_slice %44 {offsets = [0, 88], sizes = [8, 8], strides = [1, 1]} : vector<8x96xbf16> to vector<8x8xbf16>
    %cst_39 = arith.constant dense<0.000000e+00> : vector<8x8xf32>
    %114 = tpu.matmul %111, %112, %cst_39 {dimension_numbers = #tpu.dot_dimension_numbers<[1], [1], [0], [0], [0, 0, 1, 0], [], []>} : vector<8x8xbf16>, vector<8x8xbf16>, vector<8x8xf32> -> vector<8x8xf32>
    %cst_40 = arith.constant 0.353553385 : f32
    %115 = vector.broadcast %cst_40 : f32 to vector<8x8xf32>
    %116 = arith.mulf %114, %115 : vector<8x8xf32>
    %117 = vector.broadcast %9 : vector<1x8xf32> to vector<8x8xf32>
    %118 = arith.addf %116, %117 : vector<8x8xf32>
    %cst_41 = arith.constant dense<0xFF800000> : vector<8xf32>
    %119 = vector.multi_reduction <maximumf>, %118, %cst_41 [1] : vector<8x8xf32> to vector<8xf32>
    %120 = vector.shape_cast %119 : vector<8xf32> to vector<8x1xf32>
    %121 = vector.broadcast %120 : vector<8x1xf32> to vector<8x8xf32>
    %122 = arith.subf %118, %121 : vector<8x8xf32>
    %123 = math.exp %122 : vector<8x8xf32>
    %cst_42 = arith.constant dense<0.000000e+00> : vector<8xf32>
    %124 = vector.multi_reduction <add>, %123, %cst_42 [1] : vector<8x8xf32> to vector<8xf32>
    %125 = vector.shape_cast %124 : vector<8xf32> to vector<8x1xf32>
    %126 = tpu.reciprocal %125 {approx = true} : vector<8x1xf32> -> vector<8x1xf32>
    %127 = vector.broadcast %126 : vector<8x1xf32> to vector<8x8xf32>
    %128 = arith.mulf %123, %127 : vector<8x8xf32>
    %129 = vector.broadcast %5 : vector<1x8xf32> to vector<8x8xf32>
    %130 = arith.mulf %128, %129 : vector<8x8xf32>
    %131 = arith.truncf %130 : vector<8x8xf32> to vector<8x8xbf16>
    %cst_43 = arith.constant dense<0.000000e+00> : vector<8x8xf32>
    %132 = tpu.matmul %131, %113, %cst_43 {dimension_numbers = #tpu.dot_dimension_numbers<[1], [0], [0], [1], [0, 0, 1, 1], [], []>} : vector<8x8xbf16>, vector<8x8xbf16>, vector<8x8xf32> -> vector<8x8xf32>
    %133 = tpu.concatenate %66, %88, %110, %132 in 1 : vector<8x8xf32>, vector<8x8xf32>, vector<8x8xf32>, vector<8x8xf32> -> vector<8x32xf32>
    %c0_44 = arith.constant 0 : index
    %c0_45 = arith.constant 0 : index
    %c0_46 = arith.constant 0 : index
    %134 = vector.load %arg15[%c0_44, %c0_45, %c0_46] : memref<1x32x32xbf16, #tpu.memory_space<vmem>>, vector<1x32x32xbf16>
    %135 = vector.shape_cast %134 : vector<1x32x32xbf16> to vector<32x32xbf16>
    %136 = arith.truncf %133 : vector<8x32xf32> to vector<8x32xbf16>
    %cst_47 = arith.constant dense<0.000000e+00> : vector<8x32xf32>
    %137 = tpu.matmul %136, %135, %cst_47 {dimension_numbers = #tpu.dot_dimension_numbers<[1], [0], [0], [1], [0, 0, 1, 1], [], []>} : vector<8x32xbf16>, vector<32x32xbf16>, vector<8x32xf32> -> vector<8x32xf32>
    %138 = arith.addf %3, %137 : vector<8x32xf32>
    %c0_48 = arith.constant 0 : index
    %c0_49 = arith.constant 0 : index
    %c0_50 = arith.constant 0 : index
    %139 = vector.load %arg16[%c0_48, %c0_49, %c0_50] : memref<1x1x32xf32, #tpu.memory_space<vmem>>, vector<1x1x32xf32>
    %140 = vector.shape_cast %139 : vector<1x1x32xf32> to vector<1x32xf32>
    %141 = vector.broadcast %140 : vector<1x32xf32> to vector<8x32xf32>
    %142 = arith.addf %138, %141 : vector<8x32xf32>
    %c0_51 = arith.constant 0 : index
    %c0_52 = arith.constant 0 : index
    %c0_53 = arith.constant 0 : index
    %143 = vector.load %arg17[%c0_51, %c0_52, %c0_53] : memref<1x1x32xf32, #tpu.memory_space<vmem>>, vector<1x1x32xf32>
    %144 = vector.shape_cast %143 : vector<1x1x32xf32> to vector<1x32xf32>
    %c0_54 = arith.constant 0 : index
    %c0_55 = arith.constant 0 : index
    %c0_56 = arith.constant 0 : index
    %145 = vector.load %arg18[%c0_54, %c0_55, %c0_56] : memref<1x1x32xf32, #tpu.memory_space<vmem>>, vector<1x1x32xf32>
    %146 = vector.shape_cast %145 : vector<1x1x32xf32> to vector<1x32xf32>
    %cst_57 = arith.constant dense<0.000000e+00> : vector<8xf32>
    %147 = vector.multi_reduction <add>, %142, %cst_57 [1] : vector<8x32xf32> to vector<8xf32>
    %148 = vector.shape_cast %147 : vector<8xf32> to vector<8x1xf32>
    %cst_58 = arith.constant 3.200000e+01 : f32
    %149 = vector.broadcast %cst_58 : f32 to vector<8x1xf32>
    %150 = arith.divf %148, %149 : vector<8x1xf32>
    %151 = vector.broadcast %150 : vector<8x1xf32> to vector<8x32xf32>
    %152 = arith.subf %142, %151 : vector<8x32xf32>
    %153 = arith.mulf %152, %152 : vector<8x32xf32>
    %cst_59 = arith.constant dense<0.000000e+00> : vector<8xf32>
    %154 = vector.multi_reduction <add>, %153, %cst_59 [1] : vector<8x32xf32> to vector<8xf32>
    %155 = vector.shape_cast %154 : vector<8xf32> to vector<8x1xf32>
    %cst_60 = arith.constant 3.200000e+01 : f32
    %156 = vector.broadcast %cst_60 : f32 to vector<8x1xf32>
    %157 = arith.divf %155, %156 : vector<8x1xf32>
    %158 = vector.broadcast %150 : vector<8x1xf32> to vector<8x32xf32>
    %159 = arith.subf %142, %158 : vector<8x32xf32>
    %cst_61 = arith.constant 9.99999996E-13 : f32
    %160 = vector.broadcast %cst_61 : f32 to vector<8x1xf32>
    %161 = arith.addf %157, %160 : vector<8x1xf32>
    %162 = math.rsqrt %161 : vector<8x1xf32>
    %163 = vector.broadcast %162 : vector<8x1xf32> to vector<8x32xf32>
    %164 = arith.mulf %159, %163 : vector<8x32xf32>
    %165 = vector.broadcast %144 : vector<1x32xf32> to vector<8x32xf32>
    %166 = arith.mulf %164, %165 : vector<8x32xf32>
    %167 = vector.broadcast %146 : vector<1x32xf32> to vector<8x32xf32>
    %168 = arith.addf %166, %167 : vector<8x32xf32>
    %c0_62 = arith.constant 0 : index
    %c0_63 = arith.constant 0 : index
    %c0_64 = arith.constant 0 : index
    %169 = vector.load %arg19[%c0_62, %c0_63, %c0_64] : memref<1x32x64xbf16, #tpu.memory_space<vmem>>, vector<1x32x64xbf16>
    %170 = vector.shape_cast %169 : vector<1x32x64xbf16> to vector<32x64xbf16>
    %171 = arith.truncf %168 : vector<8x32xf32> to vector<8x32xbf16>
    %cst_65 = arith.constant dense<0.000000e+00> : vector<8x64xf32>
    %172 = tpu.matmul %171, %170, %cst_65 {dimension_numbers = #tpu.dot_dimension_numbers<[1], [0], [0], [1], [0, 0, 1, 1], [], []>} : vector<8x32xbf16>, vector<32x64xbf16>, vector<8x64xf32> -> vector<8x64xf32>
    %c0_66 = arith.constant 0 : index
    %c0_67 = arith.constant 0 : index
    %c0_68 = arith.constant 0 : index
    %173 = vector.load %arg20[%c0_66, %c0_67, %c0_68] : memref<1x1x64xf32, #tpu.memory_space<vmem>>, vector<1x1x64xf32>
    %174 = vector.shape_cast %173 : vector<1x1x64xf32> to vector<1x64xf32>
    %175 = vector.broadcast %174 : vector<1x64xf32> to vector<8x64xf32>
    %176 = arith.addf %172, %175 : vector<8x64xf32>
    %177 = arith.negf %176 : vector<8x64xf32>
    %178 = math.exp %177 : vector<8x64xf32>
    %cst_69 = arith.constant 1.000000e+00 : f32
    %179 = vector.broadcast %cst_69 : f32 to vector<8x64xf32>
    %180 = arith.addf %179, %178 : vector<8x64xf32>
    %181 = arith.divf %179, %180 : vector<8x64xf32>
    %182 = arith.mulf %176, %181 : vector<8x64xf32>
    %c0_70 = arith.constant 0 : index
    %c0_71 = arith.constant 0 : index
    %c0_72 = arith.constant 0 : index
    %183 = vector.load %arg21[%c0_70, %c0_71, %c0_72] : memref<1x64x32xbf16, #tpu.memory_space<vmem>>, vector<1x64x32xbf16>
    %184 = vector.shape_cast %183 : vector<1x64x32xbf16> to vector<64x32xbf16>
    %185 = arith.truncf %182 : vector<8x64xf32> to vector<8x64xbf16>
    %cst_73 = arith.constant dense<0.000000e+00> : vector<8x32xf32>
    %186 = tpu.matmul %185, %184, %cst_73 {dimension_numbers = #tpu.dot_dimension_numbers<[1], [0], [0], [1], [0, 0, 1, 1], [], []>} : vector<8x64xbf16>, vector<64x32xbf16>, vector<8x32xf32> -> vector<8x32xf32>
    %187 = arith.addf %142, %186 : vector<8x32xf32>
    %c0_74 = arith.constant 0 : index
    %c0_75 = arith.constant 0 : index
    %c0_76 = arith.constant 0 : index
    %188 = vector.load %arg22[%c0_74, %c0_75, %c0_76] : memref<1x1x32xf32, #tpu.memory_space<vmem>>, vector<1x1x32xf32>
    %189 = vector.shape_cast %188 : vector<1x1x32xf32> to vector<1x32xf32>
    %190 = vector.broadcast %189 : vector<1x32xf32> to vector<8x32xf32>
    %191 = arith.addf %187, %190 : vector<8x32xf32>
    %c0_77 = arith.constant 0 : index
    %c0_78 = arith.constant 0 : index
    %192 = vector.load %arg27[%c0_77, %c0_78] : memref<8x32xf32, #tpu.memory_space<vmem>>, vector<8x32xf32>
    tpu.vector_store %arg27[%c0_77, %c0_78], %191 {strides = array<i32>} : memref<8x32xf32, #tpu.memory_space<vmem>>, vector<8x32xf32>,
    %c1_i32 = arith.constant 1 : i32
    %193 = arith.cmpi eq, %arg1, %c1_i32 : i32
    %194 = arith.extui %193 : i1 to i32
    %c0_i32_79 = arith.constant 0 : i32
    %195 = arith.cmpi ne, %194, %c0_i32_79 : i32
    scf.if %195 {
      %c0_80 = arith.constant 0 : index
      %c0_81 = arith.constant 0 : index
      %196 = vector.load %arg23[%c0_80, %c0_81] : memref<1x32xf32, #tpu.memory_space<vmem>>, vector<1x32xf32>
      %c0_82 = arith.constant 0 : index
      %c0_83 = arith.constant 0 : index
      %197 = vector.load %arg24[%c0_82, %c0_83] : memref<1x32xf32, #tpu.memory_space<vmem>>, vector<1x32xf32>
      %cst_84 = arith.constant dense<0.000000e+00> : vector<8xf32>
      %198 = vector.multi_reduction <add>, %191, %cst_84 [1] : vector<8x32xf32> to vector<8xf32>
      %199 = vector.shape_cast %198 : vector<8xf32> to vector<8x1xf32>
      %cst_85 = arith.constant 3.200000e+01 : f32
      %200 = vector.broadcast %cst_85 : f32 to vector<8x1xf32>
      %201 = arith.divf %199, %200 : vector<8x1xf32>
      %202 = vector.broadcast %201 : vector<8x1xf32> to vector<8x32xf32>
      %203 = arith.subf %191, %202 : vector<8x32xf32>
      %204 = arith.mulf %203, %203 : vector<8x32xf32>
      %cst_86 = arith.constant dense<0.000000e+00> : vector<8xf32>
      %205 = vector.multi_reduction <add>, %204, %cst_86 [1] : vector<8x32xf32> to vector<8xf32>
      %206 = vector.shape_cast %205 : vector<8xf32> to vector<8x1xf32>
      %cst_87 = arith.constant 3.200000e+01 : f32
      %207 = vector.broadcast %cst_87 : f32 to vector<8x1xf32>
      %208 = arith.divf %206, %207 : vector<8x1xf32>
      %209 = vector.broadcast %201 : vector<8x1xf32> to vector<8x32xf32>
      %210 = arith.subf %191, %209 : vector<8x32xf32>
      %cst_88 = arith.constant 9.99999996E-13 : f32
      %211 = vector.broadcast %cst_88 : f32 to vector<8x1xf32>
      %212 = arith.addf %208, %211 : vector<8x1xf32>
      %213 = math.rsqrt %212 : vector<8x1xf32>
      %214 = vector.broadcast %213 : vector<8x1xf32> to vector<8x32xf32>
      %215 = arith.mulf %210, %214 : vector<8x32xf32>
      %216 = vector.broadcast %196 : vector<1x32xf32> to vector<8x32xf32>
      %217 = arith.mulf %215, %216 : vector<8x32xf32>
      %218 = vector.broadcast %197 : vector<1x32xf32> to vector<8x32xf32>
      %219 = arith.addf %217, %218 : vector<8x32xf32>
      %c0_89 = arith.constant 0 : index
      %c0_90 = arith.constant 0 : index
      %c0_91 = arith.constant 0 : index
      %220 = vector.load %arg25[%c0_89, %c0_90, %c0_91] : memref<1x8x32xf32, #tpu.memory_space<vmem>>, vector<1x8x32xf32>
      %221 = vector.shape_cast %220 : vector<1x8x32xf32> to vector<8x32xf32>
      %222 = vector.shape_cast %219 : vector<8x32xf32> to vector<1x8x32xf32>
      tpu.vector_store %arg25[%c0_89, %c0_90, %c0_91], %222 {strides = array<i32>} : memref<1x8x32xf32, #tpu.memory_space<vmem>>, vector<1x8x32xf32>,
    } else {
    }
    return
  }
  func.func @transform_0(%arg0: i32, %arg1: i32) -> (i32, i32, i32) {
    %c0_i32 = arith.constant 0 : i32
    %c0_i32_0 = arith.constant 0 : i32
    %c0_i32_1 = arith.constant 0 : i32
    return %arg0, %c0_i32, %c0_i32_0 : i32, i32, i32
  }
  func.func @transform_1(%arg0: i32, %arg1: i32) -> (i32, i32, i32) {
    %c0_i32 = arith.constant 0 : i32
    %c0_i32_0 = arith.constant 0 : i32
    %c0_i32_1 = arith.constant 0 : i32
    return %arg0, %c0_i32, %c0_i32_0 : i32, i32, i32
  }
  func.func @transform_2(%arg0: i32, %arg1: i32) -> (i32, i32) {
    %c0_i32 = arith.constant 0 : i32
    %c0_i32_0 = arith.constant 0 : i32
    %c0_i32_1 = arith.constant 0 : i32
    return %c0_i32, %c0_i32_0 : i32, i32
  }
  func.func @transform_3(%arg0: i32, %arg1: i32) -> (i32, i32) {
    %c0_i32 = arith.constant 0 : i32
    %c0_i32_0 = arith.constant 0 : i32
    %c0_i32_1 = arith.constant 0 : i32
    return %c0_i32, %c0_i32_0 : i32, i32
  }
  func.func @transform_4(%arg0: i32, %arg1: i32) -> (i32, i32, i32) {
    %c0_i32 = arith.constant 0 : i32
    %c0_i32_0 = arith.constant 0 : i32
    %c0_i32_1 = arith.constant 0 : i32
    %c0_i32_2 = arith.constant 0 : i32
    return %c0_i32, %c0_i32_0, %c0_i32_1 : i32, i32, i32
  }
  func.func @transform_5(%arg0: i32, %arg1: i32) -> (i32, i32) {
    %c0_i32 = arith.constant 0 : i32
    %c0_i32_0 = arith.constant 0 : i32
    %c0_i32_1 = arith.constant 0 : i32
    return %c0_i32, %c0_i32_0 : i32, i32
  }
  func.func @transform_6(%arg0: i32, %arg1: i32) -> (i32, i32, i32) {
    %c0_i32 = arith.constant 0 : i32
    %c0_i32_0 = arith.constant 0 : i32
    %c0_i32_1 = arith.constant 0 : i32
    %c0_i32_2 = arith.constant 0 : i32
    return %c0_i32, %c0_i32_0, %c0_i32_1 : i32, i32, i32
  }
  func.func @transform_7(%arg0: i32, %arg1: i32) -> (i32, i32) {
    %c0_i32 = arith.constant 0 : i32
    %c0_i32_0 = arith.constant 0 : i32
    %c0_i32_1 = arith.constant 0 : i32
    return %c0_i32, %c0_i32_0 : i32, i32
  }
  func.func @transform_8(%arg0: i32, %arg1: i32) -> (i32, i32) {
    %c0_i32 = arith.constant 0 : i32
    %c0_i32_0 = arith.constant 0 : i32
    %c0_i32_1 = arith.constant 0 : i32
    return %c0_i32, %c0_i32_0 : i32, i32
  }
  func.func @transform_9(%arg0: i32, %arg1: i32) -> (i32, i32, i32) {
    %c0_i32 = arith.constant 0 : i32
    %c0_i32_0 = arith.constant 0 : i32
    %c0_i32_1 = arith.constant 0 : i32
    return %arg1, %c0_i32, %c0_i32_0 : i32, i32, i32
  }
  func.func @transform_10(%arg0: i32, %arg1: i32) -> (i32, i32, i32) {
    %c0_i32 = arith.constant 0 : i32
    %c0_i32_0 = arith.constant 0 : i32
    %c0_i32_1 = arith.constant 0 : i32
    return %arg1, %c0_i32, %c0_i32_0 : i32, i32, i32
  }
  func.func @transform_11(%arg0: i32, %arg1: i32) -> (i32, i32, i32) {
    %c0_i32 = arith.constant 0 : i32
    %c0_i32_0 = arith.constant 0 : i32
    %c0_i32_1 = arith.constant 0 : i32
    return %arg1, %c0_i32, %c0_i32_0 : i32, i32, i32
  }
  func.func @transform_12(%arg0: i32, %arg1: i32) -> (i32, i32, i32) {
    %c0_i32 = arith.constant 0 : i32
    %c0_i32_0 = arith.constant 0 : i32
    %c0_i32_1 = arith.constant 0 : i32
    return %arg1, %c0_i32, %c0_i32_0 : i32, i32, i32
  }
  func.func @transform_13(%arg0: i32, %arg1: i32) -> (i32, i32, i32) {
    %c0_i32 = arith.constant 0 : i32
    %c0_i32_0 = arith.constant 0 : i32
    %c0_i32_1 = arith.constant 0 : i32
    return %arg1, %c0_i32, %c0_i32_0 : i32, i32, i32
  }
  func.func @transform_14(%arg0: i32, %arg1: i32) -> (i32, i32, i32) {
    %c0_i32 = arith.constant 0 : i32
    %c0_i32_0 = arith.constant 0 : i32
    %c0_i32_1 = arith.constant 0 : i32
    return %arg1, %c0_i32, %c0_i32_0 : i32, i32, i32
  }
  func.func @transform_15(%arg0: i32, %arg1: i32) -> (i32, i32, i32) {
    %c0_i32 = arith.constant 0 : i32
    %c0_i32_0 = arith.constant 0 : i32
    %c0_i32_1 = arith.constant 0 : i32
    return %arg1, %c0_i32, %c0_i32_0 : i32, i32, i32
  }
  func.func @transform_16(%arg0: i32, %arg1: i32) -> (i32, i32, i32) {
    %c0_i32 = arith.constant 0 : i32
    %c0_i32_0 = arith.constant 0 : i32
    %c0_i32_1 = arith.constant 0 : i32
    return %arg1, %c0_i32, %c0_i32_0 : i32, i32, i32
  }
  func.func @transform_17(%arg0: i32, %arg1: i32) -> (i32, i32, i32) {
    %c0_i32 = arith.constant 0 : i32
    %c0_i32_0 = arith.constant 0 : i32
    %c0_i32_1 = arith.constant 0 : i32
    return %arg1, %c0_i32, %c0_i32_0 : i32, i32, i32
  }
  func.func @transform_18(%arg0: i32, %arg1: i32) -> (i32, i32, i32) {
    %c0_i32 = arith.constant 0 : i32
    %c0_i32_0 = arith.constant 0 : i32
    %c0_i32_1 = arith.constant 0 : i32
    return %arg1, %c0_i32, %c0_i32_0 : i32, i32, i32
  }
  func.func @transform_19(%arg0: i32, %arg1: i32) -> (i32, i32, i32) {
    %c0_i32 = arith.constant 0 : i32
    %c0_i32_0 = arith.constant 0 : i32
    %c0_i32_1 = arith.constant 0 : i32
    return %arg1, %c0_i32, %c0_i32_0 : i32, i32, i32
  }
  func.func @transform_20(%arg0: i32, %arg1: i32) -> (i32, i32, i32) {
    %c0_i32 = arith.constant 0 : i32
    %c0_i32_0 = arith.constant 0 : i32
    %c0_i32_1 = arith.constant 0 : i32
    return %arg1, %c0_i32, %c0_i32_0 : i32, i32, i32
  }
  func.func @transform_21(%arg0: i32, %arg1: i32) -> (i32, i32) {
    %c0_i32 = arith.constant 0 : i32
    %c0_i32_0 = arith.constant 0 : i32
    %c0_i32_1 = arith.constant 0 : i32
    return %c0_i32, %c0_i32_0 : i32, i32
  }
  func.func @transform_22(%arg0: i32, %arg1: i32) -> (i32, i32) {
    %c0_i32 = arith.constant 0 : i32
    %c0_i32_0 = arith.constant 0 : i32
    %c0_i32_1 = arith.constant 0 : i32
    return %c0_i32, %c0_i32_0 : i32, i32
  }
  func.func @transform_23(%arg0: i32, %arg1: i32) -> (i32, i32, i32) {
    %c0_i32 = arith.constant 0 : i32
    %c0_i32_0 = arith.constant 0 : i32
    %c0_i32_1 = arith.constant 0 : i32
    return %arg0, %c0_i32, %c0_i32_0 : i32, i32, i32
  }
}

</mosaic_0001>

<llo_original>
// kernel: _lambda_.1
$region0: #{_lambda_.1}
  #allocation0 [shape = 'u32[]', space=smem, size = 0x4, offset = 0x4, fixed_abs, tag = 'smem constant byte address 0x4 - core index']
  #allocation1 [shape = 'u32[72,128]{1,0:T(1,128)}', space=vmem, size = 0x9000, scoped, tag = 'internal scratch']
  #allocation2 [shape = 'f32[126,32]{1,0:T(8,128)}', space=vmem, size = 0x10000, scoped, tag = 'scratch operand']
  #allocation3 [shape = 'f32[8,32]{1,0:T(8,128)}', space=vmem, size = 0x1000, scoped, tag = 'scratch operand']
  %s0 = inlined_call_operand.vmem [shape: f32[2,126,9], index: 0, kind: input, shape index: {}]
  %s1 = inlined_call_operand.vmem [shape: f32[2,1,8], index: 1, kind: input, shape index: {}]
  %s2 = inlined_call_operand.vmem [shape: bf16[9,32], index: 2, kind: input, shape index: {}]
  %s3 = inlined_call_operand.vmem [shape: f32[1,32], index: 3, kind: input, shape index: {}, may-alias: {3,5,7,22}]
  %s4 = inlined_call_operand.vmem [shape: bf16[9,32,32], index: 4, kind: input, shape index: {}]
  %s5 = inlined_call_operand.vmem [shape: f32[1,32], index: 5, kind: input, shape index: {}, may-alias: {3,5,7,22}]
  %s6 = inlined_call_operand.vmem [shape: bf16[3,32,32], index: 6, kind: input, shape index: {}]
  %s7 = inlined_call_operand.vmem [shape: f32[1,32], index: 7, kind: input, shape index: {}, may-alias: {3,5,7,22}]
  %s8 = inlined_call_operand.vmem [shape: f32[8,32], index: 8, kind: input, shape index: {}]
  %s9 = inlined_call_operand.vmem [shape: f32[2,1,32], index: 9, kind: input, shape index: {}, may-alias: {9,15}]
  %s10 = inlined_call_operand.vmem [shape: f32[2,1,32], index: 10, kind: input, shape index: {}, may-alias: {10,14,16,20}]
  %s11 = inlined_call_operand.vmem [shape: bf16[2,32,96], index: 11, kind: input, shape index: {}]
  %s12 = inlined_call_operand.vmem [shape: f32[2,1,96], index: 12, kind: input, shape index: {}]
  %s13 = inlined_call_operand.vmem [shape: bf16[2,32,32], index: 13, kind: input, shape index: {}]
  %s14 = inlined_call_operand.vmem [shape: f32[2,1,32], index: 14, kind: input, shape index: {}, may-alias: {10,14,16,20}]
  %s15 = inlined_call_operand.vmem [shape: f32[2,1,32], index: 15, kind: input, shape index: {}, may-alias: {9,15}]
  %s16 = inlined_call_operand.vmem [shape: f32[2,1,32], index: 16, kind: input, shape index: {}, may-alias: {10,14,16,20}]
  %s17 = inlined_call_operand.vmem [shape: bf16[2,32,64], index: 17, kind: input, shape index: {}]
  %s18 = inlined_call_operand.vmem [shape: f32[2,1,64], index: 18, kind: input, shape index: {}]
  %s19 = inlined_call_operand.vmem [shape: bf16[2,64,32], index: 19, kind: input, shape index: {}]
  %s20 = inlined_call_operand.vmem [shape: f32[2,1,32], index: 20, kind: input, shape index: {}, may-alias: {10,14,16,20}]
  %s21 = inlined_call_operand.vmem [shape: f32[1,32], index: 21, kind: input, shape index: {}]
  %s22 = inlined_call_operand.vmem [shape: f32[1,32], index: 22, kind: input, shape index: {}, may-alias: {3,5,7,22}]
  %s23 = inlined_call_operand.hbm [shape: f32[2,8,32], index: 23, kind: output, shape index: {}]
  %s24 = sld [smem:[#allocation0]]
  $region133: #{_lambda_.1} parent=0
    _
  %s26 = ssub.s32 1, %s24
  %s27 = scalar_select 0, %s26, %s24
  $region1: #{_lambda_.1} parent=0
    #allocation4 [shape = 'u8[8192]{0}', space=vmem, size = 0x2000, scoped, tag = 'output window, operand 0']
    #allocation5 [shape = 's32[2]{0}', space=sflag, size = 0x8, scoped, tag = 'scoped memory for _lambda_.1']
    %28 = vsyncpa [#allocation5], 0
    %s29 = scalar_lea.sflag [#allocation5], 1
    %30 = vsyncpa %s29, 0
    loop: start=0, step=1, limit=6
    $region2: #{_lambda_.1} parent=1 // loop_pre_header
      _
    $region3: #{_lambda_.1} parent=1 // loop_header
      %s32 = sphi 0, %s36
      %p33 = scmp.ge.s32.totalorder %s32, 6
      %s39 = sphi 0, %s51
      %s40 = sphi 0, %s47
      %s41 = sphi 0, %s39
      %s42 = sphi 0, %s40
      %s43 = sphi 0, %s41
      %s44 = sphi 0, %s42
      %s54 = sphi 0, %s56
      %s57 = sphi 0, %s54
      %s58 = sphi 0, %s57
      %s74 = sphi 0, %s58
      %s80 = sphi 0, %s82
      %s83 = sphi 0, %s80
      %s84 = sphi 0, %s83
      %s100 = sphi 0, %s84
      %s104 = sphi 0, %s104
      %s106 = sphi 0, %s104
      %s107 = sphi 0, %s106
      %s121 = sphi 0, %s107
      %s125 = sphi 0, %s125
      %s127 = sphi 0, %s125
      %s128 = sphi 0, %s127
      %s142 = sphi 0, %s128
      %s146 = sphi 0, %s146
      %s148 = sphi 0, %s146
      %s149 = sphi 0, %s148
      %s163 = sphi 0, %s149
      %s167 = sphi 0, %s167
      %s169 = sphi 0, %s167
      %s170 = sphi 0, %s169
      %s184 = sphi 0, %s170
      %s188 = sphi 0, %s188
      %s190 = sphi 0, %s188
      %s191 = sphi 0, %s190
      %s205 = sphi 0, %s191
      %s209 = sphi 0, %s209
      %s211 = sphi 0, %s209
      %s212 = sphi 0, %s211
      %s226 = sphi 0, %s212
      %s230 = sphi 0, %s230
      %s232 = sphi 0, %s230
      %s233 = sphi 0, %s232
      %s247 = sphi 0, %s233
      %s253 = sphi 0, %s255
      %s256 = sphi 0, %s253
      %s257 = sphi 0, %s256
      %s273 = sphi 0, %s257
      %s279 = sphi 0, %s281
      %s282 = sphi 0, %s279
      %s283 = sphi 0, %s282
      %s299 = sphi 0, %s283
      %s305 = sphi 0, %s307
      %s308 = sphi 0, %s305
      %s309 = sphi 0, %s308
      %s325 = sphi 0, %s309
      %s331 = sphi 0, %s333
      %s334 = sphi 0, %s331
      %s335 = sphi 0, %s334
      %s351 = sphi 0, %s335
      %s357 = sphi 0, %s359
      %s360 = sphi 0, %s357
      %s361 = sphi 0, %s360
      %s377 = sphi 0, %s361
      %s383 = sphi 0, %s385
      %s386 = sphi 0, %s383
      %s387 = sphi 0, %s386
      %s403 = sphi 0, %s387
      %s409 = sphi 0, %s411
      %s412 = sphi 0, %s409
      %s413 = sphi 0, %s412
      %s429 = sphi 0, %s413
      %s435 = sphi 0, %s437
      %s438 = sphi 0, %s435
      %s439 = sphi 0, %s438
      %s455 = sphi 0, %s439
      %s461 = sphi 0, %s463
      %s464 = sphi 0, %s461
      %s465 = sphi 0, %s464
      %s481 = sphi 0, %s465
      %s487 = sphi 0, %s489
      %s490 = sphi 0, %s487
      %s491 = sphi 0, %s490
      %s507 = sphi 0, %s491
      %s513 = sphi 0, %s515
      %s516 = sphi 0, %s513
      %s517 = sphi 0, %s516
      %s533 = sphi 0, %s517
      %s539 = sphi 0, %s541
      %s542 = sphi 0, %s539
      %s543 = sphi 0, %s542
      %s559 = sphi 0, %s543
      %s563 = sphi 0, %s563
      %s565 = sphi 0, %s563
      %s566 = sphi 0, %s565
      %s580 = sphi 0, %s566
      %s584 = sphi 0, %s584
      %s586 = sphi 0, %s584
      %s587 = sphi 0, %s586
      %s601 = sphi 0, %s587
      %s607 = sphi 0, %s609
      %s610 = sphi 0, %s607
      %s611 = sphi 0, %s610
      %s627 = sphi 0, %s611
    $region4: #{_lambda_.1} parent=1 // loop_header_branch
      %35 = sbr.rel (%p33) target = $region8
    $region5: #{_lambda_.1} parent=1 // loop_body
      %s37 = ssub.s32 %s32, 1
      %s38 = ssub.s32 %s32, 2
      %s45 = sadd.s32 1, %s40
      %p46 = scmp.ge.s32.totalorder %s45, 2
      %s47 = scalar_select %p46, 0, %s45
      %s48 = sadd.s32 1, %s39
      %s49 = scalar_select %p46, %s48, %s39
      %p50 = scmp.ge.s32.totalorder %s49, 2
      %s51 = scalar_select %p50, 0, %s49
      %s52 = ssub.s32 %s39, %s51
      %p53 = scmp.eq.s32.totalorder %s52, 0
      %s55 = sadd.s32 %s54, 1
      %s56 = scalar_select %p53, %s54, %s55
      %p59 = pneg %p53
      %p60 = scmp.eq.s32.totalorder %s32, 3
      %p61 = por %p59, %p60
      %p62 = scmp.ne.s32.totalorder %s54, %s57
      %p63 = scmp.eq.s32.totalorder %s32, 0
      %p64 = por %p62, %p63
      %p65 = scmp.ne.s32.totalorder %s54, %s57
      %p66 = scmp.eq.s32.totalorder %s37, 3
      %p67 = por %p65, %p66
      %p68 = scmp.ne.s32.totalorder %s57, %s58
      %p69 = scmp.eq.s32.totalorder %s37, 0
      %p70 = por %p68, %p69
      %p71 = scmp.ne.s32.totalorder %s57, %s58
      %p72 = scmp.eq.s32.totalorder %s38, 3
      %p73 = por %p71, %p72
      %p75 = scmp.ne.s32.totalorder %s58, %s74
      %p76 = scmp.eq.s32.totalorder %s38, 0
      %p77 = por %p75, %p76
      %s78 = ssub.s32 %s39, %s51
      %p79 = scmp.eq.s32.totalorder %s78, 0
      %s81 = sadd.s32 %s80, 1
      %s82 = scalar_select %p79, %s80, %s81
      %p85 = pneg %p79
      %p86 = scmp.eq.s32.totalorder %s32, 3
      %p87 = por %p85, %p86
      %p88 = scmp.ne.s32.totalorder %s80, %s83
      %p89 = scmp.eq.s32.totalorder %s32, 0
      %p90 = por %p88, %p89
      %p91 = scmp.ne.s32.totalorder %s80, %s83
      %p92 = scmp.eq.s32.totalorder %s37, 3
      %p93 = por %p91, %p92
      %p94 = scmp.ne.s32.totalorder %s83, %s84
      %p95 = scmp.eq.s32.totalorder %s37, 0
      %p96 = por %p94, %p95
      %p97 = scmp.ne.s32.totalorder %s83, %s84
      %p98 = scmp.eq.s32.totalorder %s38, 3
      %p99 = por %p97, %p98
      %p101 = scmp.ne.s32.totalorder %s84, %s100
      %p102 = scmp.eq.s32.totalorder %s38, 0
      %p103 = por %p101, %p102
      %s105 = sadd.s32 %s104, 1
      %p108 = scmp.eq.s32.totalorder %s32, 3
      %p109 = scmp.ne.s32.totalorder %s104, %s106
      %p110 = scmp.eq.s32.totalorder %s32, 0
      %p111 = por %p109, %p110
      %p112 = scmp.ne.s32.totalorder %s104, %s106
      %p113 = scmp.eq.s32.totalorder %s37, 3
      %p114 = por %p112, %p113
      %p115 = scmp.ne.s32.totalorder %s106, %s107
      %p116 = scmp.eq.s32.totalorder %s37, 0
      %p117 = por %p115, %p116
      %p118 = scmp.ne.s32.totalorder %s106, %s107
      %p119 = scmp.eq.s32.totalorder %s38, 3
      %p120 = por %p118, %p119
      %p122 = scmp.ne.s32.totalorder %s107, %s121
      %p123 = scmp.eq.s32.totalorder %s38, 0
      %p124 = por %p122, %p123
      %s126 = sadd.s32 %s125, 1
      %p129 = scmp.eq.s32.totalorder %s32, 3
      %p130 = scmp.ne.s32.totalorder %s125, %s127
      %p131 = scmp.eq.s32.totalorder %s32, 0
      %p132 = por %p130, %p131
      %p133 = scmp.ne.s32.totalorder %s125, %s127
      %p134 = scmp.eq.s32.totalorder %s37, 3
      %p135 = por %p133, %p134
      %p136 = scmp.ne.s32.totalorder %s127, %s128
      %p137 = scmp.eq.s32.totalorder %s37, 0
      %p138 = por %p136, %p137
      %p139 = scmp.ne.s32.totalorder %s127, %s128
      %p140 = scmp.eq.s32.totalorder %s38, 3
      %p141 = por %p139, %p140
      %p143 = scmp.ne.s32.totalorder %s128, %s142
      %p144 = scmp.eq.s32.totalorder %s38, 0
      %p145 = por %p143, %p144
      %s147 = sadd.s32 %s146, 1
      %p150 = scmp.eq.s32.totalorder %s32, 3
      %p151 = scmp.ne.s32.totalorder %s146, %s148
      %p152 = scmp.eq.s32.totalorder %s32, 0
      %p153 = por %p151, %p152
      %p154 = scmp.ne.s32.totalorder %s146, %s148
      %p155 = scmp.eq.s32.totalorder %s37, 3
      %p156 = por %p154, %p155
      %p157 = scmp.ne.s32.totalorder %s148, %s149
      %p158 = scmp.eq.s32.totalorder %s37, 0
      %p159 = por %p157, %p158
      %p160 = scmp.ne.s32.totalorder %s148, %s149
      %p161 = scmp.eq.s32.totalorder %s38, 3
      %p162 = por %p160, %p161
      %p164 = scmp.ne.s32.totalorder %s149, %s163
      %p165 = scmp.eq.s32.totalorder %s38, 0
      %p166 = por %p164, %p165
      %s168 = sadd.s32 %s167, 1
      %p171 = scmp.eq.s32.totalorder %s32, 3
      %p172 = scmp.ne.s32.totalorder %s167, %s169
      %p173 = scmp.eq.s32.totalorder %s32, 0
      %p174 = por %p172, %p173
      %p175 = scmp.ne.s32.totalorder %s167, %s169
      %p176 = scmp.eq.s32.totalorder %s37, 3
      %p177 = por %p175, %p176
      %p178 = scmp.ne.s32.totalorder %s169, %s170
      %p179 = scmp.eq.s32.totalorder %s37, 0
      %p180 = por %p178, %p179
      %p181 = scmp.ne.s32.totalorder %s169, %s170
      %p182 = scmp.eq.s32.totalorder %s38, 3
      %p183 = por %p181, %p182
      %p185 = scmp.ne.s32.totalorder %s170, %s184
      %p186 = scmp.eq.s32.totalorder %s38, 0
      %p187 = por %p185, %p186
      %s189 = sadd.s32 %s188, 1
      %p192 = scmp.eq.s32.totalorder %s32, 3
      %p193 = scmp.ne.s32.totalorder %s188, %s190
      %p194 = scmp.eq.s32.totalorder %s32, 0
      %p195 = por %p193, %p194
      %p196 = scmp.ne.s32.totalorder %s188, %s190
      %p197 = scmp.eq.s32.totalorder %s37, 3
      %p198 = por %p196, %p197
      %p199 = scmp.ne.s32.totalorder %s190, %s191
      %p200 = scmp.eq.s32.totalorder %s37, 0
      %p201 = por %p199, %p200
      %p202 = scmp.ne.s32.totalorder %s190, %s191
      %p203 = scmp.eq.s32.totalorder %s38, 3
      %p204 = por %p202, %p203
      %p206 = scmp.ne.s32.totalorder %s191, %s205
      %p207 = scmp.eq.s32.totalorder %s38, 0
      %p208 = por %p206, %p207
      %s210 = sadd.s32 %s209, 1
      %p213 = scmp.eq.s32.totalorder %s32, 3
      %p214 = scmp.ne.s32.totalorder %s209, %s211
      %p215 = scmp.eq.s32.totalorder %s32, 0
      %p216 = por %p214, %p215
      %p217 = scmp.ne.s32.totalorder %s209, %s211
      %p218 = scmp.eq.s32.totalorder %s37, 3
      %p219 = por %p217, %p218
      %p220 = scmp.ne.s32.totalorder %s211, %s212
      %p221 = scmp.eq.s32.totalorder %s37, 0
      %p222 = por %p220, %p221
      %p223 = scmp.ne.s32.totalorder %s211, %s212
      %p224 = scmp.eq.s32.totalorder %s38, 3
      %p225 = por %p223, %p224
      %p227 = scmp.ne.s32.totalorder %s212, %s226
      %p228 = scmp.eq.s32.totalorder %s38, 0
      %p229 = por %p227, %p228
      %s231 = sadd.s32 %s230, 1
      %p234 = scmp.eq.s32.totalorder %s32, 3
      %p235 = scmp.ne.s32.totalorder %s230, %s232
      %p236 = scmp.eq.s32.totalorder %s32, 0
      %p237 = por %p235, %p236
      %p238 = scmp.ne.s32.totalorder %s230, %s232
      %p239 = scmp.eq.s32.totalorder %s37, 3
      %p240 = por %p238, %p239
      %p241 = scmp.ne.s32.totalorder %s232, %s233
      %p242 = scmp.eq.s32.totalorder %s37, 0
      %p243 = por %p241, %p242
      %p244 = scmp.ne.s32.totalorder %s232, %s233
      %p245 = scmp.eq.s32.totalorder %s38, 3
      %p246 = por %p244, %p245
      %p248 = scmp.ne.s32.totalorder %s233, %s247
      %p249 = scmp.eq.s32.totalorder %s38, 0
      %p250 = por %p248, %p249
      %s251 = ssub.s32 %s40, %s47
      %p252 = scmp.eq.s32.totalorder %s251, 0
      %s254 = sadd.s32 %s253, 1
      %s255 = scalar_select %p252, %s253, %s254
      %p258 = pneg %p252
      %p259 = scmp.eq.s32.totalorder %s32, 3
      %p260 = por %p258, %p259
      %p261 = scmp.ne.s32.totalorder %s253, %s256
      %p262 = scmp.eq.s32.totalorder %s32, 0
      %p263 = por %p261, %p262
      %p264 = scmp.ne.s32.totalorder %s253, %s256
      %p265 = scmp.eq.s32.totalorder %s37, 3
      %p266 = por %p264, %p265
      %p267 = scmp.ne.s32.totalorder %s256, %s257
      %p268 = scmp.eq.s32.totalorder %s37, 0
      %p269 = por %p267, %p268
      %p270 = scmp.ne.s32.totalorder %s256, %s257
      %p271 = scmp.eq.s32.totalorder %s38, 3
      %p272 = por %p270, %p271
      %p274 = scmp.ne.s32.totalorder %s257, %s273
      %p275 = scmp.eq.s32.totalorder %s38, 0
      %p276 = por %p274, %p275
      %s277 = ssub.s32 %s40, %s47
      %p278 = scmp.eq.s32.totalorder %s277, 0
      %s280 = sadd.s32 %s279, 1
      %s281 = scalar_select %p278, %s279, %s280
      %p284 = pneg %p278
      %p285 = scmp.eq.s32.totalorder %s32, 3
      %p286 = por %p284, %p285
      %p287 = scmp.ne.s32.totalorder %s279, %s282
      %p288 = scmp.eq.s32.totalorder %s32, 0
      %p289 = por %p287, %p288
      %p290 = scmp.ne.s32.totalorder %s279, %s282
      %p291 = scmp.eq.s32.totalorder %s37, 3
      %p292 = por %p290, %p291
      %p293 = scmp.ne.s32.totalorder %s282, %s283
      %p294 = scmp.eq.s32.totalorder %s37, 0
      %p295 = por %p293, %p294
      %p296 = scmp.ne.s32.totalorder %s282, %s283
      %p297 = scmp.eq.s32.totalorder %s38, 3
      %p298 = por %p296, %p297
      %p300 = scmp.ne.s32.totalorder %s283, %s299
      %p301 = scmp.eq.s32.totalorder %s38, 0
      %p302 = por %p300, %p301
      %s303 = ssub.s32 %s40, %s47
      %p304 = scmp.eq.s32.totalorder %s303, 0
      %s306 = sadd.s32 %s305, 1
      %s307 = scalar_select %p304, %s305, %s306
      %p310 = pneg %p304
      %p311 = scmp.eq.s32.totalorder %s32, 3
      %p312 = por %p310, %p311
      %p313 = scmp.ne.s32.totalorder %s305, %s308
      %p314 = scmp.eq.s32.totalorder %s32, 0
      %p315 = por %p313, %p314
      %p316 = scmp.ne.s32.totalorder %s305, %s308
      %p317 = scmp.eq.s32.totalorder %s37, 3
      %p318 = por %p316, %p317
      %p319 = scmp.ne.s32.totalorder %s308, %s309
      %p320 = scmp.eq.s32.totalorder %s37, 0
      %p321 = por %p319, %p320
      %p322 = scmp.ne.s32.totalorder %s308, %s309
      %p323 = scmp.eq.s32.totalorder %s38, 3
      %p324 = por %p322, %p323
      %p326 = scmp.ne.s32.totalorder %s309, %s325
      %p327 = scmp.eq.s32.totalorder %s38, 0
      %p328 = por %p326, %p327
      %s329 = ssub.s32 %s40, %s47
      %p330 = scmp.eq.s32.totalorder %s329, 0
      %s332 = sadd.s32 %s331, 1
      %s333 = scalar_select %p330, %s331, %s332
      %p336 = pneg %p330
      %p337 = scmp.eq.s32.totalorder %s32, 3
      %p338 = por %p336, %p337
      %p339 = scmp.ne.s32.totalorder %s331, %s334
      %p340 = scmp.eq.s32.totalorder %s32, 0
      %p341 = por %p339, %p340
      %p342 = scmp.ne.s32.totalorder %s331, %s334
      %p343 = scmp.eq.s32.totalorder %s37, 3
      %p344 = por %p342, %p343
      %p345 = scmp.ne.s32.totalorder %s334, %s335
      %p346 = scmp.eq.s32.totalorder %s37, 0
      %p347 = por %p345, %p346
      %p348 = scmp.ne.s32.totalorder %s334, %s335
      %p349 = scmp.eq.s32.totalorder %s38, 3
      %p350 = por %p348, %p349
      %p352 = scmp.ne.s32.totalorder %s335, %s351
      %p353 = scmp.eq.s32.totalorder %s38, 0
      %p354 = por %p352, %p353
      %s355 = ssub.s32 %s40, %s47
      %p356 = scmp.eq.s32.totalorder %s355, 0
      %s358 = sadd.s32 %s357, 1
      %s359 = scalar_select %p356, %s357, %s358
      %p362 = pneg %p356
      %p363 = scmp.eq.s32.totalorder %s32, 3
      %p364 = por %p362, %p363
      %p365 = scmp.ne.s32.totalorder %s357, %s360
      %p366 = scmp.eq.s32.totalorder %s32, 0
      %p367 = por %p365, %p366
      %p368 = scmp.ne.s32.totalorder %s357, %s360
      %p369 = scmp.eq.s32.totalorder %s37, 3
      %p370 = por %p368, %p369
      %p371 = scmp.ne.s32.totalorder %s360, %s361
      %p372 = scmp.eq.s32.totalorder %s37, 0
      %p373 = por %p371, %p372
      %p374 = scmp.ne.s32.totalorder %s360, %s361
      %p375 = scmp.eq.s32.totalorder %s38, 3
      %p376 = por %p374, %p375
      %p378 = scmp.ne.s32.totalorder %s361, %s377
      %p379 = scmp.eq.s32.totalorder %s38, 0
      %p380 = por %p378, %p379
      %s381 = ssub.s32 %s40, %s47
      %p382 = scmp.eq.s32.totalorder %s381, 0
      %s384 = sadd.s32 %s383, 1
      %s385 = scalar_select %p382, %s383, %s384
      %p388 = pneg %p382
      %p389 = scmp.eq.s32.totalorder %s32, 3
      %p390 = por %p388, %p389
      %p391 = scmp.ne.s32.totalorder %s383, %s386
      %p392 = scmp.eq.s32.totalorder %s32, 0
      %p393 = por %p391, %p392
      %p394 = scmp.ne.s32.totalorder %s383, %s386
      %p395 = scmp.eq.s32.totalorder %s37, 3
      %p396 = por %p394, %p395
      %p397 = scmp.ne.s32.totalorder %s386, %s387
      %p398 = scmp.eq.s32.totalorder %s37, 0
      %p399 = por %p397, %p398
      %p400 = scmp.ne.s32.totalorder %s386, %s387
      %p401 = scmp.eq.s32.totalorder %s38, 3
      %p402 = por %p400, %p401
      %p404 = scmp.ne.s32.totalorder %s387, %s403
      %p405 = scmp.eq.s32.totalorder %s38, 0
      %p406 = por %p404, %p405
      %s407 = ssub.s32 %s40, %s47
      %p408 = scmp.eq.s32.totalorder %s407, 0
      %s410 = sadd.s32 %s409, 1
      %s411 = scalar_select %p408, %s409, %s410
      %p414 = pneg %p408
      %p415 = scmp.eq.s32.totalorder %s32, 3
      %p416 = por %p414, %p415
      %p417 = scmp.ne.s32.totalorder %s409, %s412
      %p418 = scmp.eq.s32.totalorder %s32, 0
      %p419 = por %p417, %p418
      %p420 = scmp.ne.s32.totalorder %s409, %s412
      %p421 = scmp.eq.s32.totalorder %s37, 3
      %p422 = por %p420, %p421
      %p423 = scmp.ne.s32.totalorder %s412, %s413
      %p424 = scmp.eq.s32.totalorder %s37, 0
      %p425 = por %p423, %p424
      %p426 = scmp.ne.s32.totalorder %s412, %s413
      %p427 = scmp.eq.s32.totalorder %s38, 3
      %p428 = por %p426, %p427
      %p430 = scmp.ne.s32.totalorder %s413, %s429
      %p431 = scmp.eq.s32.totalorder %s38, 0
      %p432 = por %p430, %p431
      %s433 = ssub.s32 %s40, %s47
      %p434 = scmp.eq.s32.totalorder %s433, 0
      %s436 = sadd.s32 %s435, 1
      %s437 = scalar_select %p434, %s435, %s436
      %p440 = pneg %p434
      %p441 = scmp.eq.s32.totalorder %s32, 3
      %p442 = por %p440, %p441
      %p443 = scmp.ne.s32.totalorder %s435, %s438
      %p444 = scmp.eq.s32.totalorder %s32, 0
      %p445 = por %p443, %p444
      %p446 = scmp.ne.s32.totalorder %s435, %s438
      %p447 = scmp.eq.s32.totalorder %s37, 3
      %p448 = por %p446, %p447
      %p449 = scmp.ne.s32.totalorder %s438, %s439
      %p450 = scmp.eq.s32.totalorder %s37, 0
      %p451 = por %p449, %p450
      %p452 = scmp.ne.s32.totalorder %s438, %s439
      %p453 = scmp.eq.s32.totalorder %s38, 3
      %p454 = por %p452, %p453
      %p456 = scmp.ne.s32.totalorder %s439, %s455
      %p457 = scmp.eq.s32.totalorder %s38, 0
      %p458 = por %p456, %p457
      %s459 = ssub.s32 %s40, %s47
      %p460 = scmp.eq.s32.totalorder %s459, 0
      %s462 = sadd.s32 %s461, 1
      %s463 = scalar_select %p460, %s461, %s462
      %p466 = pneg %p460
      %p467 = scmp.eq.s32.totalorder %s32, 3
      %p468 = por %p466, %p467
      %p469 = scmp.ne.s32.totalorder %s461, %s464
      %p470 = scmp.eq.s32.totalorder %s32, 0
      %p471 = por %p469, %p470
      %p472 = scmp.ne.s32.totalorder %s461, %s464
      %p473 = scmp.eq.s32.totalorder %s37, 3
      %p474 = por %p472, %p473
      %p475 = scmp.ne.s32.totalorder %s464, %s465
      %p476 = scmp.eq.s32.totalorder %s37, 0
      %p477 = por %p475, %p476
      %p478 = scmp.ne.s32.totalorder %s464, %s465
      %p479 = scmp.eq.s32.totalorder %s38, 3
      %p480 = por %p478, %p479
      %p482 = scmp.ne.s32.totalorder %s465, %s481
      %p483 = scmp.eq.s32.totalorder %s38, 0
      %p484 = por %p482, %p483
      %s485 = ssub.s32 %s40, %s47
      %p486 = scmp.eq.s32.totalorder %s485, 0
      %s488 = sadd.s32 %s487, 1
      %s489 = scalar_select %p486, %s487, %s488
      %p492 = pneg %p486
      %p493 = scmp.eq.s32.totalorder %s32, 3
      %p494 = por %p492, %p493
      %p495 = scmp.ne.s32.totalorder %s487, %s490
      %p496 = scmp.eq.s32.totalorder %s32, 0
      %p497 = por %p495, %p496
      %p498 = scmp.ne.s32.totalorder %s487, %s490
      %p499 = scmp.eq.s32.totalorder %s37, 3
      %p500 = por %p498, %p499
      %p501 = scmp.ne.s32.totalorder %s490, %s491
      %p502 = scmp.eq.s32.totalorder %s37, 0
      %p503 = por %p501, %p502
      %p504 = scmp.ne.s32.totalorder %s490, %s491
      %p505 = scmp.eq.s32.totalorder %s38, 3
      %p506 = por %p504, %p505
      %p508 = scmp.ne.s32.totalorder %s491, %s507
      %p509 = scmp.eq.s32.totalorder %s38, 0
      %p510 = por %p508, %p509
      %s511 = ssub.s32 %s40, %s47
      %p512 = scmp.eq.s32.totalorder %s511, 0
      %s514 = sadd.s32 %s513, 1
      %s515 = scalar_select %p512, %s513, %s514
      %p518 = pneg %p512
      %p519 = scmp.eq.s32.totalorder %s32, 3
      %p520 = por %p518, %p519
      %p521 = scmp.ne.s32.totalorder %s513, %s516
      %p522 = scmp.eq.s32.totalorder %s32, 0
      %p523 = por %p521, %p522
      %p524 = scmp.ne.s32.totalorder %s513, %s516
      %p525 = scmp.eq.s32.totalorder %s37, 3
      %p526 = por %p524, %p525
      %p527 = scmp.ne.s32.totalorder %s516, %s517
      %p528 = scmp.eq.s32.totalorder %s37, 0
      %p529 = por %p527, %p528
      %p530 = scmp.ne.s32.totalorder %s516, %s517
      %p531 = scmp.eq.s32.totalorder %s38, 3
      %p532 = por %p530, %p531
      %p534 = scmp.ne.s32.totalorder %s517, %s533
      %p535 = scmp.eq.s32.totalorder %s38, 0
      %p536 = por %p534, %p535
      %s537 = ssub.s32 %s40, %s47
      %p538 = scmp.eq.s32.totalorder %s537, 0
      %s540 = sadd.s32 %s539, 1
      %s541 = scalar_select %p538, %s539, %s540
      %p544 = pneg %p538
      %p545 = scmp.eq.s32.totalorder %s32, 3
      %p546 = por %p544, %p545
      %p547 = scmp.ne.s32.totalorder %s539, %s542
      %p548 = scmp.eq.s32.totalorder %s32, 0
      %p549 = por %p547, %p548
      %p550 = scmp.ne.s32.totalorder %s539, %s542
      %p551 = scmp.eq.s32.totalorder %s37, 3
      %p552 = por %p550, %p551
      %p553 = scmp.ne.s32.totalorder %s542, %s543
      %p554 = scmp.eq.s32.totalorder %s37, 0
      %p555 = por %p553, %p554
      %p556 = scmp.ne.s32.totalorder %s542, %s543
      %p557 = scmp.eq.s32.totalorder %s38, 3
      %p558 = por %p556, %p557
      %p560 = scmp.ne.s32.totalorder %s543, %s559
      %p561 = scmp.eq.s32.totalorder %s38, 0
      %p562 = por %p560, %p561
      %s564 = sadd.s32 %s563, 1
      %p567 = scmp.eq.s32.totalorder %s32, 3
      %p568 = scmp.ne.s32.totalorder %s563, %s565
      %p569 = scmp.eq.s32.totalorder %s32, 0
      %p570 = por %p568, %p569
      %p571 = scmp.ne.s32.totalorder %s563, %s565
      %p572 = scmp.eq.s32.totalorder %s37, 3
      %p573 = por %p571, %p572
      %p574 = scmp.ne.s32.totalorder %s565, %s566
      %p575 = scmp.eq.s32.totalorder %s37, 0
      %p576 = por %p574, %p575
      %p577 = scmp.ne.s32.totalorder %s565, %s566
      %p578 = scmp.eq.s32.totalorder %s38, 3
      %p579 = por %p577, %p578
      %p581 = scmp.ne.s32.totalorder %s566, %s580
      %p582 = scmp.eq.s32.totalorder %s38, 0
      %p583 = por %p581, %p582
      %s585 = sadd.s32 %s584, 1
      %p588 = scmp.eq.s32.totalorder %s32, 3
      %p589 = scmp.ne.s32.totalorder %s584, %s586
      %p590 = scmp.eq.s32.totalorder %s32, 0
      %p591 = por %p589, %p590
      %p592 = scmp.ne.s32.totalorder %s584, %s586
      %p593 = scmp.eq.s32.totalorder %s37, 3
      %p594 = por %p592, %p593
      %p595 = scmp.ne.s32.totalorder %s586, %s587
      %p596 = scmp.eq.s32.totalorder %s37, 0
      %p597 = por %p595, %p596
      %p598 = scmp.ne.s32.totalorder %s586, %s587
      %p599 = scmp.eq.s32.totalorder %s38, 3
      %p600 = por %p598, %p599
      %p602 = scmp.ne.s32.totalorder %s587, %s601
      %p603 = scmp.eq.s32.totalorder %s38, 0
      %p604 = por %p602, %p603
      %s605 = ssub.s32 %s39, %s51
      %p606 = scmp.eq.s32.totalorder %s605, 0
      %s608 = sadd.s32 %s607, 1
      %s609 = scalar_select %p606, %s607, %s608
      %p612 = pneg %p606
      %p613 = scmp.eq.s32.totalorder %s32, 3
      %p614 = por %p612, %p613
      %p615 = scmp.ne.s32.totalorder %s607, %s610
      %p616 = scmp.eq.s32.totalorder %s32, 0
      %p617 = por %p615, %p616
      %p618 = scmp.ne.s32.totalorder %s607, %s610
      %p619 = scmp.eq.s32.totalorder %s37, 3
      %p620 = por %p618, %p619
      %p621 = scmp.ne.s32.totalorder %s610, %s611
      %p622 = scmp.eq.s32.totalorder %s37, 0
      %p623 = por %p621, %p622
      %p624 = scmp.ne.s32.totalorder %s610, %s611
      %p625 = scmp.eq.s32.totalorder %s38, 3
      %p626 = por %p624, %p625
      %p628 = scmp.ne.s32.totalorder %s611, %s627
      %p629 = scmp.eq.s32.totalorder %s38, 0
      %p630 = por %p628, %p629
      %p631 = scmp.le.s32.totalorder 1, %s32
      %p632 = scmp.lt.s32.totalorder %s32, 5
      %p633 = pnand %p631, %p632
      %p634 = pneg %p633
      // Predicated region
      $region9: #{_lambda_.1} parent=5 // pred_check
        _
      $region10: #{_lambda_.1} parent=5 // pred_check_branch
        %636 = sbr.rel (%p633) target = $region12
      $region11: #{_lambda_.1} parent=5 // pred_region
        %s637 = ssub.s32 %s32, 1
        // Predicated region
        $region13: #{_lambda_.1} parent=11 // pred_check
          %p638 = pneg %p117
        $region14: #{_lambda_.1} parent=11 // pred_check_branch
          %640 = sbr.rel (%p638) target = $region16
        $region15: #{_lambda_.1} parent=11 // pred_region
          _
        $region16: #{_lambda_.1} parent=11 // pred_fallthru
          _
        // Predicated region
        $region17: #{_lambda_.1} parent=11 // pred_check
          %p641 = pneg %p138
        $region18: #{_lambda_.1} parent=11 // pred_check_branch
          %643 = sbr.rel (%p641) target = $region20
        $region19: #{_lambda_.1} parent=11 // pred_region
          _
        $region20: #{_lambda_.1} parent=11 // pred_fallthru
          _
        // Predicated region
        $region21: #{_lambda_.1} parent=11 // pred_check
          %p644 = pneg %p159
        $region22: #{_lambda_.1} parent=11 // pred_check_branch
          %646 = sbr.rel (%p644) target = $region24
        $region23: #{_lambda_.1} parent=11 // pred_region
          _
        $region24: #{_lambda_.1} parent=11 // pred_fallthru
          _
        // Predicated region
        $region25: #{_lambda_.1} parent=11 // pred_check
          %p647 = pneg %p180
        $region26: #{_lambda_.1} parent=11 // pred_check_branch
          %649 = sbr.rel (%p647) target = $region28
        $region27: #{_lambda_.1} parent=11 // pred_region
          _
        $region28: #{_lambda_.1} parent=11 // pred_fallthru
          _
        // Predicated region
        $region29: #{_lambda_.1} parent=11 // pred_check
          %p650 = pneg %p201
        $region30: #{_lambda_.1} parent=11 // pred_check_branch
          %652 = sbr.rel (%p650) target = $region32
        $region31: #{_lambda_.1} parent=11 // pred_region
          _
        $region32: #{_lambda_.1} parent=11 // pred_fallthru
          _
        // Predicated region
        $region33: #{_lambda_.1} parent=11 // pred_check
          %p653 = pneg %p222
        $region34: #{_lambda_.1} parent=11 // pred_check_branch
          %655 = sbr.rel (%p653) target = $region36
        $region35: #{_lambda_.1} parent=11 // pred_region
          _
        $region36: #{_lambda_.1} parent=11 // pred_fallthru
          _
        // Predicated region
        $region37: #{_lambda_.1} parent=11 // pred_check
          %p656 = pneg %p243
        $region38: #{_lambda_.1} parent=11 // pred_check_branch
          %658 = sbr.rel (%p656) target = $region40
        $region39: #{_lambda_.1} parent=11 // pred_region
          _
        $region40: #{_lambda_.1} parent=11 // pred_fallthru
          _
        // Predicated region
        $region41: #{_lambda_.1} parent=11 // pred_check
          %p659 = pneg %p576
        $region42: #{_lambda_.1} parent=11 // pred_check_branch
          %661 = sbr.rel (%p659) target = $region44
        $region43: #{_lambda_.1} parent=11 // pred_region
          _
        $region44: #{_lambda_.1} parent=11 // pred_fallthru
          _
        // Predicated region
        $region45: #{_lambda_.1} parent=11 // pred_check
          %p662 = pneg %p597
        $region46: #{_lambda_.1} parent=11 // pred_check_branch
          %664 = sbr.rel (%p662) target = $region48
        $region47: #{_lambda_.1} parent=11 // pred_region
          _
        $region48: #{_lambda_.1} parent=11 // pred_fallthru
          _
      $region12: #{_lambda_.1} parent=5 // pred_fallthru
        _
      %p665 = scmp.lt.s32.totalorder %s32, 4
      // Predicated region
      $region49: #{_lambda_.1} parent=5 // pred_check
        %p666 = pneg %p665
      $region50: #{_lambda_.1} parent=5 // pred_check_branch
        %668 = sbr.rel (%p666) target = $region52
      $region51: #{_lambda_.1} parent=5 // pred_region
        // Predicated region
        $region53: #{_lambda_.1} parent=51 // pred_check
          %p669 = pneg %p64
        $region54: #{_lambda_.1} parent=51 // pred_check_branch
          %671 = sbr.rel (%p669) target = $region56
        $region55: #{_lambda_.1} parent=51 // pred_region
          %p672 = scmp.lt.s32.totalorder %s39, 1
          %s673 = scalar_select %p672, %s39, 1
          %s674 = smul.addr %s673, 16
          %s675 = smul.addr %s674, 8
          %s676 = scalar_lea.vmem %s0, %s675
        $region56: #{_lambda_.1} parent=51 // pred_fallthru
          _
        // Predicated region
        $region57: #{_lambda_.1} parent=51 // pred_check
          %p677 = pneg %p90
        $region58: #{_lambda_.1} parent=51 // pred_check_branch
          %679 = sbr.rel (%p677) target = $region60
        $region59: #{_lambda_.1} parent=51 // pred_region
          %p680 = scmp.lt.s32.totalorder %s39, 1
          %s681 = scalar_select %p680, %s39, 1
          %s682 = scalar_lea.vmem %s1, %s681
        $region60: #{_lambda_.1} parent=51 // pred_fallthru
          _
        // Predicated region
        $region61: #{_lambda_.1} parent=51 // pred_check
          %p683 = pneg %p263
        $region62: #{_lambda_.1} parent=51 // pred_check_branch
          %685 = sbr.rel (%p683) target = $region64
        $region63: #{_lambda_.1} parent=51 // pred_region
          %p686 = scmp.lt.s32.totalorder %s40, 1
          %s687 = scalar_select %p686, %s40, 1
          %s688 = scalar_lea.vmem %s9, %s687
        $region64: #{_lambda_.1} parent=51 // pred_fallthru
          _
        // Predicated region
        $region65: #{_lambda_.1} parent=51 // pred_check
          %p689 = pneg %p289
        $region66: #{_lambda_.1} parent=51 // pred_check_branch
          %691 = sbr.rel (%p689) target = $region68
        $region67: #{_lambda_.1} parent=51 // pred_region
          %p692 = scmp.lt.s32.totalorder %s40, 1
          %s693 = scalar_select %p692, %s40, 1
          %s694 = scalar_lea.vmem %s10, %s693
        $region68: #{_lambda_.1} parent=51 // pred_fallthru
          _
        // Predicated region
        $region69: #{_lambda_.1} parent=51 // pred_check
          %p695 = pneg %p315
        $region70: #{_lambda_.1} parent=51 // pred_check_branch
          %697 = sbr.rel (%p695) target = $region72
        $region71: #{_lambda_.1} parent=51 // pred_region
          %p698 = scmp.lt.s32.totalorder %s40, 1
          %s699 = scalar_select %p698, %s40, 1
          %s700 = smul.addr %s699, 4
          %s701 = smul.addr %s700, 4
          %s702 = scalar_lea.vmem %s11, %s701
        $region72: #{_lambda_.1} parent=51 // pred_fallthru
          _
        // Predicated region
        $region73: #{_lambda_.1} parent=51 // pred_check
          %p703 = pneg %p341
        $region74: #{_lambda_.1} parent=51 // pred_check_branch
          %705 = sbr.rel (%p703) target = $region76
        $region75: #{_lambda_.1} parent=51 // pred_region
          %p706 = scmp.lt.s32.totalorder %s40, 1
          %s707 = scalar_select %p706, %s40, 1
          %s708 = scalar_lea.vmem %s12, %s707
        $region76: #{_lambda_.1} parent=51 // pred_fallthru
          _
        // Predicated region
        $region77: #{_lambda_.1} parent=51 // pred_check
          %p709 = pneg %p367
        $region78: #{_lambda_.1} parent=51 // pred_check_branch
          %711 = sbr.rel (%p709) target = $region80
        $region79: #{_lambda_.1} parent=51 // pred_region
          %p712 = scmp.lt.s32.totalorder %s40, 1
          %s713 = scalar_select %p712, %s40, 1
          %s714 = smul.addr %s713, 4
          %s715 = smul.addr %s714, 4
          %s716 = scalar_lea.vmem %s13, %s715
        $region80: #{_lambda_.1} parent=51 // pred_fallthru
          _
        // Predicated region
        $region81: #{_lambda_.1} parent=51 // pred_check
          %p717 = pneg %p393
        $region82: #{_lambda_.1} parent=51 // pred_check_branch
          %719 = sbr.rel (%p717) target = $region84
        $region83: #{_lambda_.1} parent=51 // pred_region
          %p720 = scmp.lt.s32.totalorder %s40, 1
          %s721 = scalar_select %p720, %s40, 1
          %s722 = scalar_lea.vmem %s14, %s721
        $region84: #{_lambda_.1} parent=51 // pred_fallthru
          _
        // Predicated region
        $region85: #{_lambda_.1} parent=51 // pred_check
          %p723 = pneg %p419
        $region86: #{_lambda_.1} parent=51 // pred_check_branch
          %725 = sbr.rel (%p723) target = $region88
        $region87: #{_lambda_.1} parent=51 // pred_region
          %p726 = scmp.lt.s32.totalorder %s40, 1
          %s727 = scalar_select %p726, %s40, 1
          %s728 = scalar_lea.vmem %s15, %s727
        $region88: #{_lambda_.1} parent=51 // pred_fallthru
          _
        // Predicated region
        $region89: #{_lambda_.1} parent=51 // pred_check
          %p729 = pneg %p445
        $region90: #{_lambda_.1} parent=51 // pred_check_branch
          %731 = sbr.rel (%p729) target = $region92
        $region91: #{_lambda_.1} parent=51 // pred_region
          %p732 = scmp.lt.s32.totalorder %s40, 1
          %s733 = scalar_select %p732, %s40, 1
          %s734 = scalar_lea.vmem %s16, %s733
        $region92: #{_lambda_.1} parent=51 // pred_fallthru
          _
        // Predicated region
        $region93: #{_lambda_.1} parent=51 // pred_check
          %p735 = pneg %p471
        $region94: #{_lambda_.1} parent=51 // pred_check_branch
          %737 = sbr.rel (%p735) target = $region96
        $region95: #{_lambda_.1} parent=51 // pred_region
          %p738 = scmp.lt.s32.totalorder %s40, 1
          %s739 = scalar_select %p738, %s40, 1
          %s740 = smul.addr %s739, 4
          %s741 = smul.addr %s740, 4
          %s742 = scalar_lea.vmem %s17, %s741
        $region96: #{_lambda_.1} parent=51 // pred_fallthru
          _
        // Predicated region
        $region97: #{_lambda_.1} parent=51 // pred_check
          %p743 = pneg %p497
        $region98: #{_lambda_.1} parent=51 // pred_check_branch
          %745 = sbr.rel (%p743) target = $region100
        $region99: #{_lambda_.1} parent=51 // pred_region
          %p746 = scmp.lt.s32.totalorder %s40, 1
          %s747 = scalar_select %p746, %s40, 1
          %s748 = scalar_lea.vmem %s18, %s747
        $region100: #{_lambda_.1} parent=51 // pred_fallthru
          _
        // Predicated region
        $region101: #{_lambda_.1} parent=51 // pred_check
          %p749 = pneg %p523
        $region102: #{_lambda_.1} parent=51 // pred_check_branch
          %751 = sbr.rel (%p749) target = $region104
        $region103: #{_lambda_.1} parent=51 // pred_region
          %p752 = scmp.lt.s32.totalorder %s40, 1
          %s753 = scalar_select %p752, %s40, 1
          %s754 = smul.addr %s753, 8
          %s755 = smul.addr %s754, 4
          %s756 = scalar_lea.vmem %s19, %s755
        $region104: #{_lambda_.1} parent=51 // pred_fallthru
          _
        // Predicated region
        $region105: #{_lambda_.1} parent=51 // pred_check
          %p757 = pneg %p549
        $region106: #{_lambda_.1} parent=51 // pred_check_branch
          %759 = sbr.rel (%p757) target = $region108
        $region107: #{_lambda_.1} parent=51 // pred_region
          %p760 = scmp.lt.s32.totalorder %s40, 1
          %s761 = scalar_select %p760, %s40, 1
          %s762 = scalar_lea.vmem %s20, %s761
        $region108: #{_lambda_.1} parent=51 // pred_fallthru
          _
      $region52: #{_lambda_.1} parent=5 // pred_fallthru
        _
      %p763 = scmp.le.s32.totalorder 1, %s32
      %p764 = scmp.lt.s32.totalorder %s32, 5
      %p765 = pnand %p763, %p764
      %p766 = pneg %p765
      // Predicated region
      $region109: #{_lambda_.1} parent=5 // pred_check
        _
      $region110: #{_lambda_.1} parent=5 // pred_check_branch
        %768 = sbr.rel (%p765) target = $region112
      $region111: #{_lambda_.1} parent=5 // pred_region
        %s769 = ssub.s32 %s32, 1
        %p770 = scmp.lt.s32.totalorder %s41, 1
        %s771 = scalar_select %p770, %s41, 1
        %s772 = smul.addr %s771, 16
        %s773 = smul.addr %s772, 8
        %s774 = scalar_lea.vmem %s0, %s773
        %p775 = pneg %p70
        %p776 = pneg %p67
        %p777 = scmp.lt.s32.totalorder %s41, 1
        %s778 = scalar_select %p777, %s41, 1
        %s779 = scalar_lea.vmem %s1, %s778
        %p780 = pneg %p96
        %p781 = pneg %p93
        %p782 = pneg %p117
        %p783 = pneg %p114
        %p784 = pneg %p138
        %p785 = pneg %p135
        %p786 = pneg %p159
        %p787 = pneg %p156
        %p788 = pneg %p180
        %p789 = pneg %p177
        %p790 = pneg %p201
        %p791 = pneg %p198
        %p792 = pneg %p222
        %p793 = pneg %p219
        %p794 = pneg %p243
        %p795 = pneg %p240
        %p796 = scmp.lt.s32.totalorder %s42, 1
        %s797 = scalar_select %p796, %s42, 1
        %s798 = scalar_lea.vmem %s9, %s797
        %p799 = pneg %p269
        %p800 = pneg %p266
        %p801 = scmp.lt.s32.totalorder %s42, 1
        %s802 = scalar_select %p801, %s42, 1
        %s803 = scalar_lea.vmem %s10, %s802
        %p804 = pneg %p295
        %p805 = pneg %p292
        %p806 = scmp.lt.s32.totalorder %s42, 1
        %s807 = scalar_select %p806, %s42, 1
        %s808 = smul.addr %s807, 4
        %s809 = smul.addr %s808, 4
        %s810 = scalar_lea.vmem %s11, %s809
        %p811 = pneg %p321
        %p812 = pneg %p318
        %p813 = scmp.lt.s32.totalorder %s42, 1
        %s814 = scalar_select %p813, %s42, 1
        %s815 = scalar_lea.vmem %s12, %s814
        %p816 = pneg %p347
        %p817 = pneg %p344
        %p818 = scmp.lt.s32.totalorder %s42, 1
        %s819 = scalar_select %p818, %s42, 1
        %s820 = smul.addr %s819, 4
        %s821 = smul.addr %s820, 4
        %s822 = scalar_lea.vmem %s13, %s821
        %p823 = pneg %p373
        %p824 = pneg %p370
        %p825 = scmp.lt.s32.totalorder %s42, 1
        %s826 = scalar_select %p825, %s42, 1
        %s827 = scalar_lea.vmem %s14, %s826
        %p828 = pneg %p399
        %p829 = pneg %p396
        %p830 = scmp.lt.s32.totalorder %s42, 1
        %s831 = scalar_select %p830, %s42, 1
        %s832 = scalar_lea.vmem %s15, %s831
        %p833 = pneg %p425
        %p834 = pneg %p422
        %p835 = scmp.lt.s32.totalorder %s42, 1
        %s836 = scalar_select %p835, %s42, 1
        %s837 = scalar_lea.vmem %s16, %s836
        %p838 = pneg %p451
        %p839 = pneg %p448
        %p840 = scmp.lt.s32.totalorder %s42, 1
        %s841 = scalar_select %p840, %s42, 1
        %s842 = smul.addr %s841, 4
        %s843 = smul.addr %s842, 4
        %s844 = scalar_lea.vmem %s17, %s843
        %p845 = pneg %p477
        %p846 = pneg %p474
        %p847 = scmp.lt.s32.totalorder %s42, 1
        %s848 = scalar_select %p847, %s42, 1
        %s849 = scalar_lea.vmem %s18, %s848
        %p850 = pneg %p503
        %p851 = pneg %p500
        %p852 = scmp.lt.s32.totalorder %s42, 1
        %s853 = scalar_select %p852, %s42, 1
        %s854 = smul.addr %s853, 8
        %s855 = smul.addr %s854, 4
        %s856 = scalar_lea.vmem %s19, %s855
        %p857 = pneg %p529
        %p858 = pneg %p526
        %p859 = scmp.lt.s32.totalorder %s42, 1
        %s860 = scalar_select %p859, %s42, 1
        %s861 = scalar_lea.vmem %s20, %s860
        %p862 = pneg %p555
        %p863 = pneg %p552
        %p864 = pneg %p576
        %p865 = pneg %p573
        %p866 = pneg %p597
        %p867 = pneg %p594
        %p868 = pneg %p623
        %p869 = pneg %p620
        %s870 = sand.u32 %s610, 1
        %s871 = scalar_lea.sflag [#allocation5], %s870
        %s872 = sand.u32 %s610, 1
        %s873 = smul.addr %s872, 8
        %s874 = scalar_lea.vmem [#allocation4], %s873
        %p875 = scmp.lt.s32.totalorder %s41, 1
        %s876 = scalar_select %p875, %s41, 1
        %s877 = smul.addr %s876, 16
        %s878 = smul.addr %s877, 8
        %s879 = scalar_lea.vmem %s0, %s878
        %p880 = scmp.lt.s32.totalorder %s41, 1
        %s881 = scalar_select %p880, %s41, 1
        %s882 = scalar_lea.vmem %s1, %s881
        %p883 = scmp.lt.s32.totalorder %s42, 1
        %s884 = scalar_select %p883, %s42, 1
        %s885 = scalar_lea.vmem %s9, %s884
        %p886 = scmp.lt.s32.totalorder %s42, 1
        %s887 = scalar_select %p886, %s42, 1
        %s888 = scalar_lea.vmem %s10, %s887
        %p889 = scmp.lt.s32.totalorder %s42, 1
        %s890 = scalar_select %p889, %s42, 1
        %s891 = smul.addr %s890, 4
        %s892 = smul.addr %s891, 4
        %s893 = scalar_lea.vmem %s11, %s892
        %p894 = scmp.lt.s32.totalorder %s42, 1
        %s895 = scalar_select %p894, %s42, 1
        %s896 = scalar_lea.vmem %s12, %s895
        %p897 = scmp.lt.s32.totalorder %s42, 1
        %s898 = scalar_select %p897, %s42, 1
        %s899 = smul.addr %s898, 4
        %s900 = smul.addr %s899, 4
        %s901 = scalar_lea.vmem %s13, %s900
        %p902 = scmp.lt.s32.totalorder %s42, 1
        %s903 = scalar_select %p902, %s42, 1
        %s904 = scalar_lea.vmem %s14, %s903
        %p905 = scmp.lt.s32.totalorder %s42, 1
        %s906 = scalar_select %p905, %s42, 1
        %s907 = scalar_lea.vmem %s15, %s906
        %p908 = scmp.lt.s32.totalorder %s42, 1
        %s909 = scalar_select %p908, %s42, 1
        %s910 = scalar_lea.vmem %s16, %s909
        %p911 = scmp.lt.s32.totalorder %s42, 1
        %s912 = scalar_select %p911, %s42, 1
        %s913 = smul.addr %s912, 4
        %s914 = smul.addr %s913, 4
        %s915 = scalar_lea.vmem %s17, %s914
        %p916 = scmp.lt.s32.totalorder %s42, 1
        %s917 = scalar_select %p916, %s42, 1
        %s918 = scalar_lea.vmem %s18, %s917
        %p919 = scmp.lt.s32.totalorder %s42, 1
        %s920 = scalar_select %p919, %s42, 1
        %s921 = smul.addr %s920, 8
        %s922 = smul.addr %s921, 4
        %s923 = scalar_lea.vmem %s19, %s922
        %p924 = scmp.lt.s32.totalorder %s42, 1
        %s925 = scalar_select %p924, %s42, 1
        %s926 = scalar_lea.vmem %s20, %s925
        %p928 = scmp.eq.s32.totalorder %s42, 0
        // Predicated region
        $region113: #{_lambda_.1} parent=111 // pred_check
          %p929 = pneg %p928
        $region114: #{_lambda_.1} parent=111 // pred_check_branch
          %931 = sbr.rel (%p929) target = $region116
        $region115: #{_lambda_.1} parent=111 // pred_region
          %v932 = vld [vmem:[%s879] sm:$0xff]
          %v933 = vld [vmem:[%s879 + $0x8] sm:$0xff]
          %v934 = vld [vmem:[%s879 + $0x10] sm:$0xff]
          %v935 = vld [vmem:[%s879 + $0x18] sm:$0xff]
          %v936 = vld [vmem:[%s879 + $0x20] sm:$0xff]
          %v937 = vld [vmem:[%s879 + $0x28] sm:$0xff]
          %v938 = vld [vmem:[%s879 + $0x30] sm:$0xff]
          %v939 = vld [vmem:[%s879 + $0x38] sm:$0xff]
          %v940 = vld [vmem:[%s879 + $0x40] sm:$0xff]
          %v941 = vld [vmem:[%s879 + $0x48] sm:$0xff]
          %v942 = vld [vmem:[%s879 + $0x50] sm:$0xff]
          %v943 = vld [vmem:[%s879 + $0x58] sm:$0xff]
          %v944 = vld [vmem:[%s879 + $0x60] sm:$0xff]
          %v945 = vld [vmem:[%s879 + $0x68] sm:$0xff]
          %v946 = vld [vmem:[%s879 + $0x70] sm:$0xff]
          %v947 = vld [vmem:[%s879 + $0x78] sm:$0x3f]
          %v948 = vld [vmem:[%s2] sm:$0xf]
          %v949 = vld [vmem:[%s2 + $0x4] sm:$0x1]
          %v950 = vpack.c.bf16 %v933, %v932
          %v951 = vpack.c.bf16 %v935, %v934
          %v952 = vpack.c.bf16 %v937, %v936
          %v953 = vpack.c.bf16 %v939, %v938
          %v954 = vpack.c.bf16 %v941, %v940
          %v955 = vpack.c.bf16 %v943, %v942
          %v956 = vpack.c.bf16 %v945, %v944
          %v957 = vpack.c.bf16 %v947, %v946
          %v958 = vld [vmem:[%s3] sm:$0x1]
          %v960 = vperm.slane %v958, 0
          %v964 = vunpack.c.l.b16 %v948
          %v965 = vunpack.c.l.b16 %v949
          %v966 = vpack.c.b16 %v965, %v964
          %vm967 = vcmask 72704
          %v969 = vsel %vm967, %v950, 0
          %v972 = vsel %vm967, %v951, 0
          %v975 = vsel %vm967, %v952, 0
          %v978 = vsel %vm967, %v953, 0
          %v981 = vsel %vm967, %v954, 0
          %v984 = vsel %vm967, %v955, 0
          %v987 = vsel %vm967, %v956, 0
          %v990 = vsel %vm967, %v957, 0
          %vm992 = vcmask 1043456
          %vm993 = vcmask 1044480
          %v994 = vsel %vm992, 4294967295, 65535
          %v995 = vsel %vm993, %v994, 0
          %v997 = vand.u32 %v966, %v995
          %999 = vmatpush.bf16.msra.mxu0 0
          %1000 = vmatpush.bf16.msra.mxu0 0
          %1001 = vmatpush.bf16.msra.mxu0 0
          %1002 = vmatpush.bf16.msra.mxu0 0
          %1003 = vmatpush.bf16.msra.mxu0 0
          %1004 = vmatpush.bf16.msra.mxu0 0
          %1005 = vmatpush.bf16.msra.mxu0 0
          %1006 = vmatpush.bf16.msra.mxu0 %v997
          %1007 = vmatmul.bf16.gmra.mxu0 %v969
          %v1008 = vpop.f32.mrf.mxu0
          %v1009 = vadd.f32 %v960, %v1008
          %v1010 = vpop.f32.mrf.mxu0
          %v1011 = vadd.f32 %v960, %v1010
          %1012 = vmatmul.bf16.gmra.mxu0 %v972
          %v1013 = vpop.f32.mrf.mxu0
          %v1014 = vadd.f32 %v960, %v1013
          %v1015 = vpop.f32.mrf.mxu0
          %v1016 = vadd.f32 %v960, %v1015
          %1017 = vmatmul.bf16.gmra.mxu0 %v975
          %v1018 = vpop.f32.mrf.mxu0
          %v1019 = vadd.f32 %v960, %v1018
          %v1020 = vpop.f32.mrf.mxu0
          %v1021 = vadd.f32 %v960, %v1020
          %1022 = vmatmul.bf16.gmra.mxu0 %v978
          %v1023 = vpop.f32.mrf.mxu0
          %v1024 = vadd.f32 %v960, %v1023
          %v1025 = vpop.f32.mrf.mxu0
          %v1026 = vadd.f32 %v960, %v1025
          %1027 = vmatmul.bf16.gmra.mxu0 %v981
          %v1028 = vpop.f32.mrf.mxu0
          %v1029 = vadd.f32 %v960, %v1028
          %v1030 = vpop.f32.mrf.mxu0
          %v1031 = vadd.f32 %v960, %v1030
          %1032 = vmatmul.bf16.gmra.mxu0 %v984
          %v1033 = vpop.f32.mrf.mxu0
          %v1034 = vadd.f32 %v960, %v1033
          %v1035 = vpop.f32.mrf.mxu0
          %v1036 = vadd.f32 %v960, %v1035
          %1037 = vmatmul.bf16.gmra.mxu0 %v987
          %v1038 = vpop.f32.mrf.mxu0
          %v1039 = vadd.f32 %v960, %v1038
          %v1040 = vpop.f32.mrf.mxu0
          %v1041 = vadd.f32 %v960, %v1040
          %1042 = vmatmul.bf16.gmra.mxu0 %v990
          %v1043 = vpop.f32.mrf.mxu0
          %v1044 = vadd.f32 %v960, %v1043
          %v1045 = vpop.f32.mrf.mxu0
          %v1046 = vadd.f32 %v960, %v1045
          %1047 = vdwg.mxu0
          %v1048 = vmax.f32 %v1009, 0.0
          %v1049 = vmax.f32 %v1011, 0.0
          %v1050 = vmax.f32 %v1014, 0.0
          %v1051 = vmax.f32 %v1016, 0.0
          %v1052 = vmax.f32 %v1019, 0.0
          %v1053 = vmax.f32 %v1021, 0.0
          %v1054 = vmax.f32 %v1024, 0.0
          %v1055 = vmax.f32 %v1026, 0.0
          %v1056 = vmax.f32 %v1029, 0.0
          %v1057 = vmax.f32 %v1031, 0.0
          %v1058 = vmax.f32 %v1034, 0.0
          %v1059 = vmax.f32 %v1036, 0.0
          %v1060 = vmax.f32 %v1039, 0.0
          %v1061 = vmax.f32 %v1041, 0.0
          %v1062 = vmax.f32 %v1044, 0.0
          %v1063 = vmax.f32 %v1046, 0.0
          %vm1064 = vcmask 261120
          %1065 = vst.msk [vmem:[#allocation2] sm:$0xff] %vm1064, %v1048
          %1066 = vst.msk [vmem:[#allocation2 + $0x8] sm:$0xff] %vm1064, %v1049
          %1067 = vst.msk [vmem:[#allocation2 + $0x10] sm:$0xff] %vm1064, %v1050
          %1068 = vst.msk [vmem:[#allocation2 + $0x18] sm:$0xff] %vm1064, %v1051
          %1069 = vst.msk [vmem:[#allocation2 + $0x20] sm:$0xff] %vm1064, %v1052
          %1070 = vst.msk [vmem:[#allocation2 + $0x28] sm:$0xff] %vm1064, %v1053
          %1071 = vst.msk [vmem:[#allocation2 + $0x30] sm:$0xff] %vm1064, %v1054
          %1072 = vst.msk [vmem:[#allocation2 + $0x38] sm:$0xff] %vm1064, %v1055
          %1073 = vst.msk [vmem:[#allocation2 + $0x40] sm:$0xff] %vm1064, %v1056
          %1074 = vst.msk [vmem:[#allocation2 + $0x48] sm:$0xff] %vm1064, %v1057
          %1075 = vst.msk [vmem:[#allocation2 + $0x50] sm:$0xff] %vm1064, %v1058
          %1076 = vst.msk [vmem:[#allocation2 + $0x58] sm:$0xff] %vm1064, %v1059
          %1077 = vst.msk [vmem:[#allocation2 + $0x60] sm:$0xff] %vm1064, %v1060
          %1078 = vst.msk [vmem:[#allocation2 + $0x68] sm:$0xff] %vm1064, %v1061
          %1079 = vst.msk [vmem:[#allocation2 + $0x70] sm:$0xff] %vm1064, %v1062
          %vm1080 = vcmask 259072
          %1081 = vst.msk [vmem:[#allocation2 + $0x78] sm:$0x3f] %vm1080, %v1063
          %v1082 = vld [vmem:[%s5] sm:$0x1]
          %v1083 = vld [vmem:[#allocation2] ss:$2 sm:$0xff]
          %s1084 = scalar_lea.vmem [#allocation2], 36
          %v1085 = vld [vmem:[%s1084] ss:$2 sm:$0xff]
          %s1086 = scalar_lea.vmem [#allocation2], 72
          %v1087 = vld [vmem:[%s1086] ss:$2 sm:$0xff]
          %v1088 = vld [vmem:[%s4] sm:$0xf]
          %v1089 = vld [vmem:[%s4 + $0x4] sm:$0xf]
          %v1090 = vld [vmem:[%s4 + $0x8] sm:$0xf]
          %v1091 = vld [vmem:[%s4 + $0xc] sm:$0xf]
          %v1092 = vpack.c.bf16 %v1085, %v1083
          %v1093 = vpack.c.bf16 %v1087, %v1087
          %s1094 = scalar_lea.vmem [#allocation2], 18
          %v1095 = vld [vmem:[%s1094] ss:$2 sm:$0xff]
          %s1096 = scalar_lea.vmem [#allocation2], 54
          %v1097 = vld [vmem:[%s1096] ss:$2 sm:$0xff]
          %s1098 = scalar_lea.vmem [#allocation2], 90
          %v1099 = vld [vmem:[%s1098] ss:$2 sm:$0xff]
          %s1100 = scalar_lea.vmem %s4, 16
          %v1101 = vld [vmem:[%s1100] sm:$0xf]
          %v1102 = vld [vmem:[%s1100 + $0x4] sm:$0xf]
          %v1103 = vld [vmem:[%s1100 + $0x8] sm:$0xf]
          %v1104 = vld [vmem:[%s1100 + $0xc] sm:$0xf]
          %v1105 = vpack.c.bf16 %v1097, %v1095
          %v1106 = vpack.c.bf16 %v1099, %v1099
          %v1111 = vunpack.c.l.b16 %v1101
          %v1112 = vunpack.c.l.b16 %v1102
          %v1113 = vunpack.c.l.b16 %v1103
          %v1114 = vunpack.c.l.b16 %v1104
          %v1115 = vpack.c.b16 %v1112, %v1111
          %v1116 = vpack.c.b16 %v1114, %v1113
          %v1120 = vsel %vm1064, %v1105, 0
          %v1123 = vsel %vm1064, %v1106, 0
          %1125 = vmatpush.bf16.msra.mxu0 0
          %1126 = vmatpush.bf16.msra.mxu0 0
          %1127 = vmatpush.bf16.msra.mxu0 0
          %1128 = vmatpush.bf16.msra.mxu0 0
          %1129 = vmatpush.bf16.msra.mxu0 0
          %1130 = vmatpush.bf16.msra.mxu0 0
          %1131 = vmatpush.bf16.msra.mxu0 %v1116
          %1132 = vmatpush.bf16.msra.mxu0 %v1115
          %1133 = vmatmul.bf16.gmra.mxu0 %v1120
          %v1134 = vpop.f32.mrf.mxu0
          %v1135 = vadd.f32 0.0, %v1134
          %v1136 = vpop.f32.mrf.mxu0
          %v1137 = vadd.f32 0.0, %v1136
          %1138 = vmatmul.bf16.gmra.mxu0 %v1123
          %v1139 = vpop.f32.mrf.mxu0
          %v1140 = vadd.f32 0.0, %v1139
          %v1141 = vpop.f32.mrf.mxu0
          %1142 = vdwg.mxu0
          %v1147 = vunpack.c.l.b16 %v1088
          %v1148 = vunpack.c.l.b16 %v1089
          %v1149 = vunpack.c.l.b16 %v1090
          %v1150 = vunpack.c.l.b16 %v1091
          %v1151 = vpack.c.b16 %v1148, %v1147
          %v1152 = vpack.c.b16 %v1150, %v1149
          %v1156 = vsel %vm1064, %v1092, 0
          %v1159 = vsel %vm1064, %v1093, 0
          %1161 = vmatpush.bf16.msra.mxu0 0
          %1162 = vmatpush.bf16.msra.mxu0 0
          %1163 = vmatpush.bf16.msra.mxu0 0
          %1164 = vmatpush.bf16.msra.mxu0 0
          %1165 = vmatpush.bf16.msra.mxu0 0
          %1166 = vmatpush.bf16.msra.mxu0 0
          %1167 = vmatpush.bf16.msra.mxu0 %v1152
          %1168 = vmatpush.bf16.msra.mxu0 %v1151
          %1169 = vmatmul.bf16.gmra.mxu0 %v1156
          %v1170 = vpop.f32.mrf.mxu0
          %v1171 = vadd.f32 %v1135, %v1170
          %v1172 = vpop.f32.mrf.mxu0
          %v1173 = vadd.f32 %v1137, %v1172
          %1174 = vmatmul.bf16.gmra.mxu0 %v1159
          %v1175 = vpop.f32.mrf.mxu0
          %v1176 = vadd.f32 %v1140, %v1175
          %v1177 = vpop.f32.mrf.mxu0
          %1178 = vdwg.mxu0
          %s1179 = scalar_lea.vmem [#allocation2], 108
          %v1180 = vld [vmem:[%s1179] ss:$2 sm:$0xff]
          %s1181 = scalar_lea.vmem %s4, 32
          %v1182 = vld [vmem:[%s1181] sm:$0xf]
          %v1183 = vld [vmem:[%s1181 + $0x4] sm:$0xf]
          %v1184 = vld [vmem:[%s1181 + $0x8] sm:$0xf]
          %v1185 = vld [vmem:[%s1181 + $0xc] sm:$0xf]
          %v1186 = vpack.c.bf16 %v1087, %v1085
          %v1187 = vpack.c.bf16 %v1180, %v1180
          %v1192 = vunpack.c.l.b16 %v1182
          %v1193 = vunpack.c.l.b16 %v1183
          %v1194 = vunpack.c.l.b16 %v1184
          %v1195 = vunpack.c.l.b16 %v1185
          %v1196 = vpack.c.b16 %v1193, %v1192
          %v1197 = vpack.c.b16 %v1195, %v1194
          %v1201 = vsel %vm1064, %v1186, 0
          %v1204 = vsel %vm1064, %v1187, 0
          %1206 = vmatpush.bf16.msra.mxu0 0
          %1207 = vmatpush.bf16.msra.mxu0 0
          %1208 = vmatpush.bf16.msra.mxu0 0
          %1209 = vmatpush.bf16.msra.mxu0 0
          %1210 = vmatpush.bf16.msra.mxu0 0
          %1211 = vmatpush.bf16.msra.mxu0 0
          %1212 = vmatpush.bf16.msra.mxu0 %v1197
          %1213 = vmatpush.bf16.msra.mxu0 %v1196
          %1214 = vmatmul.bf16.gmra.mxu0 %v1201
          %v1215 = vpop.f32.mrf.mxu0
          %v1216 = vadd.f32 0.0, %v1215
          %v1217 = vpop.f32.mrf.mxu0
          %v1218 = vadd.f32 0.0, %v1217
          %1219 = vmatmul.bf16.gmra.mxu0 %v1204
          %v1220 = vpop.f32.mrf.mxu0
          %v1221 = vadd.f32 0.0, %v1220
          %v1222 = vpop.f32.mrf.mxu0
          %1223 = vdwg.mxu0
          %v1224 = vadd.f32 %v1171, %v1216
          %v1225 = vadd.f32 %v1173, %v1218
          %v1226 = vadd.f32 %v1176, %v1221
          %s1227 = scalar_lea.vmem [#allocation2], 1
          %v1228 = vld [vmem:[%s1227] ss:$2 sm:$0xff]
          %s1229 = scalar_lea.vmem [#allocation2], 37
          %v1230 = vld [vmem:[%s1229] ss:$2 sm:$0xff]
          %s1231 = scalar_lea.vmem [#allocation2], 73
          %v1232 = vld [vmem:[%s1231] ss:$2 sm:$0xff]
          %s1233 = scalar_lea.vmem %s4, 48
          %v1234 = vld [vmem:[%s1233] sm:$0xf]
          %v1235 = vld [vmem:[%s1233 + $0x4] sm:$0xf]
          %v1236 = vld [vmem:[%s1233 + $0x8] sm:$0xf]
          %v1237 = vld [vmem:[%s1233 + $0xc] sm:$0xf]
          %v1238 = vpack.c.bf16 %v1230, %v1228
          %v1239 = vpack.c.bf16 %v1232, %v1232
          %v1244 = vunpack.c.l.b16 %v1234
          %v1245 = vunpack.c.l.b16 %v1235
          %v1246 = vunpack.c.l.b16 %v1236
          %v1247 = vunpack.c.l.b16 %v1237
          %v1248 = vpack.c.b16 %v1245, %v1244
          %v1249 = vpack.c.b16 %v1247, %v1246
          %v1253 = vsel %vm1064, %v1238, 0
          %v1256 = vsel %vm1064, %v1239, 0
          %1258 = vmatpush.bf16.msra.mxu0 0
          %1259 = vmatpush.bf16.msra.mxu0 0
          %1260 = vmatpush.bf16.msra.mxu0 0
          %1261 = vmatpush.bf16.msra.mxu0 0
          %1262 = vmatpush.bf16.msra.mxu0 0
          %1263 = vmatpush.bf16.msra.mxu0 0
          %1264 = vmatpush.bf16.msra.mxu0 %v1249
          %1265 = vmatpush.bf16.msra.mxu0 %v1248
          %1266 = vmatmul.bf16.gmra.mxu0 %v1253
          %v1267 = vpop.f32.mrf.mxu0
          %v1268 = vadd.f32 0.0, %v1267
          %v1269 = vpop.f32.mrf.mxu0
          %v1270 = vadd.f32 0.0, %v1269
          %1271 = vmatmul.bf16.gmra.mxu0 %v1256
          %v1272 = vpop.f32.mrf.mxu0
          %v1273 = vadd.f32 0.0, %v1272
          %v1274 = vpop.f32.mrf.mxu0
          %1275 = vdwg.mxu0
          %v1276 = vadd.f32 %v1224, %v1268
          %v1277 = vadd.f32 %v1225, %v1270
          %v1278 = vadd.f32 %v1226, %v1273
          %s1279 = scalar_lea.vmem [#allocation2], 19
          %v1280 = vld [vmem:[%s1279] ss:$2 sm:$0xff]
          %s1281 = scalar_lea.vmem [#allocation2], 55
          %v1282 = vld [vmem:[%s1281] ss:$2 sm:$0xff]
          %s1283 = scalar_lea.vmem [#allocation2], 91
          %v1284 = vld [vmem:[%s1283] ss:$2 sm:$0xff]
          %s1285 = scalar_lea.vmem %s4, 64
          %v1286 = vld [vmem:[%s1285] sm:$0xf]
          %v1287 = vld [vmem:[%s1285 + $0x4] sm:$0xf]
          %v1288 = vld [vmem:[%s1285 + $0x8] sm:$0xf]
          %v1289 = vld [vmem:[%s1285 + $0xc] sm:$0xf]
          %v1290 = vpack.c.bf16 %v1282, %v1280
          %v1291 = vpack.c.bf16 %v1284, %v1284
          %v1296 = vunpack.c.l.b16 %v1286
          %v1297 = vunpack.c.l.b16 %v1287
          %v1298 = vunpack.c.l.b16 %v1288
          %v1299 = vunpack.c.l.b16 %v1289
          %v1300 = vpack.c.b16 %v1297, %v1296
          %v1301 = vpack.c.b16 %v1299, %v1298
          %v1305 = vsel %vm1064, %v1290, 0
          %v1308 = vsel %vm1064, %v1291, 0
          %1310 = vmatpush.bf16.msra.mxu0 0
          %1311 = vmatpush.bf16.msra.mxu0 0
          %1312 = vmatpush.bf16.msra.mxu0 0
          %1313 = vmatpush.bf16.msra.mxu0 0
          %1314 = vmatpush.bf16.msra.mxu0 0
          %1315 = vmatpush.bf16.msra.mxu0 0
          %1316 = vmatpush.bf16.msra.mxu0 %v1301
          %1317 = vmatpush.bf16.msra.mxu0 %v1300
          %1318 = vmatmul.bf16.gmra.mxu0 %v1305
          %v1319 = vpop.f32.mrf.mxu0
          %v1320 = vadd.f32 0.0, %v1319
          %v1321 = vpop.f32.mrf.mxu0
          %v1322 = vadd.f32 0.0, %v1321
          %1323 = vmatmul.bf16.gmra.mxu0 %v1308
          %v1324 = vpop.f32.mrf.mxu0
          %v1325 = vadd.f32 0.0, %v1324
          %v1326 = vpop.f32.mrf.mxu0
          %1327 = vdwg.mxu0
          %v1328 = vadd.f32 %v1276, %v1320
          %v1329 = vadd.f32 %v1277, %v1322
          %v1330 = vadd.f32 %v1278, %v1325
          %s1331 = scalar_lea.vmem [#allocation2], 109
          %v1332 = vld [vmem:[%s1331] ss:$2 sm:$0xff]
          %s1333 = scalar_lea.vmem %s4, 80
          %v1334 = vld [vmem:[%s1333] sm:$0xf]
          %v1335 = vld [vmem:[%s1333 + $0x4] sm:$0xf]
          %v1336 = vld [vmem:[%s1333 + $0x8] sm:$0xf]
          %v1337 = vld [vmem:[%s1333 + $0xc] sm:$0xf]
          %v1338 = vpack.c.bf16 %v1232, %v1230
          %v1339 = vpack.c.bf16 %v1332, %v1332
          %v1344 = vunpack.c.l.b16 %v1334
          %v1345 = vunpack.c.l.b16 %v1335
          %v1346 = vunpack.c.l.b16 %v1336
          %v1347 = vunpack.c.l.b16 %v1337
          %v1348 = vpack.c.b16 %v1345, %v1344
          %v1349 = vpack.c.b16 %v1347, %v1346
          %v1353 = vsel %vm1064, %v1338, 0
          %v1356 = vsel %vm1064, %v1339, 0
          %1358 = vmatpush.bf16.msra.mxu0 0
          %1359 = vmatpush.bf16.msra.mxu0 0
          %1360 = vmatpush.bf16.msra.mxu0 0
          %1361 = vmatpush.bf16.msra.mxu0 0
          %1362 = vmatpush.bf16.msra.mxu0 0
          %1363 = vmatpush.bf16.msra.mxu0 0
          %1364 = vmatpush.bf16.msra.mxu0 %v1349
          %1365 = vmatpush.bf16.msra.mxu0 %v1348
          %1366 = vmatmul.bf16.gmra.mxu0 %v1353
          %v1367 = vpop.f32.mrf.mxu0
          %v1368 = vadd.f32 0.0, %v1367
          %v1369 = vpop.f32.mrf.mxu0
          %v1370 = vadd.f32 0.0, %v1369
          %1371 = vmatmul.bf16.gmra.mxu0 %v1356
          %v1372 = vpop.f32.mrf.mxu0
          %v1373 = vadd.f32 0.0, %v1372
          %v1374 = vpop.f32.mrf.mxu0
          %1375 = vdwg.mxu0
          %v1376 = vadd.f32 %v1328, %v1368
          %v1377 = vadd.f32 %v1329, %v1370
          %v1378 = vadd.f32 %v1330, %v1373
          %s1379 = scalar_lea.vmem [#allocation2], 2
          %v1380 = vld [vmem:[%s1379] ss:$2 sm:$0xff]
          %s1381 = scalar_lea.vmem [#allocation2], 38
          %v1382 = vld [vmem:[%s1381] ss:$2 sm:$0xff]
          %s1383 = scalar_lea.vmem [#allocation2], 74
          %v1384 = vld [vmem:[%s1383] ss:$2 sm:$0xff]
          %s1385 = scalar_lea.vmem %s4, 96
          %v1386 = vld [vmem:[%s1385] sm:$0xf]
          %v1387 = vld [vmem:[%s1385 + $0x4] sm:$0xf]
          %v1388 = vld [vmem:[%s1385 + $0x8] sm:$0xf]
          %v1389 = vld [vmem:[%s1385 + $0xc] sm:$0xf]
          %v1390 = vpack.c.bf16 %v1382, %v1380
          %v1391 = vpack.c.bf16 %v1384, %v1384
          %v1396 = vunpack.c.l.b16 %v1386
          %v1397 = vunpack.c.l.b16 %v1387
          %v1398 = vunpack.c.l.b16 %v1388
          %v1399 = vunpack.c.l.b16 %v1389
          %v1400 = vpack.c.b16 %v1397, %v1396
          %v1401 = vpack.c.b16 %v1399, %v1398
          %v1405 = vsel %vm1064, %v1390, 0
          %v1408 = vsel %vm1064, %v1391, 0
          %1410 = vmatpush.bf16.msra.mxu0 0
          %1411 = vmatpush.bf16.msra.mxu0 0
          %1412 = vmatpush.bf16.msra.mxu0 0
          %1413 = vmatpush.bf16.msra.mxu0 0
          %1414 = vmatpush.bf16.msra.mxu0 0
          %1415 = vmatpush.bf16.msra.mxu0 0
          %1416 = vmatpush.bf16.msra.mxu0 %v1401
          %1417 = vmatpush.bf16.msra.mxu0 %v1400
          %1418 = vmatmul.bf16.gmra.mxu0 %v1405
          %v1419 = vpop.f32.mrf.mxu0
          %v1420 = vadd.f32 0.0, %v1419
          %v1421 = vpop.f32.mrf.mxu0
          %v1422 = vadd.f32 0.0, %v1421
          %1423 = vmatmul.bf16.gmra.mxu0 %v1408
          %v1424 = vpop.f32.mrf.mxu0
          %v1425 = vadd.f32 0.0, %v1424
          %v1426 = vpop.f32.mrf.mxu0
          %1427 = vdwg.mxu0
          %v1428 = vadd.f32 %v1376, %v1420
          %v1429 = vadd.f32 %v1377, %v1422
          %v1430 = vadd.f32 %v1378, %v1425
          %s1431 = scalar_lea.vmem [#allocation2], 20
          %v1432 = vld [vmem:[%s1431] ss:$2 sm:$0xff]
          %s1433 = scalar_lea.vmem [#allocation2], 56
          %v1434 = vld [vmem:[%s1433] ss:$2 sm:$0xff]
          %s1435 = scalar_lea.vmem [#allocation2], 92
          %v1436 = vld [vmem:[%s1435] ss:$2 sm:$0xff]
          %s1437 = scalar_lea.vmem %s4, 112
          %v1438 = vld [vmem:[%s1437] sm:$0xf]
          %v1439 = vld [vmem:[%s1437 + $0x4] sm:$0xf]
          %v1440 = vld [vmem:[%s1437 + $0x8] sm:$0xf]
          %v1441 = vld [vmem:[%s1437 + $0xc] sm:$0xf]
          %v1442 = vpack.c.bf16 %v1434, %v1432
          %v1443 = vpack.c.bf16 %v1436, %v1436
          %v1448 = vunpack.c.l.b16 %v1438
          %v1449 = vunpack.c.l.b16 %v1439
          %v1450 = vunpack.c.l.b16 %v1440
          %v1451 = vunpack.c.l.b16 %v1441
          %v1452 = vpack.c.b16 %v1449, %v1448
          %v1453 = vpack.c.b16 %v1451, %v1450
          %v1457 = vsel %vm1064, %v1442, 0
          %v1460 = vsel %vm1064, %v1443, 0
          %1462 = vmatpush.bf16.msra.mxu0 0
          %1463 = vmatpush.bf16.msra.mxu0 0
          %1464 = vmatpush.bf16.msra.mxu0 0
          %1465 = vmatpush.bf16.msra.mxu0 0
          %1466 = vmatpush.bf16.msra.mxu0 0
          %1467 = vmatpush.bf16.msra.mxu0 0
          %1468 = vmatpush.bf16.msra.mxu0 %v1453
          %1469 = vmatpush.bf16.msra.mxu0 %v1452
          %1470 = vmatmul.bf16.gmra.mxu0 %v1457
          %v1471 = vpop.f32.mrf.mxu0
          %v1472 = vadd.f32 0.0, %v1471
          %v1473 = vpop.f32.mrf.mxu0
          %v1474 = vadd.f32 0.0, %v1473
          %1475 = vmatmul.bf16.gmra.mxu0 %v1460
          %v1476 = vpop.f32.mrf.mxu0
          %v1477 = vadd.f32 0.0, %v1476
          %v1478 = vpop.f32.mrf.mxu0
          %1479 = vdwg.mxu0
          %v1480 = vadd.f32 %v1428, %v1472
          %v1481 = vadd.f32 %v1429, %v1474
          %v1482 = vadd.f32 %v1430, %v1477
          %s1483 = scalar_lea.vmem [#allocation2], 110
          %v1484 = vld [vmem:[%s1483] ss:$2 sm:$0xff]
          %s1485 = scalar_lea.vmem %s4, 128
          %v1486 = vld [vmem:[%s1485] sm:$0xf]
          %v1487 = vld [vmem:[%s1485 + $0x4] sm:$0xf]
          %v1488 = vld [vmem:[%s1485 + $0x8] sm:$0xf]
          %v1489 = vld [vmem:[%s1485 + $0xc] sm:$0xf]
          %v1490 = vpack.c.bf16 %v1384, %v1382
          %v1491 = vpack.c.bf16 %v1484, %v1484
          %v1496 = vunpack.c.l.b16 %v1486
          %v1497 = vunpack.c.l.b16 %v1487
          %v1498 = vunpack.c.l.b16 %v1488
          %v1499 = vunpack.c.l.b16 %v1489
          %v1500 = vpack.c.b16 %v1497, %v1496
          %v1501 = vpack.c.b16 %v1499, %v1498
          %v1505 = vsel %vm1064, %v1490, 0
          %v1508 = vsel %vm1064, %v1491, 0
          %1510 = vmatpush.bf16.msra.mxu0 0
          %1511 = vmatpush.bf16.msra.mxu0 0
          %1512 = vmatpush.bf16.msra.mxu0 0
          %1513 = vmatpush.bf16.msra.mxu0 0
          %1514 = vmatpush.bf16.msra.mxu0 0
          %1515 = vmatpush.bf16.msra.mxu0 0
          %1516 = vmatpush.bf16.msra.mxu0 %v1501
          %1517 = vmatpush.bf16.msra.mxu0 %v1500
          %1518 = vmatmul.bf16.gmra.mxu0 %v1505
          %v1519 = vpop.f32.mrf.mxu0
          %v1520 = vadd.f32 0.0, %v1519
          %v1521 = vpop.f32.mrf.mxu0
          %v1522 = vadd.f32 0.0, %v1521
          %1523 = vmatmul.bf16.gmra.mxu0 %v1508
          %v1524 = vpop.f32.mrf.mxu0
          %v1525 = vadd.f32 0.0, %v1524
          %v1526 = vpop.f32.mrf.mxu0
          %1527 = vdwg.mxu0
          %v1528 = vadd.f32 %v1480, %v1520
          %v1529 = vadd.f32 %v1481, %v1522
          %v1530 = vadd.f32 %v1482, %v1525
          %v1532 = vperm.slane %v1082, 0
          %v1534 = vadd.f32 %v1528, %v1532
          %v1535 = vadd.f32 %v1529, %v1532
          %v1536 = vadd.f32 %v1530, %v1532
          %v1537 = vmax.f32 %v1534, 0.0
          %v1538 = vmax.f32 %v1535, 0.0
          %v1539 = vmax.f32 %v1536, 0.0
          %v1540 = vld [vmem:[%s7] sm:$0x1]
          %v1541 = vld [vmem:[%s6] sm:$0xf]
          %v1542 = vld [vmem:[%s6 + $0x4] sm:$0xf]
          %v1543 = vld [vmem:[%s6 + $0x8] sm:$0xf]
          %v1544 = vld [vmem:[%s6 + $0xc] sm:$0xf]
          %v1545 = vpack.c.bf16 %v1537, %v1537
          %v1550 = vunpack.c.l.b16 %v1541
          %v1551 = vunpack.c.l.b16 %v1542
          %v1552 = vunpack.c.l.b16 %v1543
          %v1553 = vunpack.c.l.b16 %v1544
          %v1554 = vpack.c.b16 %v1551, %v1550
          %v1555 = vpack.c.b16 %v1553, %v1552
          %v1559 = vsel %vm1064, %v1545, 0
          %1561 = vmatpush.bf16.msra.mxu0 0
          %1562 = vmatpush.bf16.msra.mxu0 0
          %1563 = vmatpush.bf16.msra.mxu0 0
          %1564 = vmatpush.bf16.msra.mxu0 0
          %1565 = vmatpush.bf16.msra.mxu0 0
          %1566 = vmatpush.bf16.msra.mxu0 0
          %1567 = vmatpush.bf16.msra.mxu0 %v1555
          %1568 = vmatpush.bf16.msra.mxu0 %v1554
          %1569 = vmatmul.bf16.gmra.mxu0 %v1559
          %v1570 = vpop.f32.mrf.mxu0
          %v1571 = vadd.f32 0.0, %v1570
          %v1572 = vpop.f32.mrf.mxu0
          %1573 = vdwg.mxu0
          %v1575 = vperm.slane %v1540, 0
          %v1577 = vadd.f32 %v1575, %v1571
          %s1578 = scalar_lea.vmem %s6, 16
          %v1579 = vld [vmem:[%s1578] sm:$0xf]
          %v1580 = vld [vmem:[%s1578 + $0x4] sm:$0xf]
          %v1581 = vld [vmem:[%s1578 + $0x8] sm:$0xf]
          %v1582 = vld [vmem:[%s1578 + $0xc] sm:$0xf]
          %v1583 = vpack.c.bf16 %v1538, %v1538
          %v1588 = vunpack.c.l.b16 %v1579
          %v1589 = vunpack.c.l.b16 %v1580
          %v1590 = vunpack.c.l.b16 %v1581
          %v1591 = vunpack.c.l.b16 %v1582
          %v1592 = vpack.c.b16 %v1589, %v1588
          %v1593 = vpack.c.b16 %v1591, %v1590
          %v1597 = vsel %vm1064, %v1583, 0
          %1599 = vmatpush.bf16.msra.mxu0 0
          %1600 = vmatpush.bf16.msra.mxu0 0
          %1601 = vmatpush.bf16.msra.mxu0 0
          %1602 = vmatpush.bf16.msra.mxu0 0
          %1603 = vmatpush.bf16.msra.mxu0 0
          %1604 = vmatpush.bf16.msra.mxu0 0
          %1605 = vmatpush.bf16.msra.mxu0 %v1593
          %1606 = vmatpush.bf16.msra.mxu0 %v1592
          %1607 = vmatmul.bf16.gmra.mxu0 %v1597
          %v1608 = vpop.f32.mrf.mxu0
          %v1609 = vadd.f32 0.0, %v1608
          %v1610 = vpop.f32.mrf.mxu0
          %1611 = vdwg.mxu0
          %v1612 = vadd.f32 %v1577, %v1609
          %s1613 = scalar_lea.vmem %s6, 32
          %v1614 = vld [vmem:[%s1613] sm:$0xf]
          %v1615 = vld [vmem:[%s1613 + $0x4] sm:$0xf]
          %v1616 = vld [vmem:[%s1613 + $0x8] sm:$0xf]
          %v1617 = vld [vmem:[%s1613 + $0xc] sm:$0xf]
          %v1618 = vpack.c.bf16 %v1539, %v1539
          %v1623 = vunpack.c.l.b16 %v1614
          %v1624 = vunpack.c.l.b16 %v1615
          %v1625 = vunpack.c.l.b16 %v1616
          %v1626 = vunpack.c.l.b16 %v1617
          %v1627 = vpack.c.b16 %v1624, %v1623
          %v1628 = vpack.c.b16 %v1626, %v1625
          %v1632 = vsel %vm1064, %v1618, 0
          %1634 = vmatpush.bf16.msra.mxu0 0
          %1635 = vmatpush.bf16.msra.mxu0 0
          %1636 = vmatpush.bf16.msra.mxu0 0
          %1637 = vmatpush.bf16.msra.mxu0 0
          %1638 = vmatpush.bf16.msra.mxu0 0
          %1639 = vmatpush.bf16.msra.mxu0 0
          %1640 = vmatpush.bf16.msra.mxu0 %v1628
          %1641 = vmatpush.bf16.msra.mxu0 %v1627
          %1642 = vmatmul.bf16.gmra.mxu0 %v1632
          %v1643 = vpop.f32.mrf.mxu0
          %v1644 = vadd.f32 0.0, %v1643
          %v1645 = vpop.f32.mrf.mxu0
          %1646 = vdwg.mxu0
          %v1647 = vadd.f32 %v1612, %v1644
          %v1648 = vmul.f32 %v1647, 5.656854
          %v1649 = vld [vmem:[%s8] sm:$0xff]
          %v1650 = vadd.f32 %v1648, %v1649
          %1651 = vst.msk [vmem:[#allocation3] sm:$0xff] %vm1064, %v1650
        $region116: #{_lambda_.1} parent=111 // pred_fallthru
          _
        %v1652 = vld [vmem:[#allocation3] sm:$0xff]
        %v1653 = vld [vmem:[%s882] sm:$0x1]
        %v1654 = vsub.f32 1.0, %v1653
        %v1655 = vmul.f32 %v1654, -3.4028235e+38
        %v1656 = vld [vmem:[%s885] sm:$0x1]
        %v1657 = vld [vmem:[%s888] sm:$0x1]
        %vm1658 = vcmask 261120
        %v1659 = vsel %vm1658, %v1652, 0.0
        %1660 = vadd.xlane.f32.xlu0 %v1659
        %v1661 = vpop.xlane.xlu0 %1660
        %v1662 = vrcp.pop 32.0
        %v1663 = vmul.f32 32.0, %v1662
        %v1664 = vsub.f32 1.0, %v1663
        %v1665 = vmul.f32 %v1662, %v1664
        %v1666 = vadd.f32 %v1662, %v1665
        %vm1667 = vweird.f32 %v1662
        %v1668 = vsel %vm1667, %v1662, %v1666
        %v1669 = vmul.f32 %v1661, %v1668
        %v1670 = vsub.f32 %v1652, %v1669
        %v1671 = vmul.f32 %v1670, %v1670
        %v1672 = vsel %vm1658, %v1671, 0.0
        %1673 = vadd.xlane.f32.xlu0 %v1672
        %v1674 = vpop.xlane.xlu0 %1673
        %v1675 = vmul.f32 %v1674, %v1668
        %v1676 = vadd.f32 %v1675, 1e-12
        %v1677 = vrsqrt.pop %v1676
        %v1678 = vmul.f32 %v1677, %v1676
        %v1679 = vmul.f32 %v1678, %v1677
        %v1680 = vmul.f32 0.5, %v1679
        %v1681 = vsub.f32 1.5, %v1680
        %v1682 = vmul.f32 %v1677, %v1681
        %vm1683 = vweird.f32 %v1676
        %vm1684 = vweird.f32 %v1677
        %vm1685 = vmor %vm1683, %vm1684
        %v1686 = vsel %vm1685, %v1677, %v1682
        %v1687 = vmul.f32 %v1670, %v1686
        %v1689 = vperm.slane %v1656, 0
        %v1691 = vmul.f32 %v1687, %v1689
        %v1693 = vperm.slane %v1657, 0
        %v1695 = vadd.f32 %v1691, %v1693
        %v1696 = vld [vmem:[%s893] sm:$0xf]
        %v1697 = vld [vmem:[%s893 + $0x4] sm:$0xf]
        %v1698 = vld [vmem:[%s893 + $0x8] sm:$0xf]
        %v1699 = vld [vmem:[%s893 + $0xc] sm:$0xf]
        %v1700 = vpack.c.bf16 %v1695, %v1695
        %v1701 = vld [vmem:[%s896] sm:$0x1]
        %v1703 = vperm.slane %v1701, 0
        %v1709 = vunpack.c.l.b16 %v1696
        %v1710 = vunpack.c.l.b16 %v1697
        %v1711 = vunpack.c.l.b16 %v1698
        %v1712 = vunpack.c.l.b16 %v1699
        %v1713 = vpack.c.b16 %v1710, %v1709
        %v1714 = vpack.c.b16 %v1712, %v1711
        %v1718 = vsel %vm1658, %v1700, 0
        %1720 = vmatpush.bf16.msra.mxu0 0
        %1721 = vmatpush.bf16.msra.mxu0 0
        %1722 = vmatpush.bf16.msra.mxu0 0
        %1723 = vmatpush.bf16.msra.mxu0 0
        %1724 = vmatpush.bf16.msra.mxu0 0
        %1725 = vmatpush.bf16.msra.mxu0 0
        %1726 = vmatpush.bf16.msra.mxu0 %v1714
        %1727 = vmatpush.bf16.msra.mxu0 %v1713
        %1728 = vmatmul.bf16.gmra.mxu0 %v1718
        %v1729 = vpop.f32.mrf.mxu0
        %v1730 = vadd.f32 %v1703, %v1729
        %v1731 = vpop.f32.mrf.mxu0
        %1732 = vdwg.mxu0
        %v1733 = vpack.c.bf16 %v1730, %v1730
        %v1735 = vunpack.c.l.b16 %v1733
        %v1736 = vpack.c.b16 %v1735, %v1735
        %1737 = vrot.lane.b32.xlu0 %v1736, 96
        %v1738 = vpop.permute.xlu0 %1737
        %vm1739 = vcmask 64512
        %v1741 = vsel %vm1739, %v1733, 0
        %v1744 = vsel %vm1739, %v1738, 0
        %1746 = vmatpush.bf16.xpose.msra.mxu0 0
        %1747 = vmatpush.bf16.xpose.msra.mxu0 0
        %1748 = vmatpush.bf16.xpose.msra.mxu0 0
        %1749 = vmatpush.bf16.xpose.msra.mxu0 0
        %1750 = vmatpush.bf16.xpose.msra.mxu0 0
        %1751 = vmatpush.bf16.xpose.msra.mxu0 0
        %1752 = vmatpush.bf16.xpose.msra.mxu0 0
        %1753 = vmatpush.bf16.xpose.msra.mxu0 %v1744
        %1754 = vmatmul.bf16.gmra.mxu0 %v1741
        %v1755 = vpop.f32.mrf.mxu0
        %v1756 = vadd.f32 0.0, %v1755
        %v1757 = vpop.f32.mrf.mxu0
        %1758 = vdwg.mxu0
        %v1759 = vmul.f32 %v1756, 0.35355338
        %v1761 = vperm.slane %v1655, 0
        %v1763 = vadd.f32 %v1759, %v1761
        %v1764 = vsel %vm1739, %v1763, -inf
        %1765 = vmax.xlane.f32.xlu0 %v1764
        %v1766 = vpop.xlane.xlu0 %1765
        %v1767 = vsub.f32 %v1763, %v1766
        %v1768 = vmul.f32 %v1767, 1.442695
        %v1769 = vpow.pop %v1768
        %v1770 = vsel %vm1739, %v1769, 0.0
        %1771 = vadd.xlane.f32.xlu0 %v1770
        %v1772 = vpop.xlane.xlu0 %1771
        %v1773 = vrcp.pop %v1772
        %v1774 = vmul.f32 %v1769, %v1773
        %v1776 = vperm.slane %v1653, 0
        %v1778 = vmul.f32 %v1774, %v1776
        %v1779 = vpack.c.bf16 %v1778, %v1778
        %1780 = vrot.lane.b32.xlu0 %v1736, 64
        %v1781 = vpop.permute.xlu0 %1780
        %v1783 = vsel %vm1739, %v1779, 0
        %vm1785 = vcmask 1043456
        %v1787 = vsel %vm1785, %v1781, 0
        %1789 = vmatpush.bf16.msra.mxu0 0
        %1790 = vmatpush.bf16.msra.mxu0 0
        %1791 = vmatpush.bf16.msra.mxu0 0
        %1792 = vmatpush.bf16.msra.mxu0 0
        %1793 = vmatpush.bf16.msra.mxu0 0
        %1794 = vmatpush.bf16.msra.mxu0 0
        %1795 = vmatpush.bf16.msra.mxu0 0
        %1796 = vmatpush.bf16.msra.mxu0 %v1787
        %1797 = vmatmul.bf16.gmra.mxu0 %v1783
        %v1798 = vpop.f32.mrf.mxu0
        %v1799 = vadd.f32 0.0, %v1798
        %v1800 = vpop.f32.mrf.mxu0
        %1801 = vdwg.mxu0
        %1802 = vrot.lane.b32.xlu0 %v1736, 120
        %v1803 = vpop.permute.xlu0 %1802
        %1804 = vrot.lane.b32.xlu0 %v1736, 88
        %v1805 = vpop.permute.xlu0 %1804
        %v1807 = vsel %vm1739, %v1803, 0
        %v1810 = vsel %vm1739, %v1805, 0
        %1812 = vmatpush.bf16.xpose.msra.mxu0 0
        %1813 = vmatpush.bf16.xpose.msra.mxu0 0
        %1814 = vmatpush.bf16.xpose.msra.mxu0 0
        %1815 = vmatpush.bf16.xpose.msra.mxu0 0
        %1816 = vmatpush.bf16.xpose.msra.mxu0 0
        %1817 = vmatpush.bf16.xpose.msra.mxu0 0
        %1818 = vmatpush.bf16.xpose.msra.mxu0 0
        %1819 = vmatpush.bf16.xpose.msra.mxu0 %v1810
        %1820 = vmatmul.bf16.gmra.mxu0 %v1807
        %v1821 = vpop.f32.mrf.mxu0
        %v1822 = vadd.f32 0.0, %v1821
        %v1823 = vpop.f32.mrf.mxu0
        %1824 = vdwg.mxu0
        %v1825 = vmul.f32 %v1822, 0.35355338
        %v1826 = vadd.f32 %v1825, %v1761
        %v1827 = vsel %vm1739, %v1826, -inf
        %1828 = vmax.xlane.f32.xlu0 %v1827
        %v1829 = vpop.xlane.xlu0 %1828
        %v1830 = vsub.f32 %v1826, %v1829
        %v1831 = vmul.f32 %v1830, 1.442695
        %v1832 = vpow.pop %v1831
        %v1833 = vsel %vm1739, %v1832, 0.0
        %1834 = vadd.xlane.f32.xlu0 %v1833
        %v1835 = vpop.xlane.xlu0 %1834
        %v1836 = vrcp.pop %v1835
        %v1837 = vmul.f32 %v1832, %v1836
        %v1838 = vmul.f32 %v1837, %v1776
        %v1839 = vpack.c.bf16 %v1838, %v1838
        %1840 = vrot.lane.b32.xlu0 %v1736, 56
        %v1841 = vpop.permute.xlu0 %1840
        %v1843 = vsel %vm1739, %v1839, 0
        %v1846 = vsel %vm1785, %v1841, 0
        %1848 = vmatpush.bf16.msra.mxu0 0
        %1849 = vmatpush.bf16.msra.mxu0 0
        %1850 = vmatpush.bf16.msra.mxu0 0
        %1851 = vmatpush.bf16.msra.mxu0 0
        %1852 = vmatpush.bf16.msra.mxu0 0
        %1853 = vmatpush.bf16.msra.mxu0 0
        %1854 = vmatpush.bf16.msra.mxu0 0
        %1855 = vmatpush.bf16.msra.mxu0 %v1846
        %1856 = vmatmul.bf16.gmra.mxu0 %v1843
        %v1857 = vpop.f32.mrf.mxu0
        %v1858 = vadd.f32 0.0, %v1857
        %v1859 = vpop.f32.mrf.mxu0
        %1860 = vdwg.mxu0
        %1861 = vrot.lane.b32.xlu0 %v1736, 112
        %v1862 = vpop.permute.xlu0 %1861
        %1863 = vrot.lane.b32.xlu0 %v1736, 80
        %v1864 = vpop.permute.xlu0 %1863
        %v1866 = vsel %vm1739, %v1862, 0
        %v1869 = vsel %vm1739, %v1864, 0
        %1871 = vmatpush.bf16.xpose.msra.mxu0 0
        %1872 = vmatpush.bf16.xpose.msra.mxu0 0
        %1873 = vmatpush.bf16.xpose.msra.mxu0 0
        %1874 = vmatpush.bf16.xpose.msra.mxu0 0
        %1875 = vmatpush.bf16.xpose.msra.mxu0 0
        %1876 = vmatpush.bf16.xpose.msra.mxu0 0
        %1877 = vmatpush.bf16.xpose.msra.mxu0 0
        %1878 = vmatpush.bf16.xpose.msra.mxu0 %v1869
        %1879 = vmatmul.bf16.gmra.mxu0 %v1866
        %v1880 = vpop.f32.mrf.mxu0
        %v1881 = vadd.f32 0.0, %v1880
        %v1882 = vpop.f32.mrf.mxu0
        %1883 = vdwg.mxu0
        %v1884 = vmul.f32 %v1881, 0.35355338
        %v1885 = vadd.f32 %v1884, %v1761
        %v1886 = vsel %vm1739, %v1885, -inf
        %1887 = vmax.xlane.f32.xlu0 %v1886
        %v1888 = vpop.xlane.xlu0 %1887
        %v1889 = vsub.f32 %v1885, %v1888
        %v1890 = vmul.f32 %v1889, 1.442695
        %v1891 = vpow.pop %v1890
        %v1892 = vsel %vm1739, %v1891, 0.0
        %1893 = vadd.xlane.f32.xlu0 %v1892
        %v1894 = vpop.xlane.xlu0 %1893
        %v1895 = vrcp.pop %v1894
        %v1896 = vmul.f32 %v1891, %v1895
        %v1897 = vmul.f32 %v1896, %v1776
        %v1898 = vpack.c.bf16 %v1897, %v1897
        %1899 = vrot.lane.b32.xlu0 %v1736, 48
        %v1900 = vpop.permute.xlu0 %1899
        %v1902 = vsel %vm1739, %v1898, 0
        %v1905 = vsel %vm1785, %v1900, 0
        %1907 = vmatpush.bf16.msra.mxu0 0
        %1908 = vmatpush.bf16.msra.mxu0 0
        %1909 = vmatpush.bf16.msra.mxu0 0
        %1910 = vmatpush.bf16.msra.mxu0 0
        %1911 = vmatpush.bf16.msra.mxu0 0
        %1912 = vmatpush.bf16.msra.mxu0 0
        %1913 = vmatpush.bf16.msra.mxu0 0
        %1914 = vmatpush.bf16.msra.mxu0 %v1905
        %1915 = vmatmul.bf16.gmra.mxu0 %v1902
        %v1916 = vpop.f32.mrf.mxu0
        %v1917 = vadd.f32 0.0, %v1916
        %v1918 = vpop.f32.mrf.mxu0
        %1919 = vdwg.mxu0
        %1920 = vrot.lane.b32.xlu0 %v1736, 104
        %v1921 = vpop.permute.xlu0 %1920
        %1922 = vrot.lane.b32.xlu0 %v1736, 72
        %v1923 = vpop.permute.xlu0 %1922
        %v1925 = vsel %vm1739, %v1921, 0
        %v1928 = vsel %vm1739, %v1923, 0
        %1930 = vmatpush.bf16.xpose.msra.mxu0 0
        %1931 = vmatpush.bf16.xpose.msra.mxu0 0
        %1932 = vmatpush.bf16.xpose.msra.mxu0 0
        %1933 = vmatpush.bf16.xpose.msra.mxu0 0
        %1934 = vmatpush.bf16.xpose.msra.mxu0 0
        %1935 = vmatpush.bf16.xpose.msra.mxu0 0
        %1936 = vmatpush.bf16.xpose.msra.mxu0 0
        %1937 = vmatpush.bf16.xpose.msra.mxu0 %v1928
        %1938 = vmatmul.bf16.gmra.mxu0 %v1925
        %v1939 = vpop.f32.mrf.mxu0
        %v1940 = vadd.f32 0.0, %v1939
        %v1941 = vpop.f32.mrf.mxu0
        %1942 = vdwg.mxu0
        %v1943 = vmul.f32 %v1940, 0.35355338
        %v1944 = vadd.f32 %v1943, %v1761
        %v1945 = vsel %vm1739, %v1944, -inf
        %1946 = vmax.xlane.f32.xlu0 %v1945
        %v1947 = vpop.xlane.xlu0 %1946
        %v1948 = vsub.f32 %v1944, %v1947
        %v1949 = vmul.f32 %v1948, 1.442695
        %v1950 = vpow.pop %v1949
        %v1951 = vsel %vm1739, %v1950, 0.0
        %1952 = vadd.xlane.f32.xlu0 %v1951
        %v1953 = vpop.xlane.xlu0 %1952
        %v1954 = vrcp.pop %v1953
        %v1955 = vmul.f32 %v1950, %v1954
        %v1956 = vmul.f32 %v1955, %v1776
        %v1957 = vpack.c.bf16 %v1956, %v1956
        %1958 = vrot.lane.b32.xlu0 %v1736, 40
        %v1959 = vpop.permute.xlu0 %1958
        %v1961 = vsel %vm1739, %v1957, 0
        %v1964 = vsel %vm1785, %v1959, 0
        %1966 = vmatpush.bf16.msra.mxu0 0
        %1967 = vmatpush.bf16.msra.mxu0 0
        %1968 = vmatpush.bf16.msra.mxu0 0
        %1969 = vmatpush.bf16.msra.mxu0 0
        %1970 = vmatpush.bf16.msra.mxu0 0
        %1971 = vmatpush.bf16.msra.mxu0 0
        %1972 = vmatpush.bf16.msra.mxu0 0
        %1973 = vmatpush.bf16.msra.mxu0 %v1964
        %1974 = vmatmul.bf16.gmra.mxu0 %v1961
        %v1975 = vpop.f32.mrf.mxu0
        %v1976 = vadd.f32 0.0, %v1975
        %v1977 = vpop.f32.mrf.mxu0
        %1978 = vdwg.mxu0
        %1980 = vrot.lane.b32.xlu0 %v1858, 8
        %v1981 = vpop.permute.xlu0 %1980
        %1984 = vrot.lane.b32.xlu0 %v1917, 16
        %v1985 = vpop.permute.xlu0 %1984
        %1988 = vrot.lane.b32.xlu0 %v1976, 24
        %v1989 = vpop.permute.xlu0 %1988
        %v1991 = vsel %vm1739, %v1799, %v1981
        %vm1992 = vcmask 130048
        %v1993 = vsel %vm1992, %v1991, %v1985
        %vm1994 = vcmask 195584
        %v1995 = vsel %vm1994, %v1993, %v1989
        %v1996 = vld [vmem:[%s901] sm:$0xf]
        %v1997 = vld [vmem:[%s901 + $0x4] sm:$0xf]
        %v1998 = vld [vmem:[%s901 + $0x8] sm:$0xf]
        %v1999 = vld [vmem:[%s901 + $0xc] sm:$0xf]
        %v2000 = vpack.c.bf16 %v1995, %v1995
        %v2005 = vunpack.c.l.b16 %v1996
        %v2006 = vunpack.c.l.b16 %v1997
        %v2007 = vunpack.c.l.b16 %v1998
        %v2008 = vunpack.c.l.b16 %v1999
        %v2009 = vpack.c.b16 %v2006, %v2005
        %v2010 = vpack.c.b16 %v2008, %v2007
        %v2014 = vsel %vm1658, %v2000, 0
        %2016 = vmatpush.bf16.msra.mxu0 0
        %2017 = vmatpush.bf16.msra.mxu0 0
        %2018 = vmatpush.bf16.msra.mxu0 0
        %2019 = vmatpush.bf16.msra.mxu0 0
        %2020 = vmatpush.bf16.msra.mxu0 0
        %2021 = vmatpush.bf16.msra.mxu0 0
        %2022 = vmatpush.bf16.msra.mxu0 %v2010
        %2023 = vmatpush.bf16.msra.mxu0 %v2009
        %2024 = vmatmul.bf16.gmra.mxu0 %v2014
        %v2025 = vpop.f32.mrf.mxu0
        %v2026 = vadd.f32 0.0, %v2025
        %v2027 = vpop.f32.mrf.mxu0
        %2028 = vdwg.mxu0
        %v2029 = vadd.f32 %v1652, %v2026
        %v2030 = vld [vmem:[%s904] sm:$0x1]
        %v2032 = vperm.slane %v2030, 0
        %v2034 = vadd.f32 %v2029, %v2032
        %v2035 = vld [vmem:[%s907] sm:$0x1]
        %v2036 = vld [vmem:[%s910] sm:$0x1]
        %v2037 = vsel %vm1658, %v2034, 0.0
        %2038 = vadd.xlane.f32.xlu0 %v2037
        %v2039 = vpop.xlane.xlu0 %2038
        %v2040 = vmul.f32 %v2039, %v1668
        %v2041 = vsub.f32 %v2034, %v2040
        %v2042 = vmul.f32 %v2041, %v2041
        %v2043 = vsel %vm1658, %v2042, 0.0
        %2044 = vadd.xlane.f32.xlu0 %v2043
        %v2045 = vpop.xlane.xlu0 %2044
        %v2046 = vmul.f32 %v2045, %v1668
        %v2047 = vadd.f32 %v2046, 1e-12
        %v2048 = vrsqrt.pop %v2047
        %v2049 = vmul.f32 %v2048, %v2047
        %v2050 = vmul.f32 %v2049, %v2048
        %v2051 = vmul.f32 0.5, %v2050
        %v2052 = vsub.f32 1.5, %v2051
        %v2053 = vmul.f32 %v2048, %v2052
        %vm2054 = vweird.f32 %v2047
        %vm2055 = vweird.f32 %v2048
        %vm2056 = vmor %vm2054, %vm2055
        %v2057 = vsel %vm2056, %v2048, %v2053
        %v2058 = vmul.f32 %v2041, %v2057
        %v2060 = vperm.slane %v2035, 0
        %v2062 = vmul.f32 %v2058, %v2060
        %v2064 = vperm.slane %v2036, 0
        %v2066 = vadd.f32 %v2062, %v2064
        %v2067 = vld [vmem:[%s915] sm:$0xf]
        %v2068 = vld [vmem:[%s915 + $0x4] sm:$0xf]
        %v2069 = vld [vmem:[%s915 + $0x8] sm:$0xf]
        %v2070 = vld [vmem:[%s915 + $0xc] sm:$0xf]
        %v2071 = vpack.c.bf16 %v2066, %v2066
        %v2072 = vld [vmem:[%s918] sm:$0x1]
        %v2074 = vperm.slane %v2072, 0
        %v2080 = vunpack.c.l.b16 %v2067
        %v2081 = vunpack.c.l.b16 %v2068
        %v2082 = vunpack.c.l.b16 %v2069
        %v2083 = vunpack.c.l.b16 %v2070
        %v2084 = vpack.c.b16 %v2081, %v2080
        %v2085 = vpack.c.b16 %v2083, %v2082
        %v2089 = vsel %vm1658, %v2071, 0
        %2091 = vmatpush.bf16.msra.mxu0 0
        %2092 = vmatpush.bf16.msra.mxu0 0
        %2093 = vmatpush.bf16.msra.mxu0 0
        %2094 = vmatpush.bf16.msra.mxu0 0
        %2095 = vmatpush.bf16.msra.mxu0 0
        %2096 = vmatpush.bf16.msra.mxu0 0
        %2097 = vmatpush.bf16.msra.mxu0 %v2085
        %2098 = vmatpush.bf16.msra.mxu0 %v2084
        %2099 = vmatmul.bf16.gmra.mxu0 %v2089
        %v2100 = vpop.f32.mrf.mxu0
        %v2101 = vadd.f32 %v2074, %v2100
        %v2102 = vpop.f32.mrf.mxu0
        %2103 = vdwg.mxu0
        %v2104 = vxor.u32 %v2101, 2147483648
        %v2105 = vmul.f32 %v2104, 1.442695
        %v2106 = vpow.pop %v2105
        %v2107 = vadd.f32 %v2106, 1.0
        %v2108 = vrcp.pop %v2107
        %v2109 = vmul.f32 %v2107, %v2108
        %v2110 = vsub.f32 1.0, %v2109
        %v2111 = vmul.f32 %v2108, %v2110
        %v2112 = vadd.f32 %v2108, %v2111
        %vm2113 = vweird.f32 %v2107
        %vm2114 = vweird.f32 %v2108
        %vm2115 = vmor %vm2113, %vm2114
        %v2116 = vsel %vm2115, %v2108, %v2112
        %v2117 = vand.u32 2147483647, %v2107
        %vm2118 = vcmp.eq.f32.partialorder %v2117, 8.507059e+37
        %v2119 = vand.u32 %v2107, 2147483648
        %v2120 = vor.u32 1.1754944e-38, %v2119
        %v2121 = vsel %vm2118, %v2120, %v2116
        %v2122 = vmul.f32 1.0, %v2121
        %v2123 = vmul.f32 %v2101, %v2122
        %v2124 = vld [vmem:[%s923] sm:$0xf]
        %v2125 = vld [vmem:[%s923 + $0x4] sm:$0xf]
        %v2126 = vld [vmem:[%s923 + $0x8] sm:$0xf]
        %v2127 = vld [vmem:[%s923 + $0xc] sm:$0xf]
        %v2128 = vld [vmem:[%s923 + $0x10] sm:$0xf]
        %v2129 = vld [vmem:[%s923 + $0x14] sm:$0xf]
        %v2130 = vld [vmem:[%s923 + $0x18] sm:$0xf]
        %v2131 = vld [vmem:[%s923 + $0x1c] sm:$0xf]
        %v2132 = vpack.c.bf16 %v2123, %v2123
        %v2141 = vunpack.c.l.b16 %v2124
        %v2142 = vunpack.c.l.b16 %v2125
        %v2143 = vunpack.c.l.b16 %v2126
        %v2144 = vunpack.c.l.b16 %v2127
        %v2145 = vunpack.c.l.b16 %v2128
        %v2146 = vunpack.c.l.b16 %v2129
        %v2147 = vunpack.c.l.b16 %v2130
        %v2148 = vunpack.c.l.b16 %v2131
        %v2149 = vpack.c.b16 %v2142, %v2141
        %v2150 = vpack.c.b16 %v2144, %v2143
        %v2151 = vpack.c.b16 %v2146, %v2145
        %v2152 = vpack.c.b16 %v2148, %v2147
        %vm2157 = vcmask 523264
        %v2159 = vsel %vm2157, %v2132, 0
        %2161 = vmatpush.bf16.msra.mxu0 0
        %2162 = vmatpush.bf16.msra.mxu0 0
        %2163 = vmatpush.bf16.msra.mxu0 0
        %2164 = vmatpush.bf16.msra.mxu0 0
        %2165 = vmatpush.bf16.msra.mxu0 %v2152
        %2166 = vmatpush.bf16.msra.mxu0 %v2151
        %2167 = vmatpush.bf16.msra.mxu0 %v2150
        %2168 = vmatpush.bf16.msra.mxu0 %v2149
        %2169 = vmatmul.bf16.gmra.mxu0 %v2159
        %v2170 = vpop.f32.mrf.mxu0
        %v2171 = vadd.f32 0.0, %v2170
        %v2172 = vpop.f32.mrf.mxu0
        %2173 = vdwg.mxu0
        %v2174 = vadd.f32 %v2034, %v2171
        %v2175 = vld [vmem:[%s926] sm:$0x1]
        %v2177 = vperm.slane %v2175, 0
        %v2179 = vadd.f32 %v2174, %v2177
        %2180 = vst.msk [vmem:[#allocation3] sm:$0xff] %vm1658, %v2179
        %p2181 = scmp.eq.s32.totalorder %s42, 1
        // Predicated region
        $region117: #{_lambda_.1} parent=111 // pred_check
          %p2182 = pneg %p2181
        $region118: #{_lambda_.1} parent=111 // pred_check_branch
          %2184 = sbr.rel (%p2182) target = $region120
        $region119: #{_lambda_.1} parent=111 // pred_region
          %v2185 = vld [vmem:[%s21] sm:$0x1]
          %v2186 = vld [vmem:[%s22] sm:$0x1]
          %v2187 = vsel %vm1658, %v2179, 0.0
          %2188 = vadd.xlane.f32.xlu0 %v2187
          %v2189 = vpop.xlane.xlu0 %2188
          %v2190 = vmul.f32 %v2189, %v1668
          %v2191 = vsub.f32 %v2179, %v2190
          %v2192 = vmul.f32 %v2191, %v2191
          %v2193 = vsel %vm1658, %v2192, 0.0
          %2194 = vadd.xlane.f32.xlu0 %v2193
          %v2195 = vpop.xlane.xlu0 %2194
          %v2196 = vmul.f32 %v2195, %v1668
          %v2197 = vadd.f32 %v2196, 1e-12
          %v2198 = vrsqrt.pop %v2197
          %v2199 = vmul.f32 %v2198, %v2197
          %v2200 = vmul.f32 %v2199, %v2198
          %v2201 = vmul.f32 0.5, %v2200
          %v2202 = vsub.f32 1.5, %v2201
          %v2203 = vmul.f32 %v2198, %v2202
          %vm2204 = vweird.f32 %v2197
          %vm2205 = vweird.f32 %v2198
          %vm2206 = vmor %vm2204, %vm2205
          %v2207 = vsel %vm2206, %v2198, %v2203
          %v2208 = vmul.f32 %v2191, %v2207
          %v2210 = vperm.slane %v2185, 0
          %v2212 = vmul.f32 %v2208, %v2210
          %v2214 = vperm.slane %v2186, 0
          %v2216 = vadd.f32 %v2212, %v2214
          %2217 = vst.msk [vmem:[%s874] sm:$0xff] %vm1658, %v2216
        $region120: #{_lambda_.1} parent=111 // pred_fallthru
          _
        %s2218 = sand.u32 %s610, 1
        %s2219 = scalar_lea.sflag [#allocation5], %s2218
        %s2220 = sand.u32 %s610, 1
        %s2221 = smul.addr %s2220, 8
        %s2222 = scalar_lea.vmem [#allocation4], %s2221
        // Predicated region
        $region121: #{_lambda_.1} parent=111 // pred_check
          %p2223 = pneg %p620
        $region122: #{_lambda_.1} parent=111 // pred_check_branch
          %2225 = sbr.rel (%p2223) target = $region124
        $region123: #{_lambda_.1} parent=111 // pred_region
          %2227 = vsyncadd %s2219, 0
          %s2228 = smul.addr %s41, 8
          %s2229 = scalar_lea.hbm %s23, %s2228
          %s2231 = sshll.u32 %s2222, 4
          %s2232 = int_to_ptr.vmem [resolvable:$true] %s2231
          %s2233 = sshll.u32 %s2229, 4
          %s2234 = int_to_ptr.hbm [resolvable:$true] %s2233
          %2236 = dma.vmem_to_hbm [thread:$0]  %s2232, 128, %s2234, %s2219
        $region124: #{_lambda_.1} parent=111 // pred_fallthru
          _
      $region112: #{_lambda_.1} parent=5 // pred_fallthru
        _
      %p2237 = scmp.le.s32.totalorder 2, %s32
      // Predicated region
      $region125: #{_lambda_.1} parent=5 // pred_check
        %p2238 = pneg %p2237
      $region126: #{_lambda_.1} parent=5 // pred_check_branch
        %2240 = sbr.rel (%p2238) target = $region128
      $region127: #{_lambda_.1} parent=5 // pred_region
        %s2241 = ssub.s32 %s32, 2
        // Predicated region
        $region129: #{_lambda_.1} parent=127 // pred_check
          %p2242 = pneg %p626
        $region130: #{_lambda_.1} parent=127 // pred_check_branch
          %2244 = sbr.rel (%p2242) target = $region132
        $region131: #{_lambda_.1} parent=127 // pred_region
          %s2245 = sand.u32 %s611, 1
          %s2246 = scalar_lea.sflag [#allocation5], %s2245
          %s2247 = sand.u32 %s611, 1
          %s2248 = smul.addr %s2247, 8
          %s2249 = scalar_lea.vmem [#allocation4], %s2248
          %2251 = dma.done %s2246, 128
        $region132: #{_lambda_.1} parent=127 // pred_fallthru
          _
      $region128: #{_lambda_.1} parent=5 // pred_fallthru
        _
    $region6: #{_lambda_.1} parent=1 // loop_footer
      %s36 = sadd.s32 1, %s32
    $region7: #{_lambda_.1} parent=1 // loop_footer_branch
      %31 = sbr.rel target = $region3
    $region8: #{_lambda_.1} parent=1 // loop_exit
      _
    %2252 = vsyncpa [#allocation5], 1
    %s2253 = scalar_lea.sflag [#allocation5], 1
    %2254 = vsyncpa %s2253, 1

</llo_original>
